<compile_context>
chip_gen: v5e
topology: v5e:2x2
jax: 0.10.0
libtpu: 0.0.40
codegen_flags: <defaults>
</compile_context>

<pallas_src>
import functools

import jax
import jax.numpy as jnp
from jax import lax
from jax.experimental import pallas as pl
from jax.experimental.pallas import tpu as pltpu


def _bottleneck_kernel(x_ref, w1_ref, w2_ref, w3_ref, vec_ref, out_ref, *,
                       stride, has_conv_shortcut, Bt, H, W, Cin, Cr, Cout):
    Ho, Wo = H // stride, W // stride
    M1 = Bt * H * W           # rows of the first 1x1 matmul
    Mo = Bt * Ho * Wo         # rows of the 3x3 / final matmuls

    # Packed per-channel vectors: rows = [c1, a1, c2, a2, c3, 0, 0, 0].
    vec = vec_ref[...]                               # (8, Cout) f32
    c1, a1 = vec[0, :Cr], vec[1, :Cr]
    c2, a2 = vec[2, :Cr], vec[3, :Cr]
    c3 = vec[4, :]

    x = x_ref[...]                                   # (Bt, H, W, Cin) f32

    # ---- 1x1 conv (BN0 & BN1 folded into weight/bias) + PReLU --------------
    xb = x.reshape(M1, Cin).astype(jnp.bfloat16)
    y = jnp.dot(xb, w1_ref[...], preferred_element_type=jnp.float32)
    y = y + c1
    y = jnp.where(y >= 0.0, y, a1 * y)               # (M1, Cr) f32
    yb = y.astype(jnp.bfloat16)                      # cast once; im2col is bf16

    # ---- 3x3 conv as ONE im2col matmul, evaluated only at the strided ------
    # ---- output positions (BN2 folded into w2) + PReLU ---------------------
    yp = jnp.pad(yb.reshape(Bt, H, W, Cr),
                 ((0, 0), (1, 1), (1, 1), (0, 0)))   # (Bt, H+2, W+2, Cr) bf16
    taps = []
    if stride == 1:
        for dy in range(3):
            for dx in range(3):
                taps.append(yp[:, dy:dy + H, dx:dx + W, :].reshape(Mo, Cr))
    else:
        s = stride
        # De-interleave the padded map once into s*s parity planes; every tap
        # is then a contiguous slice (no work at positions the strided 1x1
        # conv would discard, and no per-tap strided gathers).
        p6 = yp.reshape(Bt, (H + 2) // s, s, (W + 2) // s, s, Cr)
        planes = [[p6[:, :, pr, :, pc, :] for pc in range(s)] for pr in range(s)]
        for dy in range(3):
            for dx in range(3):
                plane = planes[dy % s][dx % s]       # (Bt, Ho+1, Wo+1, Cr)
                tap = plane[:, dy // s:dy // s + Ho, dx // s:dx // s + Wo, :]
                taps.append(tap.reshape(Mo, Cr))
    col = jnp.concatenate(taps, axis=-1)             # (Mo, 9*Cr) bf16
    z = jnp.dot(col, w2_ref[...], preferred_element_type=jnp.float32)
    z = z + c2
    z = jnp.where(z >= 0.0, z, a2 * z)               # (Mo, Cr) f32

    # ---- final 1x1 conv (stride already applied) + shortcut ----------------
    if stride == 1:
        xs = x.reshape(Mo, Cin)
    else:
        xs = x.reshape(Bt, Ho, stride, Wo, stride, Cin)[:, :, 0, :, 0, :]
        xs = xs.reshape(Mo, Cin)

    if has_conv_shortcut:
        # res and shortcut matmuls merged into one wide-K matmul; BN3/BNs and
        # both biases are folded into w3_ref / c3.
        rhs = jnp.concatenate(
            [z.astype(jnp.bfloat16), xs.astype(jnp.bfloat16)], axis=-1)
        out = jnp.dot(rhs, w3_ref[...], preferred_element_type=jnp.float32)
        out = out + c3
    else:
        out = jnp.dot(z.astype(jnp.bfloat16), w3_ref[...],
                      preferred_element_type=jnp.float32)
        out = out + c3 + xs                          # MaxPool2d(1, s) shortcut (f32)

    out_ref[...] = out.reshape(Bt, Ho * Wo, Cout)


def _pick_batch_tile(B, Ho, Wo, m_target=256):
    """Fill one MXU M tile while keeping >=2 parallel grid steps (v7x: 2 TCs)."""
    divisors = [d for d in range(1, B + 1) if B % d == 0]
    cands = [d for d in divisors if B // d >= 2] or divisors
    filled = [d for d in cands if d * Ho * Wo >= m_target]
    return min(filled) if filled else max(cands)


def bottleneck_ir(x_nhwc, kp, *, in_channel, depth, stride, batch_tile=None):
    B, H, W, Cin = x_nhwc.shape
    assert Cin == in_channel
    assert stride in (1, 2), "IR-Net blocks use stride 1 or 2"
    assert H % stride == 0 and W % stride == 0
    Cr = depth // 4
    Cout = depth
    Ho, Wo = H // stride, W // stride
    has_conv_shortcut = in_channel != depth
    Kf = Cr + Cin if has_conv_shortcut else Cr       # K of the final (merged) matmul

    Bt = batch_tile if batch_tile is not None else _pick_batch_tile(B, Ho, Wo)
    assert B % Bt == 0
    n_steps = B // Bt

    kern = functools.partial(
        _bottleneck_kernel, stride=stride, has_conv_shortcut=has_conv_shortcut,
        Bt=Bt, H=H, W=W, Cin=Cin, Cr=Cr, Cout=Cout)

    def rep(shape):  # whole-array block, replicated across the batch-block grid
        return pl.BlockSpec(shape, lambda b: (0,) * len(shape))

    in_specs = [
        pl.BlockSpec((Bt, H, W, Cin), lambda b: (b, 0, 0, 0)),  # x
        rep((Cin, Cr)),                                         # w1  (bf16)
        rep((9 * Cr, Cr)),                                      # w2  (bf16)
        rep((Kf, Cout)),                                        # w3 | ws (bf16)
        rep((8, Cout)),                                         # packed c1,a1,c2,a2,c3
    ]
    args = (x_nhwc, kp["w1"], kp["w2"], kp["w3"], kp["vec"])

    flops = 2 * B * (H * W * Cin * Cr + Ho * Wo * (9 * Cr * Cr + Kf * Cout))
    bytes_accessed = (int(x_nhwc.size) * 4 + B * Ho * Wo * Cout * 4
                      + sum(int(v.size) * v.dtype.itemsize for v in kp.values()))

    out = pl.pallas_call(
        kern,
        out_shape=jax.ShapeDtypeStruct((B, Ho * Wo, Cout), jnp.float32),
        grid=(n_steps,),
        in_specs=in_specs,
        out_specs=pl.BlockSpec((Bt, Ho * Wo, Cout), lambda b: (b, 0, 0)),
        compiler_params=pltpu.CompilerParams(
            dimension_semantics=("parallel",),
            vmem_limit_bytes=64 * 1024 * 1024),
        cost_estimate=pl.CostEstimate(flops=flops, transcendentals=0,
                                      bytes_accessed=bytes_accessed),
    )(*args)
    return out.reshape(B, Ho, Wo, Cout)


# ----------------------- parameter construction ------------------------------
def _fold_bn(key, c):
    k1, k2, k3, k4 = jax.random.split(key, 4)
    gamma = 1.0 + 0.1 * jax.random.normal(k1, (c,), jnp.float32)
    beta = 0.1 * jax.random.normal(k2, (c,), jnp.float32)
    mean = 0.1 * jax.random.normal(k3, (c,), jnp.float32)
    var = 1.0 + 0.1 * jnp.abs(jax.random.normal(k4, (c,), jnp.float32))
    scale = gamma / jnp.sqrt(var + 1e-5)
    bias = beta - mean * scale
    return scale.reshape(1, c), bias.reshape(1, c)


def make_params(key, in_channel, depth):
    cr = depth // 4
    keys = jax.random.split(key, 12)
    p = {}
    p["bn0_s"], p["bn0_b"] = _fold_bn(keys[0], in_channel)
    p["w1"] = jax.random.normal(keys[1], (in_channel, cr), jnp.float32) / jnp.sqrt(1.0 * in_channel)
    p["bn1_s"], p["bn1_b"] = _fold_bn(keys[2], cr)
    p["a1"] = 0.25 + 0.05 * jax.random.normal(keys[3], (1, cr), jnp.float32)
    p["w2_hwio"] = jax.random.normal(keys[4], (3, 3, cr, cr), jnp.float32) / jnp.sqrt(9.0 * cr)
    p["bn2_s"], p["bn2_b"] = _fold_bn(keys[5], cr)
    p["a2"] = 0.25 + 0.05 * jax.random.normal(keys[6], (1, cr), jnp.float32)
    p["w3"] = jax.random.normal(keys[7], (cr, depth), jnp.float32) / jnp.sqrt(1.0 * cr)
    p["bn3_s"], p["bn3_b"] = _fold_bn(keys[8], depth)
    if in_channel != depth:
        p["ws"] = jax.random.normal(keys[9], (in_channel, depth), jnp.float32) / jnp.sqrt(1.0 * in_channel)
        p["bns_s"], p["bns_b"] = _fold_bn(keys[10], depth)
    return p


def fold_params(p, *, in_channel, depth):
    """Fold inference BatchNorms into the conv weights, merge res/shortcut,
    and pack the tiny per-channel vectors into one block."""
    cr = depth // 4
    s0, b0 = p["bn0_s"][0], p["bn0_b"][0]
    s1, b1 = p["bn1_s"][0], p["bn1_b"][0]
    s2, b2 = p["bn2_s"][0], p["bn2_b"][0]
    s3, b3 = p["bn3_s"][0], p["bn3_b"][0]

    w1 = p["w1"]
    w1f = (s0[:, None] * w1) * s1[None, :]
    c1 = (b0 @ w1) * s1 + b1

    w2f = p["w2_hwio"].reshape(9 * cr, cr) * s2[None, :]
    c2 = b2

    w3f = p["w3"] * s3[None, :]
    c3 = b3
    if in_channel != depth:
        ss, bs = p["bns_s"][0], p["bns_b"][0]
        wsf = p["ws"] * ss[None, :]
        w3f = jnp.concatenate([w3f, wsf], axis=0)    # (cr + in_channel, depth)
        c3 = b3 + bs

    vec = jnp.zeros((8, depth), jnp.float32)
    vec = vec.at[0, :cr].set(c1)
    vec = vec.at[1, :cr].set(p["a1"][0])
    vec = vec.at[2, :cr].set(c2)
    vec = vec.at[3, :cr].set(p["a2"][0])
    vec = vec.at[4, :].set(c3)

    return {
        "w1": w1f.astype(jnp.bfloat16),
        "w2": w2f.astype(jnp.bfloat16),
        "w3": w3f.astype(jnp.bfloat16),
        "vec": vec,
    }


# ----------------------------- pure-JAX reference ----------------------------
def reference(x_nhwc, p, *, in_channel, depth, stride):
    cr = depth // 4
    dn = ("NHWC", "HWIO", "NHWC")
    y = x_nhwc * p["bn0_s"] + p["bn0_b"]
    y = lax.conv_general_dilated(y, p["w1"].reshape(1, 1, in_channel, cr),
                                 (1, 1), "VALID", dimension_numbers=dn)
    y = y * p["bn1_s"] + p["bn1_b"]
    y = jnp.where(y >= 0, y, p["a1"] * y)
    y = lax.conv_general_dilated(y, p["w2_hwio"], (1, 1), ((1, 1), (1, 1)),
                                 dimension_numbers=dn)
    y = y * p["bn2_s"] + p["bn2_b"]
    y = jnp.where(y >= 0, y, p["a2"] * y)
    y = lax.conv_general_dilated(y, p["w3"].reshape(1, 1, cr, depth),
                                 (stride, stride), "VALID", dimension_numbers=dn)
    y = y * p["bn3_s"] + p["bn3_b"]
    if in_channel != depth:
        sc = lax.conv_general_dilated(x_nhwc, p["ws"].reshape(1, 1, in_channel, depth),
                                      (stride, stride), "VALID", dimension_numbers=dn)
        sc = sc * p["bns_s"] + p["bns_b"]
    else:
        sc = x_nhwc[:, ::stride, ::stride, :]
    return y + sc


if __name__ == "__main__":
    # Late-stage IR-Net block shapes (small spatial, realistic channel counts;
    # depth=512 keeps every lane-dim concat 128-aligned).  B=4 exercises the
    # batch-into-M folding with >=2 parallel grid steps.
    configs = [
        (256, 512, 2),   # conv shortcut + merged matmul, strided 3x3 path
        (512, 512, 1),   # identity (MaxPool) shortcut, stride-1 path
        (512, 512, 2),   # identity shortcut with strided subsample
    ]
    B, H, W = 4, 8, 8
    key = jax.random.PRNGKey(0)

    for cfg_i, (cin, depth, stride) in enumerate(configs):
        kx, kparams = jax.random.split(jax.random.fold_in(key, cfg_i))
        x_nchw = jax.random.normal(kx, (B, cin, H, W), jnp.float32)   # PyTorch layout
        x_nhwc = jnp.transpose(x_nchw, (0, 2, 3, 1))                  # kernel layout
        raw = make_params(kparams, cin, depth)
        kp = fold_params(raw, in_channel=cin, depth=depth)

        out = bottleneck_ir(x_nhwc, kp, in_channel=cin, depth=depth, stride=stride)
        out = jax.block_until_ready(out)

        ref = reference(x_nhwc, raw, in_channel=cin, depth=depth, stride=stride)
        assert out.shape == (B, H // stride, W // stride, depth)
        # bf16 matmuls with f32 accumulation -> looser tolerance than pure f32.
        assert jnp.allclose(out, ref, atol=5e-2, rtol=5e-2), (
            cfg_i, float(jnp.max(jnp.abs(out - ref))))

    print("KERNEL_OK")
</pallas_src>

<mosaic_0001>
module attributes {stable_mosaic.version = 11 : i64} {
  func.func @_bottleneck_kernel(%arg0: i32, %arg1: memref<2x8x8x256xf32, #tpu.memory_space<vmem>>, %arg2: memref<256x128xbf16, #tpu.memory_space<vmem>>, %arg3: memref<1152x128xbf16, #tpu.memory_space<vmem>>, %arg4: memref<384x512xbf16, #tpu.memory_space<vmem>>, %arg5: memref<8x512xf32, #tpu.memory_space<vmem>>, %arg6: memref<2x16x512xf32, #tpu.memory_space<vmem>>) attributes {dimension_semantics = [#tpu.dimension_semantics<parallel>], iteration_bounds = array<i64: 2>, scalar_prefetch = 0 : i64, scratch_operands = 0 : i64, tpu.core_type = #tpu.core_type<tc>, window_params = [{transform_indices = @transform_0, window_bounds = array<i64: 2, 8, 8, 256>}, {pipeline_mode = #tpu.pipeline_mode<synchronous>, transform_indices = @transform_1, window_bounds = array<i64: 256, 128>}, {pipeline_mode = #tpu.pipeline_mode<synchronous>, transform_indices = @transform_2, window_bounds = array<i64: 1152, 128>}, {pipeline_mode = #tpu.pipeline_mode<synchronous>, transform_indices = @transform_3, window_bounds = array<i64: 384, 512>}, {pipeline_mode = #tpu.pipeline_mode<synchronous>, transform_indices = @transform_4, window_bounds = array<i64: 8, 512>}, {transform_indices = @transform_5, window_bounds = array<i64: 2, 16, 512>}]} {
    %c0 = arith.constant 0 : index
    %c0_0 = arith.constant 0 : index
    %0 = vector.load %arg5[%c0, %c0_0] : memref<8x512xf32, #tpu.memory_space<vmem>>, vector<8x512xf32>
    %1 = vector.extract_strided_slice %0 {offsets = [0, 0], sizes = [1, 128], strides = [1, 1]} : vector<8x512xf32> to vector<1x128xf32>
    %2 = vector.shape_cast %1 : vector<1x128xf32> to vector<128xf32>
    %3 = vector.extract_strided_slice %0 {offsets = [1, 0], sizes = [1, 128], strides = [1, 1]} : vector<8x512xf32> to vector<1x128xf32>
    %4 = vector.shape_cast %3 : vector<1x128xf32> to vector<128xf32>
    %5 = vector.extract_strided_slice %0 {offsets = [2, 0], sizes = [1, 128], strides = [1, 1]} : vector<8x512xf32> to vector<1x128xf32>
    %6 = vector.shape_cast %5 : vector<1x128xf32> to vector<128xf32>
    %7 = vector.extract_strided_slice %0 {offsets = [3, 0], sizes = [1, 128], strides = [1, 1]} : vector<8x512xf32> to vector<1x128xf32>
    %8 = vector.shape_cast %7 : vector<1x128xf32> to vector<128xf32>
    %9 = vector.extract_strided_slice %0 {offsets = [4, 0], sizes = [1, 512], strides = [1, 1]} : vector<8x512xf32> to vector<1x512xf32>
    %10 = vector.shape_cast %9 : vector<1x512xf32> to vector<512xf32>
    %c0_1 = arith.constant 0 : index
    %c0_2 = arith.constant 0 : index
    %c0_3 = arith.constant 0 : index
    %c0_4 = arith.constant 0 : index
    %11 = vector.load %arg1[%c0_1, %c0_2, %c0_3, %c0_4] : memref<2x8x8x256xf32, #tpu.memory_space<vmem>>, vector<2x8x8x256xf32>
    %12 = vector.shape_cast %11 : vector<2x8x8x256xf32> to vector<128x256xf32>
    %13 = arith.truncf %12 : vector<128x256xf32> to vector<128x256xbf16>
    %c0_5 = arith.constant 0 : index
    %c0_6 = arith.constant 0 : index
    %14 = vector.load %arg2[%c0_5, %c0_6] : memref<256x128xbf16, #tpu.memory_space<vmem>>, vector<256x128xbf16>
    %cst = arith.constant dense<0.000000e+00> : vector<128x128xf32>
    %15 = tpu.matmul %13, %14, %cst {dimension_numbers = #tpu.dot_dimension_numbers<[1], [0], [0], [1], [0, 0, 1, 1], [], []>} : vector<128x256xbf16>, vector<256x128xbf16>, vector<128x128xf32> -> vector<128x128xf32>
    %16 = vector.shape_cast %2 : vector<128xf32> to vector<1x128xf32>
    %17 = vector.broadcast %16 : vector<1x128xf32> to vector<128x128xf32>
    %18 = arith.addf %15, %17 : vector<128x128xf32>
    %cst_7 = arith.constant 0.000000e+00 : f32
    %19 = vector.broadcast %cst_7 : f32 to vector<128x128xf32>
    %20 = arith.cmpf oge, %18, %19 : vector<128x128xf32>
    %21 = vector.shape_cast %4 : vector<128xf32> to vector<1x128xf32>
    %22 = vector.broadcast %21 : vector<1x128xf32> to vector<128x128xf32>
    %23 = arith.mulf %22, %18 : vector<128x128xf32>
    %24 = arith.select %20, %18, %23 : vector<128x128xi1>, vector<128x128xf32>
    %25 = arith.truncf %24 : vector<128x128xf32> to vector<128x128xbf16>
    %26 = vector.shape_cast %25 : vector<128x128xbf16> to vector<2x8x8x128xbf16>
    %c0_i32 = arith.constant 0 : i32
    %27 = arith.sitofp %c0_i32 : i32 to bf16
    %28 = vector.broadcast %27 : bf16 to vector<2x1x8x128xbf16>
    %29 = tpu.concatenate %28, %26 in 1 : vector<2x1x8x128xbf16>, vector<2x8x8x128xbf16> -> vector<2x9x8x128xbf16>
    %30 = vector.broadcast %27 : bf16 to vector<2x1x8x128xbf16>
    %31 = tpu.concatenate %29, %30 in 1 : vector<2x9x8x128xbf16>, vector<2x1x8x128xbf16> -> vector<2x10x8x128xbf16>
    %32 = vector.broadcast %27 : bf16 to vector<2x10x1x128xbf16>
    %33 = tpu.concatenate %32, %31 in 2 : vector<2x10x1x128xbf16>, vector<2x10x8x128xbf16> -> vector<2x10x9x128xbf16>
    %34 = vector.broadcast %27 : bf16 to vector<2x10x1x128xbf16>
    %35 = tpu.concatenate %33, %34 in 2 : vector<2x10x9x128xbf16>, vector<2x10x1x128xbf16> -> vector<2x10x10x128xbf16>
    %36 = vector.shape_cast %35 : vector<2x10x10x128xbf16> to vector<2x5x2x5x2x128xbf16>
    %37 = vector.extract_strided_slice %36 {offsets = [0, 0, 0, 0, 0, 0], sizes = [2, 5, 1, 5, 1, 128], strides = [1, 1, 1, 1, 1, 1]} : vector<2x5x2x5x2x128xbf16> to vector<2x5x1x5x1x128xbf16>
    %38 = vector.shape_cast %37 : vector<2x5x1x5x1x128xbf16> to vector<2x5x5x128xbf16>
    %39 = vector.extract_strided_slice %36 {offsets = [0, 0, 0, 0, 1, 0], sizes = [2, 5, 1, 5, 1, 128], strides = [1, 1, 1, 1, 1, 1]} : vector<2x5x2x5x2x128xbf16> to vector<2x5x1x5x1x128xbf16>
    %40 = vector.shape_cast %39 : vector<2x5x1x5x1x128xbf16> to vector<2x5x5x128xbf16>
    %41 = vector.extract_strided_slice %36 {offsets = [0, 0, 1, 0, 0, 0], sizes = [2, 5, 1, 5, 1, 128], strides = [1, 1, 1, 1, 1, 1]} : vector<2x5x2x5x2x128xbf16> to vector<2x5x1x5x1x128xbf16>
    %42 = vector.shape_cast %41 : vector<2x5x1x5x1x128xbf16> to vector<2x5x5x128xbf16>
    %43 = vector.extract_strided_slice %36 {offsets = [0, 0, 1, 0, 1, 0], sizes = [2, 5, 1, 5, 1, 128], strides = [1, 1, 1, 1, 1, 1]} : vector<2x5x2x5x2x128xbf16> to vector<2x5x1x5x1x128xbf16>
    %44 = vector.shape_cast %43 : vector<2x5x1x5x1x128xbf16> to vector<2x5x5x128xbf16>
    %45 = vector.extract_strided_slice %38 {offsets = [0, 0, 0, 0], sizes = [2, 4, 4, 128], strides = [1, 1, 1, 1]} : vector<2x5x5x128xbf16> to vector<2x4x4x128xbf16>
    %46 = vector.shape_cast %45 : vector<2x4x4x128xbf16> to vector<32x128xbf16>
    %47 = vector.extract_strided_slice %40 {offsets = [0, 0, 0, 0], sizes = [2, 4, 4, 128], strides = [1, 1, 1, 1]} : vector<2x5x5x128xbf16> to vector<2x4x4x128xbf16>
    %48 = vector.shape_cast %47 : vector<2x4x4x128xbf16> to vector<32x128xbf16>
    %49 = vector.extract_strided_slice %38 {offsets = [0, 0, 1, 0], sizes = [2, 4, 4, 128], strides = [1, 1, 1, 1]} : vector<2x5x5x128xbf16> to vector<2x4x4x128xbf16>
    %50 = vector.shape_cast %49 : vector<2x4x4x128xbf16> to vector<32x128xbf16>
    %51 = vector.extract_strided_slice %42 {offsets = [0, 0, 0, 0], sizes = [2, 4, 4, 128], strides = [1, 1, 1, 1]} : vector<2x5x5x128xbf16> to vector<2x4x4x128xbf16>
    %52 = vector.shape_cast %51 : vector<2x4x4x128xbf16> to vector<32x128xbf16>
    %53 = vector.extract_strided_slice %44 {offsets = [0, 0, 0, 0], sizes = [2, 4, 4, 128], strides = [1, 1, 1, 1]} : vector<2x5x5x128xbf16> to vector<2x4x4x128xbf16>
    %54 = vector.shape_cast %53 : vector<2x4x4x128xbf16> to vector<32x128xbf16>
    %55 = vector.extract_strided_slice %42 {offsets = [0, 0, 1, 0], sizes = [2, 4, 4, 128], strides = [1, 1, 1, 1]} : vector<2x5x5x128xbf16> to vector<2x4x4x128xbf16>
    %56 = vector.shape_cast %55 : vector<2x4x4x128xbf16> to vector<32x128xbf16>
    %57 = vector.extract_strided_slice %38 {offsets = [0, 1, 0, 0], sizes = [2, 4, 4, 128], strides = [1, 1, 1, 1]} : vector<2x5x5x128xbf16> to vector<2x4x4x128xbf16>
    %58 = vector.shape_cast %57 : vector<2x4x4x128xbf16> to vector<32x128xbf16>
    %59 = vector.extract_strided_slice %40 {offsets = [0, 1, 0, 0], sizes = [2, 4, 4, 128], strides = [1, 1, 1, 1]} : vector<2x5x5x128xbf16> to vector<2x4x4x128xbf16>
    %60 = vector.shape_cast %59 : vector<2x4x4x128xbf16> to vector<32x128xbf16>
    %61 = vector.extract_strided_slice %38 {offsets = [0, 1, 1, 0], sizes = [2, 4, 4, 128], strides = [1, 1, 1, 1]} : vector<2x5x5x128xbf16> to vector<2x4x4x128xbf16>
    %62 = vector.shape_cast %61 : vector<2x4x4x128xbf16> to vector<32x128xbf16>
    %63 = tpu.concatenate %46, %48, %50, %52, %54, %56, %58, %60, %62 in 1 : vector<32x128xbf16>, vector<32x128xbf16>, vector<32x128xbf16>, vector<32x128xbf16>, vector<32x128xbf16>, vector<32x128xbf16>, vector<32x128xbf16>, vector<32x128xbf16>, vector<32x128xbf16> -> vector<32x1152xbf16>
    %c0_8 = arith.constant 0 : index
    %c0_9 = arith.constant 0 : index
    %64 = vector.load %arg3[%c0_8, %c0_9] : memref<1152x128xbf16, #tpu.memory_space<vmem>>, vector<1152x128xbf16>
    %cst_10 = arith.constant dense<0.000000e+00> : vector<32x128xf32>
    %65 = tpu.matmul %63, %64, %cst_10 {dimension_numbers = #tpu.dot_dimension_numbers<[1], [0], [0], [1], [0, 0, 1, 1], [], []>} : vector<32x1152xbf16>, vector<1152x128xbf16>, vector<32x128xf32> -> vector<32x128xf32>
    %66 = vector.shape_cast %6 : vector<128xf32> to vector<1x128xf32>
    %67 = vector.broadcast %66 : vector<1x128xf32> to vector<32x128xf32>
    %68 = arith.addf %65, %67 : vector<32x128xf32>
    %cst_11 = arith.constant 0.000000e+00 : f32
    %69 = vector.broadcast %cst_11 : f32 to vector<32x128xf32>
    %70 = arith.cmpf oge, %68, %69 : vector<32x128xf32>
    %71 = vector.shape_cast %8 : vector<128xf32> to vector<1x128xf32>
    %72 = vector.broadcast %71 : vector<1x128xf32> to vector<32x128xf32>
    %73 = arith.mulf %72, %68 : vector<32x128xf32>
    %74 = arith.select %70, %68, %73 : vector<32x128xi1>, vector<32x128xf32>
    %75 = vector.shape_cast %11 : vector<2x8x8x256xf32> to vector<2x4x2x4x2x256xf32>
    %76 = vector.extract_strided_slice %75 {offsets = [0, 0, 0, 0, 0, 0], sizes = [2, 4, 1, 4, 1, 256], strides = [1, 1, 1, 1, 1, 1]} : vector<2x4x2x4x2x256xf32> to vector<2x4x1x4x1x256xf32>
    %77 = vector.shape_cast %76 : vector<2x4x1x4x1x256xf32> to vector<2x4x4x256xf32>
    %78 = vector.shape_cast %77 : vector<2x4x4x256xf32> to vector<32x256xf32>
    %79 = arith.truncf %74 : vector<32x128xf32> to vector<32x128xbf16>
    %80 = arith.truncf %78 : vector<32x256xf32> to vector<32x256xbf16>
    %81 = tpu.concatenate %79, %80 in 1 : vector<32x128xbf16>, vector<32x256xbf16> -> vector<32x384xbf16>
    %c0_12 = arith.constant 0 : index
    %c0_13 = arith.constant 0 : index
    %82 = vector.load %arg4[%c0_12, %c0_13] : memref<384x512xbf16, #tpu.memory_space<vmem>>, vector<384x512xbf16>
    %cst_14 = arith.constant dense<0.000000e+00> : vector<32x512xf32>
    %83 = tpu.matmul %81, %82, %cst_14 {dimension_numbers = #tpu.dot_dimension_numbers<[1], [0], [0], [1], [0, 0, 1, 1], [], []>} : vector<32x384xbf16>, vector<384x512xbf16>, vector<32x512xf32> -> vector<32x512xf32>
    %84 = vector.shape_cast %10 : vector<512xf32> to vector<1x512xf32>
    %85 = vector.broadcast %84 : vector<1x512xf32> to vector<32x512xf32>
    %86 = arith.addf %83, %85 : vector<32x512xf32>
    %87 = vector.shape_cast %86 : vector<32x512xf32> to vector<2x16x512xf32>
    %c0_15 = arith.constant 0 : index
    %c0_16 = arith.constant 0 : index
    %c0_17 = arith.constant 0 : index
    %88 = vector.load %arg6[%c0_15, %c0_16, %c0_17] : memref<2x16x512xf32, #tpu.memory_space<vmem>>, vector<2x16x512xf32>
    tpu.vector_store %arg6[%c0_15, %c0_16, %c0_17], %87 {strides = array<i32>} : memref<2x16x512xf32, #tpu.memory_space<vmem>>, vector<2x16x512xf32>,
    return
  }
  func.func @transform_0(%arg0: i32) -> (i32, i32, i32, i32) {
    %c0_i32 = arith.constant 0 : i32
    %c0_i32_0 = arith.constant 0 : i32
    %c0_i32_1 = arith.constant 0 : i32
    %c0_i32_2 = arith.constant 0 : i32
    return %arg0, %c0_i32, %c0_i32_0, %c0_i32_1 : i32, i32, i32, i32
  }
  func.func @transform_1(%arg0: i32) -> (i32, i32) {
    %c0_i32 = arith.constant 0 : i32
    %c0_i32_0 = arith.constant 0 : i32
    %c0_i32_1 = arith.constant 0 : i32
    return %c0_i32, %c0_i32_0 : i32, i32
  }
  func.func @transform_2(%arg0: i32) -> (i32, i32) {
    %c0_i32 = arith.constant 0 : i32
    %c0_i32_0 = arith.constant 0 : i32
    %c0_i32_1 = arith.constant 0 : i32
    return %c0_i32, %c0_i32_0 : i32, i32
  }
  func.func @transform_3(%arg0: i32) -> (i32, i32) {
    %c0_i32 = arith.constant 0 : i32
    %c0_i32_0 = arith.constant 0 : i32
    %c0_i32_1 = arith.constant 0 : i32
    return %c0_i32, %c0_i32_0 : i32, i32
  }
  func.func @transform_4(%arg0: i32) -> (i32, i32) {
    %c0_i32 = arith.constant 0 : i32
    %c0_i32_0 = arith.constant 0 : i32
    %c0_i32_1 = arith.constant 0 : i32
    return %c0_i32, %c0_i32_0 : i32, i32
  }
  func.func @transform_5(%arg0: i32) -> (i32, i32, i32) {
    %c0_i32 = arith.constant 0 : i32
    %c0_i32_0 = arith.constant 0 : i32
    %c0_i32_1 = arith.constant 0 : i32
    return %arg0, %c0_i32, %c0_i32_0 : i32, i32, i32
  }
}

</mosaic_0001>

<llo_original>
// kernel: tpu_custom_call.1
$region0: #{tpu_custom_call.1}
  #allocation0 [shape = 'u32[]', space=smem, size = 0x4, offset = 0x4, fixed_abs, tag = 'smem constant byte address 0x4 - core index']
  #allocation1 [shape = 'u32[72,128]{1,0:T(1,128)}', space=vmem, size = 0x9000, scoped, tag = 'internal scratch']
  %s0 = inlined_call_operand.hbm [shape: f32[4,8,8,256], index: 0, kind: input, shape index: {}]
  %s1 = inlined_call_operand.hbm [shape: bf16[256,128], index: 1, kind: input, shape index: {}]
  %s2 = inlined_call_operand.hbm [shape: bf16[1152,128], index: 2, kind: input, shape index: {}]
  %s3 = inlined_call_operand.hbm [shape: bf16[384,512], index: 3, kind: input, shape index: {}]
  %s4 = inlined_call_operand.hbm [shape: f32[8,512], index: 4, kind: input, shape index: {}]
  %s5 = inlined_call_operand.hbm [shape: f32[4,16,512], index: 5, kind: output, shape index: {}]
  %s6 = sld [smem:[#allocation0]]
  $region73: #{tpu_custom_call.1} parent=0
    _
  %s8 = ssub.s32 1, %s6
  %s9 = scalar_select 0, %s8, %s6
  $region1: #{tpu_custom_call.1} parent=0
    #allocation2 [shape = 'u8[262144]{0}', space=vmem, size = 0x40000, scoped, tag = 'input window, operand 0']
    #allocation3 [shape = 's32[2]{0}', space=sflag, size = 0x8, scoped, tag = 'scoped memory for tpu_custom_call.1']
    #allocation4 [shape = 's32[2]{0}', space=sflag, size = 0x8, scoped, tag = 'scoped memory for tpu_custom_call.1']
    #allocation5 [shape = 'u8[65536]{0}', space=vmem, size = 0x10000, scoped, tag = 'input window, operand 1, single buffered']
    #allocation6 [shape = 's32[1]{0}', space=sflag, size = 0x4, scoped, tag = 'scoped memory for tpu_custom_call.1']
    #allocation7 [shape = 'u8[294912]{0}', space=vmem, size = 0x48000, scoped, tag = 'input window, operand 2, single buffered']
    #allocation8 [shape = 'u8[393216]{0}', space=vmem, size = 0x60000, scoped, tag = 'input window, operand 3, single buffered']
    #allocation9 [shape = 's32[1]{0}', space=sflag, size = 0x4, scoped, tag = 'scoped memory for tpu_custom_call.1']
    #allocation10 [shape = 'u8[16384]{0}', space=vmem, size = 0x4000, scoped, tag = 'input window, operand 4, single buffered']
    #allocation11 [shape = 'u8[131072]{0}', space=vmem, size = 0x20000, scoped, tag = 'output window, operand 0']
    %10 = vsyncpa [#allocation3], 0
    %s11 = scalar_lea.sflag [#allocation3], 1
    %12 = vsyncpa %s11, 0
    %13 = vsyncpa [#allocation6], 0
    %14 = vsyncpa [#allocation9], 0
    %15 = vsyncpa [#allocation4], 0
    %s16 = scalar_lea.sflag [#allocation4], 1
    %17 = vsyncpa %s16, 0
    loop: start=0, step=1, limit=4
    $region2: #{tpu_custom_call.1} parent=1 // loop_pre_header
      _
    $region3: #{tpu_custom_call.1} parent=1 // loop_header
      %s19 = sphi 0, %s23
      %p20 = scmp.ge.s32.totalorder %s19, 4
      %s29 = sphi 0, %s31
      %s32 = sphi 0, %s29
      %s33 = sphi 0, %s32
      %s49 = sphi 0, %s33
      %s53 = sphi 0, %s53
      %s55 = sphi 0, %s53
      %s56 = sphi 0, %s55
      %s70 = sphi 0, %s56
      %s74 = sphi 0, %s74
      %s76 = sphi 0, %s74
      %s77 = sphi 0, %s76
      %s91 = sphi 0, %s77
      %s95 = sphi 0, %s95
      %s97 = sphi 0, %s95
      %s98 = sphi 0, %s97
      %s112 = sphi 0, %s98
      %s116 = sphi 0, %s116
      %s118 = sphi 0, %s116
      %s119 = sphi 0, %s118
      %s133 = sphi 0, %s119
      %s139 = sphi 0, %s141
      %s142 = sphi 0, %s139
      %s143 = sphi 0, %s142
      %s159 = sphi 0, %s143
    $region4: #{tpu_custom_call.1} parent=1 // loop_header_branch
      %22 = sbr.rel (%p20) target = $region8
    $region5: #{tpu_custom_call.1} parent=1 // loop_body
      %s24 = ssub.s32 %s19, 1
      %s25 = ssub.s32 %s19, 2
      %s26 = sadd.s32 %s19, 1
      %s27 = ssub.s32 %s19, %s26
      %p28 = scmp.eq.s32.totalorder %s27, 0
      %s30 = sadd.s32 %s29, 1
      %s31 = scalar_select %p28, %s29, %s30
      %p34 = pneg %p28
      %p35 = scmp.eq.s32.totalorder %s19, 1
      %p36 = por %p34, %p35
      %p37 = scmp.ne.s32.totalorder %s29, %s32
      %p38 = scmp.eq.s32.totalorder %s19, 0
      %p39 = por %p37, %p38
      %p40 = scmp.ne.s32.totalorder %s29, %s32
      %p41 = scmp.eq.s32.totalorder %s24, 1
      %p42 = por %p40, %p41
      %p43 = scmp.ne.s32.totalorder %s32, %s33
      %p44 = scmp.eq.s32.totalorder %s24, 0
      %p45 = por %p43, %p44
      %p46 = scmp.ne.s32.totalorder %s32, %s33
      %p47 = scmp.eq.s32.totalorder %s25, 1
      %p48 = por %p46, %p47
      %p50 = scmp.ne.s32.totalorder %s33, %s49
      %p51 = scmp.eq.s32.totalorder %s25, 0
      %p52 = por %p50, %p51
      %s54 = sadd.s32 %s53, 1
      %p57 = scmp.eq.s32.totalorder %s19, 1
      %p58 = scmp.ne.s32.totalorder %s53, %s55
      %p59 = scmp.eq.s32.totalorder %s19, 0
      %p60 = por %p58, %p59
      %p61 = scmp.ne.s32.totalorder %s53, %s55
      %p62 = scmp.eq.s32.totalorder %s24, 1
      %p63 = por %p61, %p62
      %p64 = scmp.ne.s32.totalorder %s55, %s56
      %p65 = scmp.eq.s32.totalorder %s24, 0
      %p66 = por %p64, %p65
      %p67 = scmp.ne.s32.totalorder %s55, %s56
      %p68 = scmp.eq.s32.totalorder %s25, 1
      %p69 = por %p67, %p68
      %p71 = scmp.ne.s32.totalorder %s56, %s70
      %p72 = scmp.eq.s32.totalorder %s25, 0
      %p73 = por %p71, %p72
      %s75 = sadd.s32 %s74, 1
      %p78 = scmp.eq.s32.totalorder %s19, 1
      %p79 = scmp.ne.s32.totalorder %s74, %s76
      %p80 = scmp.eq.s32.totalorder %s19, 0
      %p81 = por %p79, %p80
      %p82 = scmp.ne.s32.totalorder %s74, %s76
      %p83 = scmp.eq.s32.totalorder %s24, 1
      %p84 = por %p82, %p83
      %p85 = scmp.ne.s32.totalorder %s76, %s77
      %p86 = scmp.eq.s32.totalorder %s24, 0
      %p87 = por %p85, %p86
      %p88 = scmp.ne.s32.totalorder %s76, %s77
      %p89 = scmp.eq.s32.totalorder %s25, 1
      %p90 = por %p88, %p89
      %p92 = scmp.ne.s32.totalorder %s77, %s91
      %p93 = scmp.eq.s32.totalorder %s25, 0
      %p94 = por %p92, %p93
      %s96 = sadd.s32 %s95, 1
      %p99 = scmp.eq.s32.totalorder %s19, 1
      %p100 = scmp.ne.s32.totalorder %s95, %s97
      %p101 = scmp.eq.s32.totalorder %s19, 0
      %p102 = por %p100, %p101
      %p103 = scmp.ne.s32.totalorder %s95, %s97
      %p104 = scmp.eq.s32.totalorder %s24, 1
      %p105 = por %p103, %p104
      %p106 = scmp.ne.s32.totalorder %s97, %s98
      %p107 = scmp.eq.s32.totalorder %s24, 0
      %p108 = por %p106, %p107
      %p109 = scmp.ne.s32.totalorder %s97, %s98
      %p110 = scmp.eq.s32.totalorder %s25, 1
      %p111 = por %p109, %p110
      %p113 = scmp.ne.s32.totalorder %s98, %s112
      %p114 = scmp.eq.s32.totalorder %s25, 0
      %p115 = por %p113, %p114
      %s117 = sadd.s32 %s116, 1
      %p120 = scmp.eq.s32.totalorder %s19, 1
      %p121 = scmp.ne.s32.totalorder %s116, %s118
      %p122 = scmp.eq.s32.totalorder %s19, 0
      %p123 = por %p121, %p122
      %p124 = scmp.ne.s32.totalorder %s116, %s118
      %p125 = scmp.eq.s32.totalorder %s24, 1
      %p126 = por %p124, %p125
      %p127 = scmp.ne.s32.totalorder %s118, %s119
      %p128 = scmp.eq.s32.totalorder %s24, 0
      %p129 = por %p127, %p128
      %p130 = scmp.ne.s32.totalorder %s118, %s119
      %p131 = scmp.eq.s32.totalorder %s25, 1
      %p132 = por %p130, %p131
      %p134 = scmp.ne.s32.totalorder %s119, %s133
      %p135 = scmp.eq.s32.totalorder %s25, 0
      %p136 = por %p134, %p135
      %s137 = ssub.s32 %s19, %s26
      %p138 = scmp.eq.s32.totalorder %s137, 0
      %s140 = sadd.s32 %s139, 1
      %s141 = scalar_select %p138, %s139, %s140
      %p144 = pneg %p138
      %p145 = scmp.eq.s32.totalorder %s19, 1
      %p146 = por %p144, %p145
      %p147 = scmp.ne.s32.totalorder %s139, %s142
      %p148 = scmp.eq.s32.totalorder %s19, 0
      %p149 = por %p147, %p148
      %p150 = scmp.ne.s32.totalorder %s139, %s142
      %p151 = scmp.eq.s32.totalorder %s24, 1
      %p152 = por %p150, %p151
      %p153 = scmp.ne.s32.totalorder %s142, %s143
      %p154 = scmp.eq.s32.totalorder %s24, 0
      %p155 = por %p153, %p154
      %p156 = scmp.ne.s32.totalorder %s142, %s143
      %p157 = scmp.eq.s32.totalorder %s25, 1
      %p158 = por %p156, %p157
      %p160 = scmp.ne.s32.totalorder %s143, %s159
      %p161 = scmp.eq.s32.totalorder %s25, 0
      %p162 = por %p160, %p161
      %p163 = scmp.le.s32.totalorder 1, %s19
      %p164 = scmp.lt.s32.totalorder %s19, 3
      %p165 = pnand %p163, %p164
      %p166 = pneg %p165
      // Predicated region
      $region9: #{tpu_custom_call.1} parent=5 // pred_check
        _
      $region10: #{tpu_custom_call.1} parent=5 // pred_check_branch
        %168 = sbr.rel (%p165) target = $region12
      $region11: #{tpu_custom_call.1} parent=5 // pred_region
        %s169 = ssub.s32 %s19, 1
        // Predicated region
        $region13: #{tpu_custom_call.1} parent=11 // pred_check
          %p170 = pneg %p66
        $region14: #{tpu_custom_call.1} parent=11 // pred_check_branch
          %172 = sbr.rel (%p170) target = $region16
        $region15: #{tpu_custom_call.1} parent=11 // pred_region
          %174 = vsyncadd [#allocation6], 0
          %s175 = sshll.u32 %s1, 4
          %s176 = int_to_ptr.hbm [resolvable:$true] %s175
          %s177 = sshll.u32 [#allocation5], 4
          %s178 = int_to_ptr.vmem [resolvable:$true] %s177
          %183 = dma.hbm_to_vmem [thread:$0]  %s176, 2048, %s178, [#allocation6], 64, 64, 4
        $region16: #{tpu_custom_call.1} parent=11 // pred_fallthru
          _
        // Predicated region
        $region17: #{tpu_custom_call.1} parent=11 // pred_check
          %p184 = pneg %p87
        $region18: #{tpu_custom_call.1} parent=11 // pred_check_branch
          %186 = sbr.rel (%p184) target = $region20
        $region19: #{tpu_custom_call.1} parent=11 // pred_region
          %188 = vsyncadd [#allocation6], 0
          %s189 = sshll.u32 %s2, 4
          %s190 = int_to_ptr.hbm [resolvable:$true] %s189
          %s191 = sshll.u32 [#allocation7], 4
          %s192 = int_to_ptr.vmem [resolvable:$true] %s191
          %197 = dma.hbm_to_vmem [thread:$0]  %s190, 9216, %s192, [#allocation6], 64, 64, 4
        $region20: #{tpu_custom_call.1} parent=11 // pred_fallthru
          _
        // Predicated region
        $region21: #{tpu_custom_call.1} parent=11 // pred_check
          %p198 = pneg %p108
        $region22: #{tpu_custom_call.1} parent=11 // pred_check_branch
          %200 = sbr.rel (%p198) target = $region24
        $region23: #{tpu_custom_call.1} parent=11 // pred_region
          %202 = vsyncadd [#allocation9], 0
          %s203 = sshll.u32 %s3, 4
          %s204 = int_to_ptr.hbm [resolvable:$true] %s203
          %s205 = sshll.u32 [#allocation8], 4
          %s206 = int_to_ptr.vmem [resolvable:$true] %s205
          %211 = dma.hbm_to_vmem [thread:$0]  %s204, 12288, %s206, [#allocation9], 256, 256, 16
        $region24: #{tpu_custom_call.1} parent=11 // pred_fallthru
          _
        // Predicated region
        $region25: #{tpu_custom_call.1} parent=11 // pred_check
          %p212 = pneg %p129
        $region26: #{tpu_custom_call.1} parent=11 // pred_check_branch
          %214 = sbr.rel (%p212) target = $region28
        $region27: #{tpu_custom_call.1} parent=11 // pred_region
          %216 = vsyncadd [#allocation9], 0
          %s218 = sshll.u32 %s4, 4
          %s219 = int_to_ptr.hbm [resolvable:$true] %s218
          %s220 = sshll.u32 [#allocation10], 4
          %s221 = int_to_ptr.vmem [resolvable:$true] %s220
          %223 = dma.hbm_to_vmem [thread:$0]  %s219, 512, %s221, [#allocation9]
        $region28: #{tpu_custom_call.1} parent=11 // pred_fallthru
          _
      $region12: #{tpu_custom_call.1} parent=5 // pred_fallthru
        _
      %p224 = scmp.lt.s32.totalorder %s19, 2
      // Predicated region
      $region29: #{tpu_custom_call.1} parent=5 // pred_check
        %p225 = pneg %p224
      $region30: #{tpu_custom_call.1} parent=5 // pred_check_branch
        %227 = sbr.rel (%p225) target = $region32
      $region31: #{tpu_custom_call.1} parent=5 // pred_region
        // Predicated region
        $region33: #{tpu_custom_call.1} parent=31 // pred_check
          %p228 = pneg %p39
        $region34: #{tpu_custom_call.1} parent=31 // pred_check_branch
          %230 = sbr.rel (%p228) target = $region36
        $region35: #{tpu_custom_call.1} parent=31 // pred_region
          %s231 = sand.u32 %s29, 1
          %s232 = scalar_lea.sflag [#allocation3], %s231
          %s233 = sand.u32 %s29, 1
          %s234 = smul.addr %s233, 256
          %s235 = scalar_lea.vmem [#allocation2], %s234
          %s236 = smul.u32 2, %s19
          %238 = vsyncadd %s232, 0
          %s239 = smul.addr %s236, 16
          %s240 = smul.addr %s239, 8
          %s241 = scalar_lea.hbm %s0, %s240
          %s242 = sshll.u32 %s241, 4
          %s243 = int_to_ptr.hbm [resolvable:$true] %s242
          %s244 = sshll.u32 %s235, 4
          %s245 = int_to_ptr.vmem [resolvable:$true] %s244
          %250 = dma.hbm_to_vmem [thread:$0]  %s243, 4096, %s245, %s232, 256, 256, 16
        $region36: #{tpu_custom_call.1} parent=31 // pred_fallthru
          _
      $region32: #{tpu_custom_call.1} parent=5 // pred_fallthru
        _
      %p251 = scmp.le.s32.totalorder 1, %s19
      %p252 = scmp.lt.s32.totalorder %s19, 3
      %p253 = pnand %p251, %p252
      %p254 = pneg %p253
      // Predicated region
      $region37: #{tpu_custom_call.1} parent=5 // pred_check
        _
      $region38: #{tpu_custom_call.1} parent=5 // pred_check_branch
        %256 = sbr.rel (%p253) target = $region40
      $region39: #{tpu_custom_call.1} parent=5 // pred_region
        %s257 = ssub.s32 %s19, 1
        %s258 = sand.u32 %s32, 1
        %s259 = scalar_lea.sflag [#allocation3], %s258
        %s260 = sand.u32 %s32, 1
        %s261 = smul.addr %s260, 256
        %s262 = scalar_lea.vmem [#allocation2], %s261
        // Predicated region
        $region41: #{tpu_custom_call.1} parent=39 // pred_check
          %p263 = pneg %p45
        $region42: #{tpu_custom_call.1} parent=39 // pred_check_branch
          %265 = sbr.rel (%p263) target = $region44
        $region43: #{tpu_custom_call.1} parent=39 // pred_region
          %267 = dma.done %s259, 4096
        $region44: #{tpu_custom_call.1} parent=39 // pred_fallthru
          _
        // Predicated region
        $region45: #{tpu_custom_call.1} parent=39 // pred_check
          %p268 = pneg %p66
        $region46: #{tpu_custom_call.1} parent=39 // pred_check_branch
          %270 = sbr.rel (%p268) target = $region48
        $region47: #{tpu_custom_call.1} parent=39 // pred_region
          %272 = dma.done [#allocation6], 2048
        $region48: #{tpu_custom_call.1} parent=39 // pred_fallthru
          _
        // Predicated region
        $region49: #{tpu_custom_call.1} parent=39 // pred_check
          %p273 = pneg %p87
        $region50: #{tpu_custom_call.1} parent=39 // pred_check_branch
          %275 = sbr.rel (%p273) target = $region52
        $region51: #{tpu_custom_call.1} parent=39 // pred_region
          %277 = dma.done [#allocation6], 9216
        $region52: #{tpu_custom_call.1} parent=39 // pred_fallthru
          _
        // Predicated region
        $region53: #{tpu_custom_call.1} parent=39 // pred_check
          %p278 = pneg %p108
        $region54: #{tpu_custom_call.1} parent=39 // pred_check_branch
          %280 = sbr.rel (%p278) target = $region56
        $region55: #{tpu_custom_call.1} parent=39 // pred_region
          %282 = dma.done [#allocation9], 12288
        $region56: #{tpu_custom_call.1} parent=39 // pred_fallthru
          _
        // Predicated region
        $region57: #{tpu_custom_call.1} parent=39 // pred_check
          %p283 = pneg %p129
        $region58: #{tpu_custom_call.1} parent=39 // pred_check_branch
          %285 = sbr.rel (%p283) target = $region60
        $region59: #{tpu_custom_call.1} parent=39 // pred_region
          %287 = dma.done [#allocation9], 512
        $region60: #{tpu_custom_call.1} parent=39 // pred_fallthru
          _
        %s288 = sand.u32 %s32, 1
        %s289 = scalar_lea.sflag [#allocation3], %s288
        %s290 = sand.u32 %s32, 1
        %s291 = smul.addr %s290, 256
        %s292 = scalar_lea.vmem [#allocation2], %s291
        %p293 = pneg %p45
        %p294 = pneg %p42
        %p295 = pneg %p66
        %p296 = pneg %p63
        %p297 = pneg %p87
        %p298 = pneg %p84
        %p299 = pneg %p108
        %p300 = pneg %p105
        %p301 = pneg %p129
        %p302 = pneg %p126
        %p303 = pneg %p155
        %p304 = pneg %p152
        %s305 = sand.u32 %s142, 1
        %s306 = scalar_lea.sflag [#allocation4], %s305
        %s307 = sand.u32 %s142, 1
        %s308 = smul.addr %s307, 128
        %s309 = scalar_lea.vmem [#allocation11], %s308
        %s310 = smul.u32 2, %s24
        %s311 = smul.u32 2, %s24
        %v313 = vld [vmem:[#allocation10] sm:$0xff]
        %v314 = vld [vmem:[#allocation10 + $0x8] sm:$0xff]
        %v315 = vld [vmem:[#allocation10 + $0x10] sm:$0xff]
        %v316 = vld [vmem:[#allocation10 + $0x18] sm:$0xff]
        %v317 = vld [vmem:[%s262] sm:$0xff]
        %v318 = vld [vmem:[%s262 + $0x8] sm:$0xff]
        %v319 = vld [vmem:[%s262 + $0x10] sm:$0xff]
        %v320 = vld [vmem:[%s262 + $0x18] sm:$0xff]
        %v321 = vld [vmem:[%s262 + $0x20] sm:$0xff]
        %v322 = vld [vmem:[%s262 + $0x28] sm:$0xff]
        %v323 = vld [vmem:[%s262 + $0x30] sm:$0xff]
        %v324 = vld [vmem:[%s262 + $0x38] sm:$0xff]
        %v325 = vld [vmem:[%s262 + $0x40] sm:$0xff]
        %v326 = vld [vmem:[%s262 + $0x48] sm:$0xff]
        %v327 = vld [vmem:[%s262 + $0x50] sm:$0xff]
        %v328 = vld [vmem:[%s262 + $0x58] sm:$0xff]
        %v329 = vld [vmem:[%s262 + $0x60] sm:$0xff]
        %v330 = vld [vmem:[%s262 + $0x68] sm:$0xff]
        %v331 = vld [vmem:[%s262 + $0x70] sm:$0xff]
        %v332 = vld [vmem:[%s262 + $0x78] sm:$0xff]
        %v333 = vld [vmem:[%s262 + $0x80] sm:$0xff]
        %v334 = vld [vmem:[%s262 + $0x88] sm:$0xff]
        %v335 = vld [vmem:[%s262 + $0x90] sm:$0xff]
        %v336 = vld [vmem:[%s262 + $0x98] sm:$0xff]
        %v337 = vld [vmem:[%s262 + $0xa0] sm:$0xff]
        %v338 = vld [vmem:[%s262 + $0xa8] sm:$0xff]
        %v339 = vld [vmem:[%s262 + $0xb0] sm:$0xff]
        %v340 = vld [vmem:[%s262 + $0xb8] sm:$0xff]
        %v341 = vld [vmem:[%s262 + $0xc0] sm:$0xff]
        %v342 = vld [vmem:[%s262 + $0xc8] sm:$0xff]
        %v343 = vld [vmem:[%s262 + $0xd0] sm:$0xff]
        %v344 = vld [vmem:[%s262 + $0xd8] sm:$0xff]
        %v345 = vld [vmem:[%s262 + $0xe0] sm:$0xff]
        %v346 = vld [vmem:[%s262 + $0xe8] sm:$0xff]
        %v347 = vld [vmem:[%s262 + $0xf0] sm:$0xff]
        %v348 = vld [vmem:[%s262 + $0xf8] sm:$0xff]
        %v349 = vpack.c.bf16 %v319, %v317
        %v350 = vpack.c.bf16 %v320, %v318
        %v351 = vpack.c.bf16 %v323, %v321
        %v352 = vpack.c.bf16 %v324, %v322
        %v353 = vpack.c.bf16 %v327, %v325
        %v354 = vpack.c.bf16 %v328, %v326
        %v355 = vpack.c.bf16 %v331, %v329
        %v356 = vpack.c.bf16 %v332, %v330
        %v357 = vpack.c.bf16 %v335, %v333
        %v358 = vpack.c.bf16 %v336, %v334
        %v359 = vpack.c.bf16 %v339, %v337
        %v360 = vpack.c.bf16 %v340, %v338
        %v361 = vpack.c.bf16 %v343, %v341
        %v362 = vpack.c.bf16 %v344, %v342
        %v363 = vpack.c.bf16 %v347, %v345
        %v364 = vpack.c.bf16 %v348, %v346
        %v365 = vld [vmem:[#allocation5] sm:$0xf]
        %v366 = vld [vmem:[#allocation5 + $0x4] sm:$0xf]
        %v367 = vld [vmem:[#allocation5 + $0x8] sm:$0xf]
        %v368 = vld [vmem:[#allocation5 + $0xc] sm:$0xf]
        %v369 = vld [vmem:[#allocation5 + $0x10] sm:$0xf]
        %v370 = vld [vmem:[#allocation5 + $0x14] sm:$0xf]
        %v371 = vld [vmem:[#allocation5 + $0x18] sm:$0xf]
        %v372 = vld [vmem:[#allocation5 + $0x1c] sm:$0xf]
        %v373 = vld [vmem:[#allocation5 + $0x20] sm:$0xf]
        %v374 = vld [vmem:[#allocation5 + $0x24] sm:$0xf]
        %v375 = vld [vmem:[#allocation5 + $0x28] sm:$0xf]
        %v376 = vld [vmem:[#allocation5 + $0x2c] sm:$0xf]
        %v377 = vld [vmem:[#allocation5 + $0x30] sm:$0xf]
        %v378 = vld [vmem:[#allocation5 + $0x34] sm:$0xf]
        %v379 = vld [vmem:[#allocation5 + $0x38] sm:$0xf]
        %v380 = vld [vmem:[#allocation5 + $0x3c] sm:$0xf]
        %v381 = vld [vmem:[#allocation5 + $0x40] sm:$0xf]
        %v382 = vld [vmem:[#allocation5 + $0x44] sm:$0xf]
        %v383 = vld [vmem:[#allocation5 + $0x48] sm:$0xf]
        %v384 = vld [vmem:[#allocation5 + $0x4c] sm:$0xf]
        %v385 = vld [vmem:[#allocation5 + $0x50] sm:$0xf]
        %v386 = vld [vmem:[#allocation5 + $0x54] sm:$0xf]
        %v387 = vld [vmem:[#allocation5 + $0x58] sm:$0xf]
        %v388 = vld [vmem:[#allocation5 + $0x5c] sm:$0xf]
        %v389 = vld [vmem:[#allocation5 + $0x60] sm:$0xf]
        %v390 = vld [vmem:[#allocation5 + $0x64] sm:$0xf]
        %v391 = vld [vmem:[#allocation5 + $0x68] sm:$0xf]
        %v392 = vld [vmem:[#allocation5 + $0x6c] sm:$0xf]
        %v393 = vld [vmem:[#allocation5 + $0x70] sm:$0xf]
        %v394 = vld [vmem:[#allocation5 + $0x74] sm:$0xf]
        %v395 = vld [vmem:[#allocation5 + $0x78] sm:$0xf]
        %v396 = vld [vmem:[#allocation5 + $0x7c] sm:$0xf]
        %v397 = vperm.slane %v313, 0
        %v430 = vunpack.c.l.b16 %v365
        %v431 = vunpack.c.l.b16 %v366
        %v432 = vunpack.c.l.b16 %v367
        %v433 = vunpack.c.l.b16 %v368
        %v434 = vunpack.c.l.b16 %v369
        %v435 = vunpack.c.l.b16 %v370
        %v436 = vunpack.c.l.b16 %v371
        %v437 = vunpack.c.l.b16 %v372
        %v438 = vunpack.c.l.b16 %v373
        %v439 = vunpack.c.l.b16 %v374
        %v440 = vunpack.c.l.b16 %v375
        %v441 = vunpack.c.l.b16 %v376
        %v442 = vunpack.c.l.b16 %v377
        %v443 = vunpack.c.l.b16 %v378
        %v444 = vunpack.c.l.b16 %v379
        %v445 = vunpack.c.l.b16 %v380
        %v446 = vunpack.c.l.b16 %v381
        %v447 = vunpack.c.l.b16 %v382
        %v448 = vunpack.c.l.b16 %v383
        %v449 = vunpack.c.l.b16 %v384
        %v450 = vunpack.c.l.b16 %v385
        %v451 = vunpack.c.l.b16 %v386
        %v452 = vunpack.c.l.b16 %v387
        %v453 = vunpack.c.l.b16 %v388
        %v454 = vunpack.c.l.b16 %v389
        %v455 = vunpack.c.l.b16 %v390
        %v456 = vunpack.c.l.b16 %v391
        %v457 = vunpack.c.l.b16 %v392
        %v458 = vunpack.c.l.b16 %v393
        %v459 = vunpack.c.l.b16 %v394
        %v460 = vunpack.c.l.b16 %v395
        %v461 = vunpack.c.l.b16 %v396
        %v462 = vpack.c.b16 %v431, %v430
        %v463 = vpack.c.b16 %v433, %v432
        %v464 = vpack.c.b16 %v435, %v434
        %v465 = vpack.c.b16 %v437, %v436
        %v466 = vpack.c.b16 %v439, %v438
        %v467 = vpack.c.b16 %v441, %v440
        %v468 = vpack.c.b16 %v443, %v442
        %v469 = vpack.c.b16 %v445, %v444
        %v470 = vpack.c.b16 %v447, %v446
        %v471 = vpack.c.b16 %v449, %v448
        %v472 = vpack.c.b16 %v451, %v450
        %v473 = vpack.c.b16 %v453, %v452
        %v474 = vpack.c.b16 %v455, %v454
        %v475 = vpack.c.b16 %v457, %v456
        %v476 = vpack.c.b16 %v459, %v458
        %v477 = vpack.c.b16 %v461, %v460
        %494 = vmatpush.bf16.msra.mxu0 %v469
        %495 = vmatpush.bf16.msra.mxu0 %v468
        %496 = vmatpush.bf16.msra.mxu0 %v467
        %497 = vmatpush.bf16.msra.mxu0 %v466
        %498 = vmatpush.bf16.msra.mxu0 %v465
        %499 = vmatpush.bf16.msra.mxu0 %v464
        %500 = vmatpush.bf16.msra.mxu0 %v463
        %501 = vmatpush.bf16.msra.mxu0 %v462
        %502 = vmatmul.bf16.gmra.mxu0 %v349
        %v503 = vpop.f32.mrf.mxu0
        %v504 = vadd.f32 %v397, %v503
        %v505 = vpop.f32.mrf.mxu0
        %v506 = vadd.f32 %v397, %v505
        %507 = vmatmul.bf16.gmra.mxu0 %v351
        %v508 = vpop.f32.mrf.mxu0
        %v509 = vadd.f32 %v397, %v508
        %v510 = vpop.f32.mrf.mxu0
        %v511 = vadd.f32 %v397, %v510
        %512 = vmatmul.bf16.gmra.mxu0 %v353
        %v513 = vpop.f32.mrf.mxu0
        %v514 = vadd.f32 %v397, %v513
        %v515 = vpop.f32.mrf.mxu0
        %v516 = vadd.f32 %v397, %v515
        %517 = vmatmul.bf16.gmra.mxu0 %v355
        %v518 = vpop.f32.mrf.mxu0
        %v519 = vadd.f32 %v397, %v518
        %v520 = vpop.f32.mrf.mxu0
        %v521 = vadd.f32 %v397, %v520
        %522 = vmatmul.bf16.gmra.mxu0 %v357
        %v523 = vpop.f32.mrf.mxu0
        %v524 = vadd.f32 %v397, %v523
        %v525 = vpop.f32.mrf.mxu0
        %v526 = vadd.f32 %v397, %v525
        %527 = vmatmul.bf16.gmra.mxu0 %v359
        %v528 = vpop.f32.mrf.mxu0
        %v529 = vadd.f32 %v397, %v528
        %v530 = vpop.f32.mrf.mxu0
        %v531 = vadd.f32 %v397, %v530
        %532 = vmatmul.bf16.gmra.mxu0 %v361
        %v533 = vpop.f32.mrf.mxu0
        %v534 = vadd.f32 %v397, %v533
        %v535 = vpop.f32.mrf.mxu0
        %v536 = vadd.f32 %v397, %v535
        %537 = vmatmul.bf16.gmra.mxu0 %v363
        %v538 = vpop.f32.mrf.mxu0
        %v539 = vadd.f32 %v397, %v538
        %v540 = vpop.f32.mrf.mxu0
        %v541 = vadd.f32 %v397, %v540
        %542 = vdwg.mxu0
        %543 = vmatpush.bf16.msra.mxu0 %v477
        %544 = vmatpush.bf16.msra.mxu0 %v476
        %545 = vmatpush.bf16.msra.mxu0 %v475
        %546 = vmatpush.bf16.msra.mxu0 %v474
        %547 = vmatpush.bf16.msra.mxu0 %v473
        %548 = vmatpush.bf16.msra.mxu0 %v472
        %549 = vmatpush.bf16.msra.mxu0 %v471
        %550 = vmatpush.bf16.msra.mxu0 %v470
        %551 = vmatmul.bf16.gmra.mxu0 %v350
        %v552 = vpop.f32.mrf.mxu0
        %v553 = vadd.f32 %v504, %v552
        %v554 = vpop.f32.mrf.mxu0
        %v555 = vadd.f32 %v506, %v554
        %556 = vmatmul.bf16.gmra.mxu0 %v352
        %v557 = vpop.f32.mrf.mxu0
        %v558 = vadd.f32 %v509, %v557
        %v559 = vpop.f32.mrf.mxu0
        %v560 = vadd.f32 %v511, %v559
        %561 = vmatmul.bf16.gmra.mxu0 %v354
        %v562 = vpop.f32.mrf.mxu0
        %v563 = vadd.f32 %v514, %v562
        %v564 = vpop.f32.mrf.mxu0
        %v565 = vadd.f32 %v516, %v564
        %566 = vmatmul.bf16.gmra.mxu0 %v356
        %v567 = vpop.f32.mrf.mxu0
        %v568 = vadd.f32 %v519, %v567
        %v569 = vpop.f32.mrf.mxu0
        %v570 = vadd.f32 %v521, %v569
        %571 = vmatmul.bf16.gmra.mxu0 %v358
        %v572 = vpop.f32.mrf.mxu0
        %v573 = vadd.f32 %v524, %v572
        %v574 = vpop.f32.mrf.mxu0
        %v575 = vadd.f32 %v526, %v574
        %576 = vmatmul.bf16.gmra.mxu0 %v360
        %v577 = vpop.f32.mrf.mxu0
        %v578 = vadd.f32 %v529, %v577
        %v579 = vpop.f32.mrf.mxu0
        %v580 = vadd.f32 %v531, %v579
        %581 = vmatmul.bf16.gmra.mxu0 %v362
        %v582 = vpop.f32.mrf.mxu0
        %v583 = vadd.f32 %v534, %v582
        %v584 = vpop.f32.mrf.mxu0
        %v585 = vadd.f32 %v536, %v584
        %586 = vmatmul.bf16.gmra.mxu0 %v364
        %v587 = vpop.f32.mrf.mxu0
        %v588 = vadd.f32 %v539, %v587
        %v589 = vpop.f32.mrf.mxu0
        %v590 = vadd.f32 %v541, %v589
        %591 = vdwg.mxu0
        %vm592 = vcmp.ge.f32.partialorder %v553, 0.0
        %vm593 = vcmp.ge.f32.partialorder %v555, 0.0
        %vm594 = vcmp.ge.f32.partialorder %v558, 0.0
        %vm595 = vcmp.ge.f32.partialorder %v560, 0.0
        %vm596 = vcmp.ge.f32.partialorder %v563, 0.0
        %vm597 = vcmp.ge.f32.partialorder %v565, 0.0
        %vm598 = vcmp.ge.f32.partialorder %v568, 0.0
        %vm599 = vcmp.ge.f32.partialorder %v570, 0.0
        %vm600 = vcmp.ge.f32.partialorder %v573, 0.0
        %vm601 = vcmp.ge.f32.partialorder %v575, 0.0
        %vm602 = vcmp.ge.f32.partialorder %v578, 0.0
        %vm603 = vcmp.ge.f32.partialorder %v580, 0.0
        %vm604 = vcmp.ge.f32.partialorder %v583, 0.0
        %vm605 = vcmp.ge.f32.partialorder %v585, 0.0
        %vm606 = vcmp.ge.f32.partialorder %v588, 0.0
        %vm607 = vcmp.ge.f32.partialorder %v590, 0.0
        %v608 = vperm.slane %v313, 1
        %v609 = vmul.f32 %v608, %v553
        %v610 = vmul.f32 %v608, %v555
        %v611 = vmul.f32 %v608, %v558
        %v612 = vmul.f32 %v608, %v560
        %v613 = vmul.f32 %v608, %v563
        %v614 = vmul.f32 %v608, %v565
        %v615 = vmul.f32 %v608, %v568
        %v616 = vmul.f32 %v608, %v570
        %v617 = vmul.f32 %v608, %v573
        %v618 = vmul.f32 %v608, %v575
        %v619 = vmul.f32 %v608, %v578
        %v620 = vmul.f32 %v608, %v580
        %v621 = vmul.f32 %v608, %v583
        %v622 = vmul.f32 %v608, %v585
        %v623 = vmul.f32 %v608, %v588
        %v624 = vmul.f32 %v608, %v590
        %v625 = vsel %vm592, %v553, %v609
        %v626 = vsel %vm593, %v555, %v610
        %v627 = vsel %vm594, %v558, %v611
        %v628 = vsel %vm595, %v560, %v612
        %v629 = vsel %vm596, %v563, %v613
        %v630 = vsel %vm597, %v565, %v614
        %v631 = vsel %vm598, %v568, %v615
        %v632 = vsel %vm599, %v570, %v616
        %v633 = vsel %vm600, %v573, %v617
        %v634 = vsel %vm601, %v575, %v618
        %v635 = vsel %vm602, %v578, %v619
        %v636 = vsel %vm603, %v580, %v620
        %v637 = vsel %vm604, %v583, %v621
        %v638 = vsel %vm605, %v585, %v622
        %v639 = vsel %vm606, %v588, %v623
        %v640 = vsel %vm607, %v590, %v624
        %v641 = vpack.c.bf16 %v625, %v625
        %v642 = vpack.c.bf16 %v626, %v626
        %v643 = vpack.c.bf16 %v627, %v627
        %v644 = vpack.c.bf16 %v628, %v628
        %v645 = vpack.c.bf16 %v629, %v629
        %v646 = vpack.c.bf16 %v630, %v630
        %v647 = vpack.c.bf16 %v631, %v631
        %v648 = vpack.c.bf16 %v632, %v632
        %v649 = vpack.c.bf16 %v633, %v633
        %v650 = vpack.c.bf16 %v634, %v634
        %v651 = vpack.c.bf16 %v635, %v635
        %v652 = vpack.c.bf16 %v636, %v636
        %v653 = vpack.c.bf16 %v637, %v637
        %v654 = vpack.c.bf16 %v638, %v638
        %v655 = vpack.c.bf16 %v639, %v639
        %v656 = vpack.c.bf16 %v640, %v640
        %v658 = vshrl.u32 0, 16
        %v660 = vrot.slane %v658, 7
        %v661 = vshll.u32 0, 16
        %v663 = vor.u32 %v660, %v661
        %v665 = vshrl.u32 %v641, 16
        %v667 = vrot.slane %v665, 7
        %v668 = vshll.u32 %v641, 16
        %v670 = vor.u32 %v667, %v668
        %v672 = vshrl.u32 %v642, 16
        %v674 = vrot.slane %v672, 7
        %v675 = vshll.u32 %v642, 16
        %v677 = vor.u32 %v674, %v675
        %v679 = vshrl.u32 %v643, 16
        %v681 = vrot.slane %v679, 7
        %v682 = vshll.u32 %v643, 16
        %v684 = vor.u32 %v681, %v682
        %v686 = vshrl.u32 %v644, 16
        %v688 = vrot.slane %v686, 7
        %v689 = vshll.u32 %v644, 16
        %v691 = vor.u32 %v688, %v689
        %v693 = vshrl.u32 %v645, 16
        %v695 = vrot.slane %v693, 7
        %v696 = vshll.u32 %v645, 16
        %v698 = vor.u32 %v695, %v696
        %v700 = vshrl.u32 %v646, 16
        %v702 = vrot.slane %v700, 7
        %v703 = vshll.u32 %v646, 16
        %v705 = vor.u32 %v702, %v703
        %v707 = vshrl.u32 %v647, 16
        %v709 = vrot.slane %v707, 7
        %v710 = vshll.u32 %v647, 16
        %v712 = vor.u32 %v709, %v710
        %v714 = vshrl.u32 %v648, 16
        %v716 = vrot.slane %v714, 7
        %v717 = vshll.u32 %v648, 16
        %v719 = vor.u32 %v716, %v717
        %v721 = vshrl.u32 %v649, 16
        %v723 = vrot.slane %v721, 7
        %v724 = vshll.u32 %v649, 16
        %v726 = vor.u32 %v723, %v724
        %v728 = vshrl.u32 %v650, 16
        %v730 = vrot.slane %v728, 7
        %v731 = vshll.u32 %v650, 16
        %v733 = vor.u32 %v730, %v731
        %v735 = vshrl.u32 %v651, 16
        %v737 = vrot.slane %v735, 7
        %v738 = vshll.u32 %v651, 16
        %v740 = vor.u32 %v737, %v738
        %v742 = vshrl.u32 %v652, 16
        %v744 = vrot.slane %v742, 7
        %v745 = vshll.u32 %v652, 16
        %v747 = vor.u32 %v744, %v745
        %v749 = vshrl.u32 %v653, 16
        %v751 = vrot.slane %v749, 7
        %v752 = vshll.u32 %v653, 16
        %v754 = vor.u32 %v751, %v752
        %v756 = vshrl.u32 %v654, 16
        %v758 = vrot.slane %v756, 7
        %v759 = vshll.u32 %v654, 16
        %v761 = vor.u32 %v758, %v759
        %v763 = vshrl.u32 %v655, 16
        %v765 = vrot.slane %v763, 7
        %v766 = vshll.u32 %v655, 16
        %v768 = vor.u32 %v765, %v766
        %v770 = vshrl.u32 %v656, 16
        %v772 = vrot.slane %v770, 7
        %v773 = vshll.u32 %v656, 16
        %v775 = vor.u32 %v772, %v773
        %vm793 = vcmask 1040384
        %vm794 = vsmask.f32 256
        %vm795 = vmand %vm793, %vm794
        %v796 = vsel %vm795, 0, %v663
        %v797 = vsel %vm795, 0, %v670
        %v798 = vsel %vm795, 0, %v677
        %v799 = vsel %vm795, 0, %v684
        %v800 = vsel %vm795, 0, %v691
        %v801 = vsel %vm795, 0, %v698
        %v802 = vsel %vm795, 0, %v705
        %v803 = vsel %vm795, 0, %v712
        %v804 = vsel %vm795, 0, %v719
        %v805 = vsel %vm795, 0, %v726
        %v806 = vsel %vm795, 0, %v733
        %v807 = vsel %vm795, 0, %v740
        %v808 = vsel %vm795, 0, %v747
        %v809 = vsel %vm795, 0, %v754
        %v810 = vsel %vm795, 0, %v761
        %v811 = vsel %vm795, 0, %v768
        %v812 = vsel %vm795, 0, %v775
        %vm813 = vcmask 1044480
        %vm814 = vsmask.f32 4352
        %vm815 = vmand %vm813, %vm814
        %v816 = vsel %vm815, %v796, 0
        %v817 = vsel %vm815, %v797, 0
        %v818 = vsel %vm815, %v798, 0
        %v819 = vsel %vm815, %v799, 0
        %v820 = vsel %vm815, %v800, 0
        %v821 = vsel %vm815, %v801, 0
        %v822 = vsel %vm815, %v802, 0
        %v823 = vsel %vm815, %v803, 0
        %v824 = vsel %vm815, %v804, 0
        %v825 = vsel %vm815, %v805, 0
        %v826 = vsel %vm815, %v806, 0
        %v827 = vsel %vm815, %v807, 0
        %v828 = vsel %vm815, %v808, 0
        %v829 = vsel %vm815, %v809, 0
        %v830 = vsel %vm815, %v810, 0
        %v831 = vsel %vm815, %v811, 0
        %v832 = vsel %vm815, %v812, 0
        %v850 = vrot.slane %v816, 1
        %v851 = vrot.slane %v816, 2
        %v852 = vrot.slane %v816, 3
        %v853 = vrot.slane %v816, 4
        %v854 = vrot.slane %v817, 1
        %v855 = vrot.slane %v817, 2
        %v856 = vrot.slane %v817, 3
        %v857 = vrot.slane %v817, 4
        %v858 = vrot.slane %v818, 1
        %v859 = vrot.slane %v818, 2
        %v860 = vrot.slane %v818, 3
        %v861 = vrot.slane %v818, 4
        %v862 = vrot.slane %v819, 1
        %v863 = vrot.slane %v819, 2
        %v864 = vrot.slane %v819, 3
        %v865 = vrot.slane %v819, 4
        %v866 = vrot.slane %v820, 1
        %v867 = vrot.slane %v820, 2
        %v868 = vrot.slane %v820, 3
        %v869 = vrot.slane %v820, 4
        %v870 = vrot.slane %v821, 1
        %v871 = vrot.slane %v821, 2
        %v872 = vrot.slane %v821, 3
        %v873 = vrot.slane %v821, 4
        %v874 = vrot.slane %v822, 1
        %v875 = vrot.slane %v822, 2
        %v876 = vrot.slane %v822, 3
        %v877 = vrot.slane %v822, 4
        %v878 = vrot.slane %v823, 1
        %v879 = vrot.slane %v823, 2
        %v880 = vrot.slane %v823, 3
        %v881 = vrot.slane %v823, 4
        %v882 = vrot.slane %v824, 1
        %v883 = vrot.slane %v824, 2
        %v884 = vrot.slane %v824, 3
        %v885 = vrot.slane %v824, 4
        %v886 = vrot.slane %v825, 1
        %v887 = vrot.slane %v825, 2
        %v888 = vrot.slane %v825, 3
        %v889 = vrot.slane %v825, 4
        %v890 = vrot.slane %v826, 1
        %v891 = vrot.slane %v826, 2
        %v892 = vrot.slane %v826, 3
        %v893 = vrot.slane %v826, 4
        %v894 = vrot.slane %v827, 1
        %v895 = vrot.slane %v827, 2
        %v896 = vrot.slane %v827, 3
        %v897 = vrot.slane %v827, 4
        %v898 = vrot.slane %v828, 1
        %v899 = vrot.slane %v828, 2
        %v900 = vrot.slane %v828, 3
        %v901 = vrot.slane %v828, 4
        %v902 = vrot.slane %v829, 1
        %v903 = vrot.slane %v829, 2
        %v904 = vrot.slane %v829, 3
        %v905 = vrot.slane %v829, 4
        %v906 = vrot.slane %v830, 1
        %v907 = vrot.slane %v830, 2
        %v908 = vrot.slane %v830, 3
        %v909 = vrot.slane %v830, 4
        %v910 = vrot.slane %v831, 1
        %v911 = vrot.slane %v831, 2
        %v912 = vrot.slane %v831, 3
        %v913 = vrot.slane %v831, 4
        %v914 = vrot.slane %v832, 1
        %v915 = vrot.slane %v832, 2
        %v916 = vrot.slane %v832, 3
        %v917 = vrot.slane %v832, 4
        %919 = vst [vmem:[#allocation1] ss:$9 sm:$0xff] %v816
        %v920 = vld [vmem:[#allocation1] sm:$0xff]
        %923 = vst [vmem:[#allocation1] ss:$9 sm:$0xff] %v850
        %v924 = vld [vmem:[#allocation1] sm:$0xff]
        %927 = vst [vmem:[#allocation1] ss:$9 sm:$0xff] %v851
        %v928 = vld [vmem:[#allocation1] sm:$0xff]
        %931 = vst [vmem:[#allocation1] ss:$9 sm:$0xff] %v852
        %v932 = vld [vmem:[#allocation1] sm:$0xff]
        %935 = vst [vmem:[#allocation1] ss:$9 sm:$0xff] %v818
        %v936 = vld [vmem:[#allocation1] sm:$0xff]
        %939 = vst [vmem:[#allocation1] ss:$9 sm:$0xff] %v858
        %v940 = vld [vmem:[#allocation1] sm:$0xff]
        %943 = vst [vmem:[#allocation1] ss:$9 sm:$0xff] %v859
        %v944 = vld [vmem:[#allocation1] sm:$0xff]
        %947 = vst [vmem:[#allocation1] ss:$9 sm:$0xff] %v860
        %v948 = vld [vmem:[#allocation1] sm:$0xff]
        %951 = vst [vmem:[#allocation1] ss:$9 sm:$0xff] %v820
        %v952 = vld [vmem:[#allocation1] sm:$0xff]
        %955 = vst [vmem:[#allocation1] ss:$9 sm:$0xff] %v866
        %v956 = vld [vmem:[#allocation1] sm:$0xff]
        %959 = vst [vmem:[#allocation1] ss:$9 sm:$0xff] %v867
        %v960 = vld [vmem:[#allocation1] sm:$0xff]
        %963 = vst [vmem:[#allocation1] ss:$9 sm:$0xff] %v868
        %v964 = vld [vmem:[#allocation1] sm:$0xff]
        %967 = vst [vmem:[#allocation1] ss:$9 sm:$0xff] %v822
        %v968 = vld [vmem:[#allocation1] sm:$0xff]
        %971 = vst [vmem:[#allocation1] ss:$9 sm:$0xff] %v874
        %v972 = vld [vmem:[#allocation1] sm:$0xff]
        %975 = vst [vmem:[#allocation1] ss:$9 sm:$0xff] %v875
        %v976 = vld [vmem:[#allocation1] sm:$0xff]
        %979 = vst [vmem:[#allocation1] ss:$9 sm:$0xff] %v876
        %v980 = vld [vmem:[#allocation1] sm:$0xff]
        %982 = vst [vmem:[#allocation1] ss:$9 sm:$0xff] %v816
        %v983 = vld [vmem:[#allocation1] sm:$0xff]
        %985 = vst [vmem:[#allocation1] ss:$9 sm:$0xff] %v850
        %v986 = vld [vmem:[#allocation1] sm:$0xff]
        %988 = vst [vmem:[#allocation1] ss:$9 sm:$0xff] %v851
        %v989 = vld [vmem:[#allocation1] sm:$0xff]
        %991 = vst [vmem:[#allocation1] ss:$9 sm:$0xff] %v852
        %v992 = vld [vmem:[#allocation1] sm:$0xff]
        %995 = vst [vmem:[#allocation1] ss:$9 sm:$0xff] %v826
        %v996 = vld [vmem:[#allocation1] sm:$0xff]
        %999 = vst [vmem:[#allocation1] ss:$9 sm:$0xff] %v890
        %v1000 = vld [vmem:[#allocation1] sm:$0xff]
        %1003 = vst [vmem:[#allocation1] ss:$9 sm:$0xff] %v891
        %v1004 = vld [vmem:[#allocation1] sm:$0xff]
        %1007 = vst [vmem:[#allocation1] ss:$9 sm:$0xff] %v892
        %v1008 = vld [vmem:[#allocation1] sm:$0xff]
        %1011 = vst [vmem:[#allocation1] ss:$9 sm:$0xff] %v828
        %v1012 = vld [vmem:[#allocation1] sm:$0xff]
        %1015 = vst [vmem:[#allocation1] ss:$9 sm:$0xff] %v898
        %v1016 = vld [vmem:[#allocation1] sm:$0xff]
        %1019 = vst [vmem:[#allocation1] ss:$9 sm:$0xff] %v899
        %v1020 = vld [vmem:[#allocation1] sm:$0xff]
        %1023 = vst [vmem:[#allocation1] ss:$9 sm:$0xff] %v900
        %v1024 = vld [vmem:[#allocation1] sm:$0xff]
        %1027 = vst [vmem:[#allocation1] ss:$9 sm:$0xff] %v830
        %v1028 = vld [vmem:[#allocation1] sm:$0xff]
        %1031 = vst [vmem:[#allocation1] ss:$9 sm:$0xff] %v906
        %v1032 = vld [vmem:[#allocation1] sm:$0xff]
        %1035 = vst [vmem:[#allocation1] ss:$9 sm:$0xff] %v907
        %v1036 = vld [vmem:[#allocation1] sm:$0xff]
        %1039 = vst [vmem:[#allocation1] ss:$9 sm:$0xff] %v908
        %v1040 = vld [vmem:[#allocation1] sm:$0xff]
        %v1042 = vunpack.c.l.b16 %v920
        %v1043 = vunpack.c.l.b16 %v924
        %v1044 = vunpack.c.l.b16 %v928
        %v1045 = vunpack.c.l.b16 %v932
        %v1046 = vunpack.c.l.b16 %v936
        %v1047 = vunpack.c.l.b16 %v940
        %v1048 = vunpack.c.l.b16 %v944
        %v1049 = vunpack.c.l.b16 %v948
        %v1050 = vunpack.c.l.b16 %v952
        %v1051 = vunpack.c.l.b16 %v956
        %v1052 = vunpack.c.l.b16 %v960
        %v1053 = vunpack.c.l.b16 %v964
        %v1054 = vunpack.c.l.b16 %v968
        %v1055 = vunpack.c.l.b16 %v972
        %v1056 = vunpack.c.l.b16 %v976
        %v1057 = vunpack.c.l.b16 %v980
        %v1058 = vunpack.c.l.b16 %v983
        %v1059 = vunpack.c.l.b16 %v986
        %v1060 = vunpack.c.l.b16 %v989
        %v1061 = vunpack.c.l.b16 %v992
        %v1062 = vunpack.c.l.b16 %v996
        %v1063 = vunpack.c.l.b16 %v1000
        %v1064 = vunpack.c.l.b16 %v1004
        %v1065 = vunpack.c.l.b16 %v1008
        %v1066 = vunpack.c.l.b16 %v1012
        %v1067 = vunpack.c.l.b16 %v1016
        %v1068 = vunpack.c.l.b16 %v1020
        %v1069 = vunpack.c.l.b16 %v1024
        %v1070 = vunpack.c.l.b16 %v1028
        %v1071 = vunpack.c.l.b16 %v1032
        %v1072 = vunpack.c.l.b16 %v1036
        %v1073 = vunpack.c.l.b16 %v1040
        %v1074 = vrot.slane %v1043, 7
        %vm1075 = vcmask 1041409
        %v1076 = vsel %vm1075, %v1074, %v1042
        %v1077 = vrot.slane %v1044, 6
        %vm1078 = vcmask 1042434
        %v1079 = vsel %vm1078, %v1077, %v1076
        %v1080 = vrot.slane %v1045, 5
        %vm1081 = vcmask 1043459
        %v1082 = vsel %vm1081, %v1080, %v1079
        %v1083 = vrot.slane %v1046, 4
        %vm1084 = vcmask 1044484
        %v1085 = vsel %vm1084, %v1083, %v1082
        %v1086 = vrot.slane %v1047, 3
        %vm1087 = vcmask 1045509
        %v1088 = vsel %vm1087, %v1086, %v1085
        %v1089 = vrot.slane %v1048, 2
        %vm1090 = vcmask 1046534
        %v1091 = vsel %vm1090, %v1089, %v1088
        %v1092 = vrot.slane %v1049, 1
        %vm1093 = vcmask 1047559
        %v1094 = vsel %vm1093, %v1092, %v1091
        %v1095 = vrot.slane %v1051, 7
        %v1096 = vsel %vm1075, %v1095, %v1050
        %v1097 = vrot.slane %v1052, 6
        %v1098 = vsel %vm1078, %v1097, %v1096
        %v1099 = vrot.slane %v1053, 5
        %v1100 = vsel %vm1081, %v1099, %v1098
        %v1101 = vrot.slane %v1054, 4
        %v1102 = vsel %vm1084, %v1101, %v1100
        %v1103 = vrot.slane %v1055, 3
        %v1104 = vsel %vm1087, %v1103, %v1102
        %v1105 = vrot.slane %v1056, 2
        %v1106 = vsel %vm1090, %v1105, %v1104
        %v1107 = vrot.slane %v1057, 1
        %v1108 = vsel %vm1093, %v1107, %v1106
        %v1109 = vrot.slane %v1059, 7
        %v1110 = vsel %vm1075, %v1109, %v1058
        %v1111 = vrot.slane %v1060, 6
        %v1112 = vsel %vm1078, %v1111, %v1110
        %v1113 = vrot.slane %v1061, 5
        %v1114 = vsel %vm1081, %v1113, %v1112
        %v1115 = vrot.slane %v1062, 4
        %v1116 = vsel %vm1084, %v1115, %v1114
        %v1117 = vrot.slane %v1063, 3
        %v1118 = vsel %vm1087, %v1117, %v1116
        %v1119 = vrot.slane %v1064, 2
        %v1120 = vsel %vm1090, %v1119, %v1118
        %v1121 = vrot.slane %v1065, 1
        %v1122 = vsel %vm1093, %v1121, %v1120
        %v1123 = vrot.slane %v1067, 7
        %v1124 = vsel %vm1075, %v1123, %v1066
        %v1125 = vrot.slane %v1068, 6
        %v1126 = vsel %vm1078, %v1125, %v1124
        %v1127 = vrot.slane %v1069, 5
        %v1128 = vsel %vm1081, %v1127, %v1126
        %v1129 = vrot.slane %v1070, 4
        %v1130 = vsel %vm1084, %v1129, %v1128
        %v1131 = vrot.slane %v1071, 3
        %v1132 = vsel %vm1087, %v1131, %v1130
        %v1133 = vrot.slane %v1072, 2
        %v1134 = vsel %vm1090, %v1133, %v1132
        %v1135 = vrot.slane %v1073, 1
        %v1136 = vsel %vm1093, %v1135, %v1134
        %v1137 = vpack.c.b16 %v1108, %v1094
        %v1138 = vpack.c.b16 %v1136, %v1122
        %1141 = vst [vmem:[#allocation1] ss:$9 sm:$0xff] %v816
        %v1142 = vld [vmem:[#allocation1] sm:$0xff]
        %1144 = vst [vmem:[#allocation1] ss:$9 sm:$0xff] %v850
        %v1145 = vld [vmem:[#allocation1] sm:$0xff]
        %1147 = vst [vmem:[#allocation1] ss:$9 sm:$0xff] %v851
        %v1148 = vld [vmem:[#allocation1] sm:$0xff]
        %1150 = vst [vmem:[#allocation1] ss:$9 sm:$0xff] %v852
        %v1151 = vld [vmem:[#allocation1] sm:$0xff]
        %1153 = vst [vmem:[#allocation1] ss:$9 sm:$0xff] %v818
        %v1154 = vld [vmem:[#allocation1] sm:$0xff]
        %1156 = vst [vmem:[#allocation1] ss:$9 sm:$0xff] %v858
        %v1157 = vld [vmem:[#allocation1] sm:$0xff]
        %1159 = vst [vmem:[#allocation1] ss:$9 sm:$0xff] %v859
        %v1160 = vld [vmem:[#allocation1] sm:$0xff]
        %1162 = vst [vmem:[#allocation1] ss:$9 sm:$0xff] %v860
        %v1163 = vld [vmem:[#allocation1] sm:$0xff]
        %1165 = vst [vmem:[#allocation1] ss:$9 sm:$0xff] %v820
        %v1166 = vld [vmem:[#allocation1] sm:$0xff]
        %1168 = vst [vmem:[#allocation1] ss:$9 sm:$0xff] %v866
        %v1169 = vld [vmem:[#allocation1] sm:$0xff]
        %1171 = vst [vmem:[#allocation1] ss:$9 sm:$0xff] %v867
        %v1172 = vld [vmem:[#allocation1] sm:$0xff]
        %1174 = vst [vmem:[#allocation1] ss:$9 sm:$0xff] %v868
        %v1175 = vld [vmem:[#allocation1] sm:$0xff]
        %1177 = vst [vmem:[#allocation1] ss:$9 sm:$0xff] %v822
        %v1178 = vld [vmem:[#allocation1] sm:$0xff]
        %1180 = vst [vmem:[#allocation1] ss:$9 sm:$0xff] %v874
        %v1181 = vld [vmem:[#allocation1] sm:$0xff]
        %1183 = vst [vmem:[#allocation1] ss:$9 sm:$0xff] %v875
        %v1184 = vld [vmem:[#allocation1] sm:$0xff]
        %1186 = vst [vmem:[#allocation1] ss:$9 sm:$0xff] %v876
        %v1187 = vld [vmem:[#allocation1] sm:$0xff]
        %1189 = vst [vmem:[#allocation1] ss:$9 sm:$0xff] %v816
        %v1190 = vld [vmem:[#allocation1] sm:$0xff]
        %1192 = vst [vmem:[#allocation1] ss:$9 sm:$0xff] %v850
        %v1193 = vld [vmem:[#allocation1] sm:$0xff]
        %1195 = vst [vmem:[#allocation1] ss:$9 sm:$0xff] %v851
        %v1196 = vld [vmem:[#allocation1] sm:$0xff]
        %1198 = vst [vmem:[#allocation1] ss:$9 sm:$0xff] %v852
        %v1199 = vld [vmem:[#allocation1] sm:$0xff]
        %1201 = vst [vmem:[#allocation1] ss:$9 sm:$0xff] %v826
        %v1202 = vld [vmem:[#allocation1] sm:$0xff]
        %1204 = vst [vmem:[#allocation1] ss:$9 sm:$0xff] %v890
        %v1205 = vld [vmem:[#allocation1] sm:$0xff]
        %1207 = vst [vmem:[#allocation1] ss:$9 sm:$0xff] %v891
        %v1208 = vld [vmem:[#allocation1] sm:$0xff]
        %1210 = vst [vmem:[#allocation1] ss:$9 sm:$0xff] %v892
        %v1211 = vld [vmem:[#allocation1] sm:$0xff]
        %1213 = vst [vmem:[#allocation1] ss:$9 sm:$0xff] %v828
        %v1214 = vld [vmem:[#allocation1] sm:$0xff]
        %1216 = vst [vmem:[#allocation1] ss:$9 sm:$0xff] %v898
        %v1217 = vld [vmem:[#allocation1] sm:$0xff]
        %1219 = vst [vmem:[#allocation1] ss:$9 sm:$0xff] %v899
        %v1220 = vld [vmem:[#allocation1] sm:$0xff]
        %1222 = vst [vmem:[#allocation1] ss:$9 sm:$0xff] %v900
        %v1223 = vld [vmem:[#allocation1] sm:$0xff]
        %1225 = vst [vmem:[#allocation1] ss:$9 sm:$0xff] %v830
        %v1226 = vld [vmem:[#allocation1] sm:$0xff]
        %1228 = vst [vmem:[#allocation1] ss:$9 sm:$0xff] %v906
        %v1229 = vld [vmem:[#allocation1] sm:$0xff]
        %1231 = vst [vmem:[#allocation1] ss:$9 sm:$0xff] %v907
        %v1232 = vld [vmem:[#allocation1] sm:$0xff]
        %1234 = vst [vmem:[#allocation1] ss:$9 sm:$0xff] %v908
        %v1235 = vld [vmem:[#allocation1] sm:$0xff]
        %v1237 = vunpack.c.l.b16 %v1142
        %v1238 = vunpack.c.l.b16 %v1145
        %v1239 = vunpack.c.l.b16 %v1148
        %v1240 = vunpack.c.l.b16 %v1151
        %v1241 = vunpack.c.l.b16 %v1154
        %v1242 = vunpack.c.l.b16 %v1157
        %v1243 = vunpack.c.l.b16 %v1160
        %v1244 = vunpack.c.l.b16 %v1163
        %v1245 = vunpack.c.l.b16 %v1166
        %v1246 = vunpack.c.l.b16 %v1169
        %v1247 = vunpack.c.l.b16 %v1172
        %v1248 = vunpack.c.l.b16 %v1175
        %v1249 = vunpack.c.l.b16 %v1178
        %v1250 = vunpack.c.l.b16 %v1181
        %v1251 = vunpack.c.l.b16 %v1184
        %v1252 = vunpack.c.l.b16 %v1187
        %v1253 = vunpack.c.l.b16 %v1190
        %v1254 = vunpack.c.l.b16 %v1193
        %v1255 = vunpack.c.l.b16 %v1196
        %v1256 = vunpack.c.l.b16 %v1199
        %v1257 = vunpack.c.l.b16 %v1202
        %v1258 = vunpack.c.l.b16 %v1205
        %v1259 = vunpack.c.l.b16 %v1208
        %v1260 = vunpack.c.l.b16 %v1211
        %v1261 = vunpack.c.l.b16 %v1214
        %v1262 = vunpack.c.l.b16 %v1217
        %v1263 = vunpack.c.l.b16 %v1220
        %v1264 = vunpack.c.l.b16 %v1223
        %v1265 = vunpack.c.l.b16 %v1226
        %v1266 = vunpack.c.l.b16 %v1229
        %v1267 = vunpack.c.l.b16 %v1232
        %v1268 = vunpack.c.l.b16 %v1235
        %v1269 = vrot.slane %v1237, 1
        %v1270 = vsel %vm1075, %v1238, %v1269
        %v1271 = vrot.slane %v1239, 7
        %v1272 = vsel %vm1078, %v1271, %v1270
        %v1273 = vrot.slane %v1240, 6
        %v1274 = vsel %vm1081, %v1273, %v1272
        %v1275 = vrot.slane %v1241, 5
        %v1276 = vsel %vm1084, %v1275, %v1274
        %v1277 = vrot.slane %v1242, 4
        %v1278 = vsel %vm1087, %v1277, %v1276
        %v1279 = vrot.slane %v1243, 3
        %v1280 = vsel %vm1090, %v1279, %v1278
        %v1281 = vrot.slane %v1244, 2
        %v1282 = vsel %vm1093, %v1281, %v1280
        %v1283 = vrot.slane %v1245, 1
        %v1284 = vsel %vm1075, %v1246, %v1283
        %v1285 = vrot.slane %v1247, 7
        %v1286 = vsel %vm1078, %v1285, %v1284
        %v1287 = vrot.slane %v1248, 6
        %v1288 = vsel %vm1081, %v1287, %v1286
        %v1289 = vrot.slane %v1249, 5
        %v1290 = vsel %vm1084, %v1289, %v1288
        %v1291 = vrot.slane %v1250, 4
        %v1292 = vsel %vm1087, %v1291, %v1290
        %v1293 = vrot.slane %v1251, 3
        %v1294 = vsel %vm1090, %v1293, %v1292
        %v1295 = vrot.slane %v1252, 2
        %v1296 = vsel %vm1093, %v1295, %v1294
        %v1297 = vrot.slane %v1253, 1
        %v1298 = vsel %vm1075, %v1254, %v1297
        %v1299 = vrot.slane %v1255, 7
        %v1300 = vsel %vm1078, %v1299, %v1298
        %v1301 = vrot.slane %v1256, 6
        %v1302 = vsel %vm1081, %v1301, %v1300
        %v1303 = vrot.slane %v1257, 5
        %v1304 = vsel %vm1084, %v1303, %v1302
        %v1305 = vrot.slane %v1258, 4
        %v1306 = vsel %vm1087, %v1305, %v1304
        %v1307 = vrot.slane %v1259, 3
        %v1308 = vsel %vm1090, %v1307, %v1306
        %v1309 = vrot.slane %v1260, 2
        %v1310 = vsel %vm1093, %v1309, %v1308
        %v1311 = vrot.slane %v1261, 1
        %v1312 = vsel %vm1075, %v1262, %v1311
        %v1313 = vrot.slane %v1263, 7
        %v1314 = vsel %vm1078, %v1313, %v1312
        %v1315 = vrot.slane %v1264, 6
        %v1316 = vsel %vm1081, %v1315, %v1314
        %v1317 = vrot.slane %v1265, 5
        %v1318 = vsel %vm1084, %v1317, %v1316
        %v1319 = vrot.slane %v1266, 4
        %v1320 = vsel %vm1087, %v1319, %v1318
        %v1321 = vrot.slane %v1267, 3
        %v1322 = vsel %vm1090, %v1321, %v1320
        %v1323 = vrot.slane %v1268, 2
        %v1324 = vsel %vm1093, %v1323, %v1322
        %v1325 = vpack.c.b16 %v1296, %v1282
        %v1326 = vpack.c.b16 %v1324, %v1310
        %1329 = vst [vmem:[#allocation1] ss:$9 sm:$0xff] %v850
        %v1330 = vld [vmem:[#allocation1] sm:$0xff]
        %1332 = vst [vmem:[#allocation1] ss:$9 sm:$0xff] %v851
        %v1333 = vld [vmem:[#allocation1] sm:$0xff]
        %1335 = vst [vmem:[#allocation1] ss:$9 sm:$0xff] %v852
        %v1336 = vld [vmem:[#allocation1] sm:$0xff]
        %1339 = vst [vmem:[#allocation1] ss:$9 sm:$0xff] %v853
        %v1340 = vld [vmem:[#allocation1] sm:$0xff]
        %1342 = vst [vmem:[#allocation1] ss:$9 sm:$0xff] %v858
        %v1343 = vld [vmem:[#allocation1] sm:$0xff]
        %1345 = vst [vmem:[#allocation1] ss:$9 sm:$0xff] %v859
        %v1346 = vld [vmem:[#allocation1] sm:$0xff]
        %1348 = vst [vmem:[#allocation1] ss:$9 sm:$0xff] %v860
        %v1349 = vld [vmem:[#allocation1] sm:$0xff]
        %1352 = vst [vmem:[#allocation1] ss:$9 sm:$0xff] %v861
        %v1353 = vld [vmem:[#allocation1] sm:$0xff]
        %1355 = vst [vmem:[#allocation1] ss:$9 sm:$0xff] %v866
        %v1356 = vld [vmem:[#allocation1] sm:$0xff]
        %1358 = vst [vmem:[#allocation1] ss:$9 sm:$0xff] %v867
        %v1359 = vld [vmem:[#allocation1] sm:$0xff]
        %1361 = vst [vmem:[#allocation1] ss:$9 sm:$0xff] %v868
        %v1362 = vld [vmem:[#allocation1] sm:$0xff]
        %1365 = vst [vmem:[#allocation1] ss:$9 sm:$0xff] %v869
        %v1366 = vld [vmem:[#allocation1] sm:$0xff]
        %1368 = vst [vmem:[#allocation1] ss:$9 sm:$0xff] %v874
        %v1369 = vld [vmem:[#allocation1] sm:$0xff]
        %1371 = vst [vmem:[#allocation1] ss:$9 sm:$0xff] %v875
        %v1372 = vld [vmem:[#allocation1] sm:$0xff]
        %1374 = vst [vmem:[#allocation1] ss:$9 sm:$0xff] %v876
        %v1375 = vld [vmem:[#allocation1] sm:$0xff]
        %1378 = vst [vmem:[#allocation1] ss:$9 sm:$0xff] %v877
        %v1379 = vld [vmem:[#allocation1] sm:$0xff]
        %1381 = vst [vmem:[#allocation1] ss:$9 sm:$0xff] %v850
        %v1382 = vld [vmem:[#allocation1] sm:$0xff]
        %1384 = vst [vmem:[#allocation1] ss:$9 sm:$0xff] %v851
        %v1385 = vld [vmem:[#allocation1] sm:$0xff]
        %1387 = vst [vmem:[#allocation1] ss:$9 sm:$0xff] %v852
        %v1388 = vld [vmem:[#allocation1] sm:$0xff]
        %1390 = vst [vmem:[#allocation1] ss:$9 sm:$0xff] %v853
        %v1391 = vld [vmem:[#allocation1] sm:$0xff]
        %1393 = vst [vmem:[#allocation1] ss:$9 sm:$0xff] %v890
        %v1394 = vld [vmem:[#allocation1] sm:$0xff]
        %1396 = vst [vmem:[#allocation1] ss:$9 sm:$0xff] %v891
        %v1397 = vld [vmem:[#allocation1] sm:$0xff]
        %1399 = vst [vmem:[#allocation1] ss:$9 sm:$0xff] %v892
        %v1400 = vld [vmem:[#allocation1] sm:$0xff]
        %1403 = vst [vmem:[#allocation1] ss:$9 sm:$0xff] %v893
        %v1404 = vld [vmem:[#allocation1] sm:$0xff]
        %1406 = vst [vmem:[#allocation1] ss:$9 sm:$0xff] %v898
        %v1407 = vld [vmem:[#allocation1] sm:$0xff]
        %1409 = vst [vmem:[#allocation1] ss:$9 sm:$0xff] %v899
        %v1410 = vld [vmem:[#allocation1] sm:$0xff]
        %1412 = vst [vmem:[#allocation1] ss:$9 sm:$0xff] %v900
        %v1413 = vld [vmem:[#allocation1] sm:$0xff]
        %1416 = vst [vmem:[#allocation1] ss:$9 sm:$0xff] %v901
        %v1417 = vld [vmem:[#allocation1] sm:$0xff]
        %1419 = vst [vmem:[#allocation1] ss:$9 sm:$0xff] %v906
        %v1420 = vld [vmem:[#allocation1] sm:$0xff]
        %1422 = vst [vmem:[#allocation1] ss:$9 sm:$0xff] %v907
        %v1423 = vld [vmem:[#allocation1] sm:$0xff]
        %1425 = vst [vmem:[#allocation1] ss:$9 sm:$0xff] %v908
        %v1426 = vld [vmem:[#allocation1] sm:$0xff]
        %1429 = vst [vmem:[#allocation1] ss:$9 sm:$0xff] %v909
        %v1430 = vld [vmem:[#allocation1] sm:$0xff]
        %v1432 = vunpack.c.l.b16 %v1330
        %v1433 = vunpack.c.l.b16 %v1333
        %v1434 = vunpack.c.l.b16 %v1336
        %v1435 = vunpack.c.l.b16 %v1340
        %v1436 = vunpack.c.l.b16 %v1343
        %v1437 = vunpack.c.l.b16 %v1346
        %v1438 = vunpack.c.l.b16 %v1349
        %v1439 = vunpack.c.l.b16 %v1353
        %v1440 = vunpack.c.l.b16 %v1356
        %v1441 = vunpack.c.l.b16 %v1359
        %v1442 = vunpack.c.l.b16 %v1362
        %v1443 = vunpack.c.l.b16 %v1366
        %v1444 = vunpack.c.l.b16 %v1369
        %v1445 = vunpack.c.l.b16 %v1372
        %v1446 = vunpack.c.l.b16 %v1375
        %v1447 = vunpack.c.l.b16 %v1379
        %v1448 = vunpack.c.l.b16 %v1382
        %v1449 = vunpack.c.l.b16 %v1385
        %v1450 = vunpack.c.l.b16 %v1388
        %v1451 = vunpack.c.l.b16 %v1391
        %v1452 = vunpack.c.l.b16 %v1394
        %v1453 = vunpack.c.l.b16 %v1397
        %v1454 = vunpack.c.l.b16 %v1400
        %v1455 = vunpack.c.l.b16 %v1404
        %v1456 = vunpack.c.l.b16 %v1407
        %v1457 = vunpack.c.l.b16 %v1410
        %v1458 = vunpack.c.l.b16 %v1413
        %v1459 = vunpack.c.l.b16 %v1417
        %v1460 = vunpack.c.l.b16 %v1420
        %v1461 = vunpack.c.l.b16 %v1423
        %v1462 = vunpack.c.l.b16 %v1426
        %v1463 = vunpack.c.l.b16 %v1430
        %v1464 = vrot.slane %v1433, 7
        %v1465 = vsel %vm1075, %v1464, %v1432
        %v1466 = vrot.slane %v1434, 6
        %v1467 = vsel %vm1078, %v1466, %v1465
        %v1468 = vrot.slane %v1435, 5
        %v1469 = vsel %vm1081, %v1468, %v1467
        %v1470 = vrot.slane %v1436, 4
        %v1471 = vsel %vm1084, %v1470, %v1469
        %v1472 = vrot.slane %v1437, 3
        %v1473 = vsel %vm1087, %v1472, %v1471
        %v1474 = vrot.slane %v1438, 2
        %v1475 = vsel %vm1090, %v1474, %v1473
        %v1476 = vrot.slane %v1439, 1
        %v1477 = vsel %vm1093, %v1476, %v1475
        %v1478 = vrot.slane %v1441, 7
        %v1479 = vsel %vm1075, %v1478, %v1440
        %v1480 = vrot.slane %v1442, 6
        %v1481 = vsel %vm1078, %v1480, %v1479
        %v1482 = vrot.slane %v1443, 5
        %v1483 = vsel %vm1081, %v1482, %v1481
        %v1484 = vrot.slane %v1444, 4
        %v1485 = vsel %vm1084, %v1484, %v1483
        %v1486 = vrot.slane %v1445, 3
        %v1487 = vsel %vm1087, %v1486, %v1485
        %v1488 = vrot.slane %v1446, 2
        %v1489 = vsel %vm1090, %v1488, %v1487
        %v1490 = vrot.slane %v1447, 1
        %v1491 = vsel %vm1093, %v1490, %v1489
        %v1492 = vrot.slane %v1449, 7
        %v1493 = vsel %vm1075, %v1492, %v1448
        %v1494 = vrot.slane %v1450, 6
        %v1495 = vsel %vm1078, %v1494, %v1493
        %v1496 = vrot.slane %v1451, 5
        %v1497 = vsel %vm1081, %v1496, %v1495
        %v1498 = vrot.slane %v1452, 4
        %v1499 = vsel %vm1084, %v1498, %v1497
        %v1500 = vrot.slane %v1453, 3
        %v1501 = vsel %vm1087, %v1500, %v1499
        %v1502 = vrot.slane %v1454, 2
        %v1503 = vsel %vm1090, %v1502, %v1501
        %v1504 = vrot.slane %v1455, 1
        %v1505 = vsel %vm1093, %v1504, %v1503
        %v1506 = vrot.slane %v1457, 7
        %v1507 = vsel %vm1075, %v1506, %v1456
        %v1508 = vrot.slane %v1458, 6
        %v1509 = vsel %vm1078, %v1508, %v1507
        %v1510 = vrot.slane %v1459, 5
        %v1511 = vsel %vm1081, %v1510, %v1509
        %v1512 = vrot.slane %v1460, 4
        %v1513 = vsel %vm1084, %v1512, %v1511
        %v1514 = vrot.slane %v1461, 3
        %v1515 = vsel %vm1087, %v1514, %v1513
        %v1516 = vrot.slane %v1462, 2
        %v1517 = vsel %vm1090, %v1516, %v1515
        %v1518 = vrot.slane %v1463, 1
        %v1519 = vsel %vm1093, %v1518, %v1517
        %v1520 = vpack.c.b16 %v1491, %v1477
        %v1521 = vpack.c.b16 %v1519, %v1505
        %1525 = vst [vmem:[#allocation1] ss:$9 sm:$0xff] %v817
        %v1526 = vld [vmem:[#allocation1] sm:$0xff]
        %1529 = vst [vmem:[#allocation1] ss:$9 sm:$0xff] %v854
        %v1530 = vld [vmem:[#allocation1] sm:$0xff]
        %1533 = vst [vmem:[#allocation1] ss:$9 sm:$0xff] %v855
        %v1534 = vld [vmem:[#allocation1] sm:$0xff]
        %1537 = vst [vmem:[#allocation1] ss:$9 sm:$0xff] %v856
        %v1538 = vld [vmem:[#allocation1] sm:$0xff]
        %1541 = vst [vmem:[#allocation1] ss:$9 sm:$0xff] %v819
        %v1542 = vld [vmem:[#allocation1] sm:$0xff]
        %1545 = vst [vmem:[#allocation1] ss:$9 sm:$0xff] %v862
        %v1546 = vld [vmem:[#allocation1] sm:$0xff]
        %1549 = vst [vmem:[#allocation1] ss:$9 sm:$0xff] %v863
        %v1550 = vld [vmem:[#allocation1] sm:$0xff]
        %1553 = vst [vmem:[#allocation1] ss:$9 sm:$0xff] %v864
        %v1554 = vld [vmem:[#allocation1] sm:$0xff]
        %1557 = vst [vmem:[#allocation1] ss:$9 sm:$0xff] %v821
        %v1558 = vld [vmem:[#allocation1] sm:$0xff]
        %1561 = vst [vmem:[#allocation1] ss:$9 sm:$0xff] %v870
        %v1562 = vld [vmem:[#allocation1] sm:$0xff]
        %1565 = vst [vmem:[#allocation1] ss:$9 sm:$0xff] %v871
        %v1566 = vld [vmem:[#allocation1] sm:$0xff]
        %1569 = vst [vmem:[#allocation1] ss:$9 sm:$0xff] %v872
        %v1570 = vld [vmem:[#allocation1] sm:$0xff]
        %1573 = vst [vmem:[#allocation1] ss:$9 sm:$0xff] %v823
        %v1574 = vld [vmem:[#allocation1] sm:$0xff]
        %1577 = vst [vmem:[#allocation1] ss:$9 sm:$0xff] %v878
        %v1578 = vld [vmem:[#allocation1] sm:$0xff]
        %1581 = vst [vmem:[#allocation1] ss:$9 sm:$0xff] %v879
        %v1582 = vld [vmem:[#allocation1] sm:$0xff]
        %1585 = vst [vmem:[#allocation1] ss:$9 sm:$0xff] %v880
        %v1586 = vld [vmem:[#allocation1] sm:$0xff]
        %1589 = vst [vmem:[#allocation1] ss:$9 sm:$0xff] %v825
        %v1590 = vld [vmem:[#allocation1] sm:$0xff]
        %1593 = vst [vmem:[#allocation1] ss:$9 sm:$0xff] %v886
        %v1594 = vld [vmem:[#allocation1] sm:$0xff]
        %1597 = vst [vmem:[#allocation1] ss:$9 sm:$0xff] %v887
        %v1598 = vld [vmem:[#allocation1] sm:$0xff]
        %1601 = vst [vmem:[#allocation1] ss:$9 sm:$0xff] %v888
        %v1602 = vld [vmem:[#allocation1] sm:$0xff]
        %1605 = vst [vmem:[#allocation1] ss:$9 sm:$0xff] %v827
        %v1606 = vld [vmem:[#allocation1] sm:$0xff]
        %1609 = vst [vmem:[#allocation1] ss:$9 sm:$0xff] %v894
        %v1610 = vld [vmem:[#allocation1] sm:$0xff]
        %1613 = vst [vmem:[#allocation1] ss:$9 sm:$0xff] %v895
        %v1614 = vld [vmem:[#allocation1] sm:$0xff]
        %1617 = vst [vmem:[#allocation1] ss:$9 sm:$0xff] %v896
        %v1618 = vld [vmem:[#allocation1] sm:$0xff]
        %1621 = vst [vmem:[#allocation1] ss:$9 sm:$0xff] %v829
        %v1622 = vld [vmem:[#allocation1] sm:$0xff]
        %1625 = vst [vmem:[#allocation1] ss:$9 sm:$0xff] %v902
        %v1626 = vld [vmem:[#allocation1] sm:$0xff]
        %1629 = vst [vmem:[#allocation1] ss:$9 sm:$0xff] %v903
        %v1630 = vld [vmem:[#allocation1] sm:$0xff]
        %1633 = vst [vmem:[#allocation1] ss:$9 sm:$0xff] %v904
        %v1634 = vld [vmem:[#allocation1] sm:$0xff]
        %1637 = vst [vmem:[#allocation1] ss:$9 sm:$0xff] %v831
        %v1638 = vld [vmem:[#allocation1] sm:$0xff]
        %1641 = vst [vmem:[#allocation1] ss:$9 sm:$0xff] %v910
        %v1642 = vld [vmem:[#allocation1] sm:$0xff]
        %1645 = vst [vmem:[#allocation1] ss:$9 sm:$0xff] %v911
        %v1646 = vld [vmem:[#allocation1] sm:$0xff]
        %1649 = vst [vmem:[#allocation1] ss:$9 sm:$0xff] %v912
        %v1650 = vld [vmem:[#allocation1] sm:$0xff]
        %v1652 = vunpack.c.l.b16 %v1526
        %v1653 = vunpack.c.l.b16 %v1530
        %v1654 = vunpack.c.l.b16 %v1534
        %v1655 = vunpack.c.l.b16 %v1538
        %v1656 = vunpack.c.l.b16 %v1542
        %v1657 = vunpack.c.l.b16 %v1546
        %v1658 = vunpack.c.l.b16 %v1550
        %v1659 = vunpack.c.l.b16 %v1554
        %v1660 = vunpack.c.l.b16 %v1558
        %v1661 = vunpack.c.l.b16 %v1562
        %v1662 = vunpack.c.l.b16 %v1566
        %v1663 = vunpack.c.l.b16 %v1570
        %v1664 = vunpack.c.l.b16 %v1574
        %v1665 = vunpack.c.l.b16 %v1578
        %v1666 = vunpack.c.l.b16 %v1582
        %v1667 = vunpack.c.l.b16 %v1586
        %v1668 = vunpack.c.l.b16 %v1590
        %v1669 = vunpack.c.l.b16 %v1594
        %v1670 = vunpack.c.l.b16 %v1598
        %v1671 = vunpack.c.l.b16 %v1602
        %v1672 = vunpack.c.l.b16 %v1606
        %v1673 = vunpack.c.l.b16 %v1610
        %v1674 = vunpack.c.l.b16 %v1614
        %v1675 = vunpack.c.l.b16 %v1618
        %v1676 = vunpack.c.l.b16 %v1622
        %v1677 = vunpack.c.l.b16 %v1626
        %v1678 = vunpack.c.l.b16 %v1630
        %v1679 = vunpack.c.l.b16 %v1634
        %v1680 = vunpack.c.l.b16 %v1638
        %v1681 = vunpack.c.l.b16 %v1642
        %v1682 = vunpack.c.l.b16 %v1646
        %v1683 = vunpack.c.l.b16 %v1650
        %v1684 = vrot.slane %v1653, 7
        %v1685 = vsel %vm1075, %v1684, %v1652
        %v1686 = vrot.slane %v1654, 6
        %v1687 = vsel %vm1078, %v1686, %v1685
        %v1688 = vrot.slane %v1655, 5
        %v1689 = vsel %vm1081, %v1688, %v1687
        %v1690 = vrot.slane %v1656, 4
        %v1691 = vsel %vm1084, %v1690, %v1689
        %v1692 = vrot.slane %v1657, 3
        %v1693 = vsel %vm1087, %v1692, %v1691
        %v1694 = vrot.slane %v1658, 2
        %v1695 = vsel %vm1090, %v1694, %v1693
        %v1696 = vrot.slane %v1659, 1
        %v1697 = vsel %vm1093, %v1696, %v1695
        %v1698 = vrot.slane %v1661, 7
        %v1699 = vsel %vm1075, %v1698, %v1660
        %v1700 = vrot.slane %v1662, 6
        %v1701 = vsel %vm1078, %v1700, %v1699
        %v1702 = vrot.slane %v1663, 5
        %v1703 = vsel %vm1081, %v1702, %v1701
        %v1704 = vrot.slane %v1664, 4
        %v1705 = vsel %vm1084, %v1704, %v1703
        %v1706 = vrot.slane %v1665, 3
        %v1707 = vsel %vm1087, %v1706, %v1705
        %v1708 = vrot.slane %v1666, 2
        %v1709 = vsel %vm1090, %v1708, %v1707
        %v1710 = vrot.slane %v1667, 1
        %v1711 = vsel %vm1093, %v1710, %v1709
        %v1712 = vrot.slane %v1669, 7
        %v1713 = vsel %vm1075, %v1712, %v1668
        %v1714 = vrot.slane %v1670, 6
        %v1715 = vsel %vm1078, %v1714, %v1713
        %v1716 = vrot.slane %v1671, 5
        %v1717 = vsel %vm1081, %v1716, %v1715
        %v1718 = vrot.slane %v1672, 4
        %v1719 = vsel %vm1084, %v1718, %v1717
        %v1720 = vrot.slane %v1673, 3
        %v1721 = vsel %vm1087, %v1720, %v1719
        %v1722 = vrot.slane %v1674, 2
        %v1723 = vsel %vm1090, %v1722, %v1721
        %v1724 = vrot.slane %v1675, 1
        %v1725 = vsel %vm1093, %v1724, %v1723
        %v1726 = vrot.slane %v1677, 7
        %v1727 = vsel %vm1075, %v1726, %v1676
        %v1728 = vrot.slane %v1678, 6
        %v1729 = vsel %vm1078, %v1728, %v1727
        %v1730 = vrot.slane %v1679, 5
        %v1731 = vsel %vm1081, %v1730, %v1729
        %v1732 = vrot.slane %v1680, 4
        %v1733 = vsel %vm1084, %v1732, %v1731
        %v1734 = vrot.slane %v1681, 3
        %v1735 = vsel %vm1087, %v1734, %v1733
        %v1736 = vrot.slane %v1682, 2
        %v1737 = vsel %vm1090, %v1736, %v1735
        %v1738 = vrot.slane %v1683, 1
        %v1739 = vsel %vm1093, %v1738, %v1737
        %v1740 = vpack.c.b16 %v1711, %v1697
        %v1741 = vpack.c.b16 %v1739, %v1725
        %1744 = vst [vmem:[#allocation1] ss:$9 sm:$0xff] %v817
        %v1745 = vld [vmem:[#allocation1] sm:$0xff]
        %1747 = vst [vmem:[#allocation1] ss:$9 sm:$0xff] %v854
        %v1748 = vld [vmem:[#allocation1] sm:$0xff]
        %1750 = vst [vmem:[#allocation1] ss:$9 sm:$0xff] %v855
        %v1751 = vld [vmem:[#allocation1] sm:$0xff]
        %1753 = vst [vmem:[#allocation1] ss:$9 sm:$0xff] %v856
        %v1754 = vld [vmem:[#allocation1] sm:$0xff]
        %1756 = vst [vmem:[#allocation1] ss:$9 sm:$0xff] %v819
        %v1757 = vld [vmem:[#allocation1] sm:$0xff]
        %1759 = vst [vmem:[#allocation1] ss:$9 sm:$0xff] %v862
        %v1760 = vld [vmem:[#allocation1] sm:$0xff]
        %1762 = vst [vmem:[#allocation1] ss:$9 sm:$0xff] %v863
        %v1763 = vld [vmem:[#allocation1] sm:$0xff]
        %1765 = vst [vmem:[#allocation1] ss:$9 sm:$0xff] %v864
        %v1766 = vld [vmem:[#allocation1] sm:$0xff]
        %1768 = vst [vmem:[#allocation1] ss:$9 sm:$0xff] %v821
        %v1769 = vld [vmem:[#allocation1] sm:$0xff]
        %1771 = vst [vmem:[#allocation1] ss:$9 sm:$0xff] %v870
        %v1772 = vld [vmem:[#allocation1] sm:$0xff]
        %1774 = vst [vmem:[#allocation1] ss:$9 sm:$0xff] %v871
        %v1775 = vld [vmem:[#allocation1] sm:$0xff]
        %1777 = vst [vmem:[#allocation1] ss:$9 sm:$0xff] %v872
        %v1778 = vld [vmem:[#allocation1] sm:$0xff]
        %1780 = vst [vmem:[#allocation1] ss:$9 sm:$0xff] %v823
        %v1781 = vld [vmem:[#allocation1] sm:$0xff]
        %1783 = vst [vmem:[#allocation1] ss:$9 sm:$0xff] %v878
        %v1784 = vld [vmem:[#allocation1] sm:$0xff]
        %1786 = vst [vmem:[#allocation1] ss:$9 sm:$0xff] %v879
        %v1787 = vld [vmem:[#allocation1] sm:$0xff]
        %1789 = vst [vmem:[#allocation1] ss:$9 sm:$0xff] %v880
        %v1790 = vld [vmem:[#allocation1] sm:$0xff]
        %1792 = vst [vmem:[#allocation1] ss:$9 sm:$0xff] %v825
        %v1793 = vld [vmem:[#allocation1] sm:$0xff]
        %1795 = vst [vmem:[#allocation1] ss:$9 sm:$0xff] %v886
        %v1796 = vld [vmem:[#allocation1] sm:$0xff]
        %1798 = vst [vmem:[#allocation1] ss:$9 sm:$0xff] %v887
        %v1799 = vld [vmem:[#allocation1] sm:$0xff]
        %1801 = vst [vmem:[#allocation1] ss:$9 sm:$0xff] %v888
        %v1802 = vld [vmem:[#allocation1] sm:$0xff]
        %1804 = vst [vmem:[#allocation1] ss:$9 sm:$0xff] %v827
        %v1805 = vld [vmem:[#allocation1] sm:$0xff]
        %1807 = vst [vmem:[#allocation1] ss:$9 sm:$0xff] %v894
        %v1808 = vld [vmem:[#allocation1] sm:$0xff]
        %1810 = vst [vmem:[#allocation1] ss:$9 sm:$0xff] %v895
        %v1811 = vld [vmem:[#allocation1] sm:$0xff]
        %1813 = vst [vmem:[#allocation1] ss:$9 sm:$0xff] %v896
        %v1814 = vld [vmem:[#allocation1] sm:$0xff]
        %1816 = vst [vmem:[#allocation1] ss:$9 sm:$0xff] %v829
        %v1817 = vld [vmem:[#allocation1] sm:$0xff]
        %1819 = vst [vmem:[#allocation1] ss:$9 sm:$0xff] %v902
        %v1820 = vld [vmem:[#allocation1] sm:$0xff]
        %1822 = vst [vmem:[#allocation1] ss:$9 sm:$0xff] %v903
        %v1823 = vld [vmem:[#allocation1] sm:$0xff]
        %1825 = vst [vmem:[#allocation1] ss:$9 sm:$0xff] %v904
        %v1826 = vld [vmem:[#allocation1] sm:$0xff]
        %1828 = vst [vmem:[#allocation1] ss:$9 sm:$0xff] %v831
        %v1829 = vld [vmem:[#allocation1] sm:$0xff]
        %1831 = vst [vmem:[#allocation1] ss:$9 sm:$0xff] %v910
        %v1832 = vld [vmem:[#allocation1] sm:$0xff]
        %1834 = vst [vmem:[#allocation1] ss:$9 sm:$0xff] %v911
        %v1835 = vld [vmem:[#allocation1] sm:$0xff]
        %1837 = vst [vmem:[#allocation1] ss:$9 sm:$0xff] %v912
        %v1838 = vld [vmem:[#allocation1] sm:$0xff]
        %v1840 = vunpack.c.l.b16 %v1745
        %v1841 = vunpack.c.l.b16 %v1748
        %v1842 = vunpack.c.l.b16 %v1751
        %v1843 = vunpack.c.l.b16 %v1754
        %v1844 = vunpack.c.l.b16 %v1757
        %v1845 = vunpack.c.l.b16 %v1760
        %v1846 = vunpack.c.l.b16 %v1763
        %v1847 = vunpack.c.l.b16 %v1766
        %v1848 = vunpack.c.l.b16 %v1769
        %v1849 = vunpack.c.l.b16 %v1772
        %v1850 = vunpack.c.l.b16 %v1775
        %v1851 = vunpack.c.l.b16 %v1778
        %v1852 = vunpack.c.l.b16 %v1781
        %v1853 = vunpack.c.l.b16 %v1784
        %v1854 = vunpack.c.l.b16 %v1787
        %v1855 = vunpack.c.l.b16 %v1790
        %v1856 = vunpack.c.l.b16 %v1793
        %v1857 = vunpack.c.l.b16 %v1796
        %v1858 = vunpack.c.l.b16 %v1799
        %v1859 = vunpack.c.l.b16 %v1802
        %v1860 = vunpack.c.l.b16 %v1805
        %v1861 = vunpack.c.l.b16 %v1808
        %v1862 = vunpack.c.l.b16 %v1811
        %v1863 = vunpack.c.l.b16 %v1814
        %v1864 = vunpack.c.l.b16 %v1817
        %v1865 = vunpack.c.l.b16 %v1820
        %v1866 = vunpack.c.l.b16 %v1823
        %v1867 = vunpack.c.l.b16 %v1826
        %v1868 = vunpack.c.l.b16 %v1829
        %v1869 = vunpack.c.l.b16 %v1832
        %v1870 = vunpack.c.l.b16 %v1835
        %v1871 = vunpack.c.l.b16 %v1838
        %v1872 = vrot.slane %v1840, 1
        %v1873 = vsel %vm1075, %v1841, %v1872
        %v1874 = vrot.slane %v1842, 7
        %v1875 = vsel %vm1078, %v1874, %v1873
        %v1876 = vrot.slane %v1843, 6
        %v1877 = vsel %vm1081, %v1876, %v1875
        %v1878 = vrot.slane %v1844, 5
        %v1879 = vsel %vm1084, %v1878, %v1877
        %v1880 = vrot.slane %v1845, 4
        %v1881 = vsel %vm1087, %v1880, %v1879
        %v1882 = vrot.slane %v1846, 3
        %v1883 = vsel %vm1090, %v1882, %v1881
        %v1884 = vrot.slane %v1847, 2
        %v1885 = vsel %vm1093, %v1884, %v1883
        %v1886 = vrot.slane %v1848, 1
        %v1887 = vsel %vm1075, %v1849, %v1886
        %v1888 = vrot.slane %v1850, 7
        %v1889 = vsel %vm1078, %v1888, %v1887
        %v1890 = vrot.slane %v1851, 6
        %v1891 = vsel %vm1081, %v1890, %v1889
        %v1892 = vrot.slane %v1852, 5
        %v1893 = vsel %vm1084, %v1892, %v1891
        %v1894 = vrot.slane %v1853, 4
        %v1895 = vsel %vm1087, %v1894, %v1893
        %v1896 = vrot.slane %v1854, 3
        %v1897 = vsel %vm1090, %v1896, %v1895
        %v1898 = vrot.slane %v1855, 2
        %v1899 = vsel %vm1093, %v1898, %v1897
        %v1900 = vrot.slane %v1856, 1
        %v1901 = vsel %vm1075, %v1857, %v1900
        %v1902 = vrot.slane %v1858, 7
        %v1903 = vsel %vm1078, %v1902, %v1901
        %v1904 = vrot.slane %v1859, 6
        %v1905 = vsel %vm1081, %v1904, %v1903
        %v1906 = vrot.slane %v1860, 5
        %v1907 = vsel %vm1084, %v1906, %v1905
        %v1908 = vrot.slane %v1861, 4
        %v1909 = vsel %vm1087, %v1908, %v1907
        %v1910 = vrot.slane %v1862, 3
        %v1911 = vsel %vm1090, %v1910, %v1909
        %v1912 = vrot.slane %v1863, 2
        %v1913 = vsel %vm1093, %v1912, %v1911
        %v1914 = vrot.slane %v1864, 1
        %v1915 = vsel %vm1075, %v1865, %v1914
        %v1916 = vrot.slane %v1866, 7
        %v1917 = vsel %vm1078, %v1916, %v1915
        %v1918 = vrot.slane %v1867, 6
        %v1919 = vsel %vm1081, %v1918, %v1917
        %v1920 = vrot.slane %v1868, 5
        %v1921 = vsel %vm1084, %v1920, %v1919
        %v1922 = vrot.slane %v1869, 4
        %v1923 = vsel %vm1087, %v1922, %v1921
        %v1924 = vrot.slane %v1870, 3
        %v1925 = vsel %vm1090, %v1924, %v1923
        %v1926 = vrot.slane %v1871, 2
        %v1927 = vsel %vm1093, %v1926, %v1925
        %v1928 = vpack.c.b16 %v1899, %v1885
        %v1929 = vpack.c.b16 %v1927, %v1913
        %1932 = vst [vmem:[#allocation1] ss:$9 sm:$0xff] %v854
        %v1933 = vld [vmem:[#allocation1] sm:$0xff]
        %1935 = vst [vmem:[#allocation1] ss:$9 sm:$0xff] %v855
        %v1936 = vld [vmem:[#allocation1] sm:$0xff]
        %1938 = vst [vmem:[#allocation1] ss:$9 sm:$0xff] %v856
        %v1939 = vld [vmem:[#allocation1] sm:$0xff]
        %1942 = vst [vmem:[#allocation1] ss:$9 sm:$0xff] %v857
        %v1943 = vld [vmem:[#allocation1] sm:$0xff]
        %1945 = vst [vmem:[#allocation1] ss:$9 sm:$0xff] %v862
        %v1946 = vld [vmem:[#allocation1] sm:$0xff]
        %1948 = vst [vmem:[#allocation1] ss:$9 sm:$0xff] %v863
        %v1949 = vld [vmem:[#allocation1] sm:$0xff]
        %1951 = vst [vmem:[#allocation1] ss:$9 sm:$0xff] %v864
        %v1952 = vld [vmem:[#allocation1] sm:$0xff]
        %1955 = vst [vmem:[#allocation1] ss:$9 sm:$0xff] %v865
        %v1956 = vld [vmem:[#allocation1] sm:$0xff]
        %1958 = vst [vmem:[#allocation1] ss:$9 sm:$0xff] %v870
        %v1959 = vld [vmem:[#allocation1] sm:$0xff]
        %1961 = vst [vmem:[#allocation1] ss:$9 sm:$0xff] %v871
        %v1962 = vld [vmem:[#allocation1] sm:$0xff]
        %1964 = vst [vmem:[#allocation1] ss:$9 sm:$0xff] %v872
        %v1965 = vld [vmem:[#allocation1] sm:$0xff]
        %1968 = vst [vmem:[#allocation1] ss:$9 sm:$0xff] %v873
        %v1969 = vld [vmem:[#allocation1] sm:$0xff]
        %1971 = vst [vmem:[#allocation1] ss:$9 sm:$0xff] %v878
        %v1972 = vld [vmem:[#allocation1] sm:$0xff]
        %1974 = vst [vmem:[#allocation1] ss:$9 sm:$0xff] %v879
        %v1975 = vld [vmem:[#allocation1] sm:$0xff]
        %1977 = vst [vmem:[#allocation1] ss:$9 sm:$0xff] %v880
        %v1978 = vld [vmem:[#allocation1] sm:$0xff]
        %1981 = vst [vmem:[#allocation1] ss:$9 sm:$0xff] %v881
        %v1982 = vld [vmem:[#allocation1] sm:$0xff]
        %1984 = vst [vmem:[#allocation1] ss:$9 sm:$0xff] %v886
        %v1985 = vld [vmem:[#allocation1] sm:$0xff]
        %1987 = vst [vmem:[#allocation1] ss:$9 sm:$0xff] %v887
        %v1988 = vld [vmem:[#allocation1] sm:$0xff]
        %1990 = vst [vmem:[#allocation1] ss:$9 sm:$0xff] %v888
        %v1991 = vld [vmem:[#allocation1] sm:$0xff]
        %1994 = vst [vmem:[#allocation1] ss:$9 sm:$0xff] %v889
        %v1995 = vld [vmem:[#allocation1] sm:$0xff]
        %1997 = vst [vmem:[#allocation1] ss:$9 sm:$0xff] %v894
        %v1998 = vld [vmem:[#allocation1] sm:$0xff]
        %2000 = vst [vmem:[#allocation1] ss:$9 sm:$0xff] %v895
        %v2001 = vld [vmem:[#allocation1] sm:$0xff]
        %2003 = vst [vmem:[#allocation1] ss:$9 sm:$0xff] %v896
        %v2004 = vld [vmem:[#allocation1] sm:$0xff]
        %2007 = vst [vmem:[#allocation1] ss:$9 sm:$0xff] %v897
        %v2008 = vld [vmem:[#allocation1] sm:$0xff]
        %2010 = vst [vmem:[#allocation1] ss:$9 sm:$0xff] %v902
        %v2011 = vld [vmem:[#allocation1] sm:$0xff]
        %2013 = vst [vmem:[#allocation1] ss:$9 sm:$0xff] %v903
        %v2014 = vld [vmem:[#allocation1] sm:$0xff]
        %2016 = vst [vmem:[#allocation1] ss:$9 sm:$0xff] %v904
        %v2017 = vld [vmem:[#allocation1] sm:$0xff]
        %2020 = vst [vmem:[#allocation1] ss:$9 sm:$0xff] %v905
        %v2021 = vld [vmem:[#allocation1] sm:$0xff]
        %2023 = vst [vmem:[#allocation1] ss:$9 sm:$0xff] %v910
        %v2024 = vld [vmem:[#allocation1] sm:$0xff]
        %2026 = vst [vmem:[#allocation1] ss:$9 sm:$0xff] %v911
        %v2027 = vld [vmem:[#allocation1] sm:$0xff]
        %2029 = vst [vmem:[#allocation1] ss:$9 sm:$0xff] %v912
        %v2030 = vld [vmem:[#allocation1] sm:$0xff]
        %2033 = vst [vmem:[#allocation1] ss:$9 sm:$0xff] %v913
        %v2034 = vld [vmem:[#allocation1] sm:$0xff]
        %v2036 = vunpack.c.l.b16 %v1933
        %v2037 = vunpack.c.l.b16 %v1936
        %v2038 = vunpack.c.l.b16 %v1939
        %v2039 = vunpack.c.l.b16 %v1943
        %v2040 = vunpack.c.l.b16 %v1946
        %v2041 = vunpack.c.l.b16 %v1949
        %v2042 = vunpack.c.l.b16 %v1952
        %v2043 = vunpack.c.l.b16 %v1956
        %v2044 = vunpack.c.l.b16 %v1959
        %v2045 = vunpack.c.l.b16 %v1962
        %v2046 = vunpack.c.l.b16 %v1965
        %v2047 = vunpack.c.l.b16 %v1969
        %v2048 = vunpack.c.l.b16 %v1972
        %v2049 = vunpack.c.l.b16 %v1975
        %v2050 = vunpack.c.l.b16 %v1978
        %v2051 = vunpack.c.l.b16 %v1982
        %v2052 = vunpack.c.l.b16 %v1985
        %v2053 = vunpack.c.l.b16 %v1988
        %v2054 = vunpack.c.l.b16 %v1991
        %v2055 = vunpack.c.l.b16 %v1995
        %v2056 = vunpack.c.l.b16 %v1998
        %v2057 = vunpack.c.l.b16 %v2001
        %v2058 = vunpack.c.l.b16 %v2004
        %v2059 = vunpack.c.l.b16 %v2008
        %v2060 = vunpack.c.l.b16 %v2011
        %v2061 = vunpack.c.l.b16 %v2014
        %v2062 = vunpack.c.l.b16 %v2017
        %v2063 = vunpack.c.l.b16 %v2021
        %v2064 = vunpack.c.l.b16 %v2024
        %v2065 = vunpack.c.l.b16 %v2027
        %v2066 = vunpack.c.l.b16 %v2030
        %v2067 = vunpack.c.l.b16 %v2034
        %v2068 = vrot.slane %v2037, 7
        %v2069 = vsel %vm1075, %v2068, %v2036
        %v2070 = vrot.slane %v2038, 6
        %v2071 = vsel %vm1078, %v2070, %v2069
        %v2072 = vrot.slane %v2039, 5
        %v2073 = vsel %vm1081, %v2072, %v2071
        %v2074 = vrot.slane %v2040, 4
        %v2075 = vsel %vm1084, %v2074, %v2073
        %v2076 = vrot.slane %v2041, 3
        %v2077 = vsel %vm1087, %v2076, %v2075
        %v2078 = vrot.slane %v2042, 2
        %v2079 = vsel %vm1090, %v2078, %v2077
        %v2080 = vrot.slane %v2043, 1
        %v2081 = vsel %vm1093, %v2080, %v2079
        %v2082 = vrot.slane %v2045, 7
        %v2083 = vsel %vm1075, %v2082, %v2044
        %v2084 = vrot.slane %v2046, 6
        %v2085 = vsel %vm1078, %v2084, %v2083
        %v2086 = vrot.slane %v2047, 5
        %v2087 = vsel %vm1081, %v2086, %v2085
        %v2088 = vrot.slane %v2048, 4
        %v2089 = vsel %vm1084, %v2088, %v2087
        %v2090 = vrot.slane %v2049, 3
        %v2091 = vsel %vm1087, %v2090, %v2089
        %v2092 = vrot.slane %v2050, 2
        %v2093 = vsel %vm1090, %v2092, %v2091
        %v2094 = vrot.slane %v2051, 1
        %v2095 = vsel %vm1093, %v2094, %v2093
        %v2096 = vrot.slane %v2053, 7
        %v2097 = vsel %vm1075, %v2096, %v2052
        %v2098 = vrot.slane %v2054, 6
        %v2099 = vsel %vm1078, %v2098, %v2097
        %v2100 = vrot.slane %v2055, 5
        %v2101 = vsel %vm1081, %v2100, %v2099
        %v2102 = vrot.slane %v2056, 4
        %v2103 = vsel %vm1084, %v2102, %v2101
        %v2104 = vrot.slane %v2057, 3
        %v2105 = vsel %vm1087, %v2104, %v2103
        %v2106 = vrot.slane %v2058, 2
        %v2107 = vsel %vm1090, %v2106, %v2105
        %v2108 = vrot.slane %v2059, 1
        %v2109 = vsel %vm1093, %v2108, %v2107
        %v2110 = vrot.slane %v2061, 7
        %v2111 = vsel %vm1075, %v2110, %v2060
        %v2112 = vrot.slane %v2062, 6
        %v2113 = vsel %vm1078, %v2112, %v2111
        %v2114 = vrot.slane %v2063, 5
        %v2115 = vsel %vm1081, %v2114, %v2113
        %v2116 = vrot.slane %v2064, 4
        %v2117 = vsel %vm1084, %v2116, %v2115
        %v2118 = vrot.slane %v2065, 3
        %v2119 = vsel %vm1087, %v2118, %v2117
        %v2120 = vrot.slane %v2066, 2
        %v2121 = vsel %vm1090, %v2120, %v2119
        %v2122 = vrot.slane %v2067, 1
        %v2123 = vsel %vm1093, %v2122, %v2121
        %v2124 = vpack.c.b16 %v2095, %v2081
        %v2125 = vpack.c.b16 %v2123, %v2109
        %2128 = vst [vmem:[#allocation1] ss:$9 sm:$0xff] %v818
        %v2129 = vld [vmem:[#allocation1] sm:$0xff]
        %2131 = vst [vmem:[#allocation1] ss:$9 sm:$0xff] %v858
        %v2132 = vld [vmem:[#allocation1] sm:$0xff]
        %2134 = vst [vmem:[#allocation1] ss:$9 sm:$0xff] %v859
        %v2135 = vld [vmem:[#allocation1] sm:$0xff]
        %2137 = vst [vmem:[#allocation1] ss:$9 sm:$0xff] %v860
        %v2138 = vld [vmem:[#allocation1] sm:$0xff]
        %2140 = vst [vmem:[#allocation1] ss:$9 sm:$0xff] %v820
        %v2141 = vld [vmem:[#allocation1] sm:$0xff]
        %2143 = vst [vmem:[#allocation1] ss:$9 sm:$0xff] %v866
        %v2144 = vld [vmem:[#allocation1] sm:$0xff]
        %2146 = vst [vmem:[#allocation1] ss:$9 sm:$0xff] %v867
        %v2147 = vld [vmem:[#allocation1] sm:$0xff]
        %2149 = vst [vmem:[#allocation1] ss:$9 sm:$0xff] %v868
        %v2150 = vld [vmem:[#allocation1] sm:$0xff]
        %2152 = vst [vmem:[#allocation1] ss:$9 sm:$0xff] %v822
        %v2153 = vld [vmem:[#allocation1] sm:$0xff]
        %2155 = vst [vmem:[#allocation1] ss:$9 sm:$0xff] %v874
        %v2156 = vld [vmem:[#allocation1] sm:$0xff]
        %2158 = vst [vmem:[#allocation1] ss:$9 sm:$0xff] %v875
        %v2159 = vld [vmem:[#allocation1] sm:$0xff]
        %2161 = vst [vmem:[#allocation1] ss:$9 sm:$0xff] %v876
        %v2162 = vld [vmem:[#allocation1] sm:$0xff]
        %2165 = vst [vmem:[#allocation1] ss:$9 sm:$0xff] %v824
        %v2166 = vld [vmem:[#allocation1] sm:$0xff]
        %2169 = vst [vmem:[#allocation1] ss:$9 sm:$0xff] %v882
        %v2170 = vld [vmem:[#allocation1] sm:$0xff]
        %2173 = vst [vmem:[#allocation1] ss:$9 sm:$0xff] %v883
        %v2174 = vld [vmem:[#allocation1] sm:$0xff]
        %2177 = vst [vmem:[#allocation1] ss:$9 sm:$0xff] %v884
        %v2178 = vld [vmem:[#allocation1] sm:$0xff]
        %2180 = vst [vmem:[#allocation1] ss:$9 sm:$0xff] %v826
        %v2181 = vld [vmem:[#allocation1] sm:$0xff]
        %2183 = vst [vmem:[#allocation1] ss:$9 sm:$0xff] %v890
        %v2184 = vld [vmem:[#allocation1] sm:$0xff]
        %2186 = vst [vmem:[#allocation1] ss:$9 sm:$0xff] %v891
        %v2187 = vld [vmem:[#allocation1] sm:$0xff]
        %2189 = vst [vmem:[#allocation1] ss:$9 sm:$0xff] %v892
        %v2190 = vld [vmem:[#allocation1] sm:$0xff]
        %2192 = vst [vmem:[#allocation1] ss:$9 sm:$0xff] %v828
        %v2193 = vld [vmem:[#allocation1] sm:$0xff]
        %2195 = vst [vmem:[#allocation1] ss:$9 sm:$0xff] %v898
        %v2196 = vld [vmem:[#allocation1] sm:$0xff]
        %2198 = vst [vmem:[#allocation1] ss:$9 sm:$0xff] %v899
        %v2199 = vld [vmem:[#allocation1] sm:$0xff]
        %2201 = vst [vmem:[#allocation1] ss:$9 sm:$0xff] %v900
        %v2202 = vld [vmem:[#allocation1] sm:$0xff]
        %2204 = vst [vmem:[#allocation1] ss:$9 sm:$0xff] %v830
        %v2205 = vld [vmem:[#allocation1] sm:$0xff]
        %2207 = vst [vmem:[#allocation1] ss:$9 sm:$0xff] %v906
        %v2208 = vld [vmem:[#allocation1] sm:$0xff]
        %2210 = vst [vmem:[#allocation1] ss:$9 sm:$0xff] %v907
        %v2211 = vld [vmem:[#allocation1] sm:$0xff]
        %2213 = vst [vmem:[#allocation1] ss:$9 sm:$0xff] %v908
        %v2214 = vld [vmem:[#allocation1] sm:$0xff]
        %2217 = vst [vmem:[#allocation1] ss:$9 sm:$0xff] %v832
        %v2218 = vld [vmem:[#allocation1] sm:$0xff]
        %2221 = vst [vmem:[#allocation1] ss:$9 sm:$0xff] %v914
        %v2222 = vld [vmem:[#allocation1] sm:$0xff]
        %2225 = vst [vmem:[#allocation1] ss:$9 sm:$0xff] %v915
        %v2226 = vld [vmem:[#allocation1] sm:$0xff]
        %2229 = vst [vmem:[#allocation1] ss:$9 sm:$0xff] %v916
        %v2230 = vld [vmem:[#allocation1] sm:$0xff]
        %v2232 = vunpack.c.l.b16 %v2129
        %v2233 = vunpack.c.l.b16 %v2132
        %v2234 = vunpack.c.l.b16 %v2135
        %v2235 = vunpack.c.l.b16 %v2138
        %v2236 = vunpack.c.l.b16 %v2141
        %v2237 = vunpack.c.l.b16 %v2144
        %v2238 = vunpack.c.l.b16 %v2147
        %v2239 = vunpack.c.l.b16 %v2150
        %v2240 = vunpack.c.l.b16 %v2153
        %v2241 = vunpack.c.l.b16 %v2156
        %v2242 = vunpack.c.l.b16 %v2159
        %v2243 = vunpack.c.l.b16 %v2162
        %v2244 = vunpack.c.l.b16 %v2166
        %v2245 = vunpack.c.l.b16 %v2170
        %v2246 = vunpack.c.l.b16 %v2174
        %v2247 = vunpack.c.l.b16 %v2178
        %v2248 = vunpack.c.l.b16 %v2181
        %v2249 = vunpack.c.l.b16 %v2184
        %v2250 = vunpack.c.l.b16 %v2187
        %v2251 = vunpack.c.l.b16 %v2190
        %v2252 = vunpack.c.l.b16 %v2193
        %v2253 = vunpack.c.l.b16 %v2196
        %v2254 = vunpack.c.l.b16 %v2199
        %v2255 = vunpack.c.l.b16 %v2202
        %v2256 = vunpack.c.l.b16 %v2205
        %v2257 = vunpack.c.l.b16 %v2208
        %v2258 = vunpack.c.l.b16 %v2211
        %v2259 = vunpack.c.l.b16 %v2214
        %v2260 = vunpack.c.l.b16 %v2218
        %v2261 = vunpack.c.l.b16 %v2222
        %v2262 = vunpack.c.l.b16 %v2226
        %v2263 = vunpack.c.l.b16 %v2230
        %v2264 = vrot.slane %v2233, 7
        %v2265 = vsel %vm1075, %v2264, %v2232
        %v2266 = vrot.slane %v2234, 6
        %v2267 = vsel %vm1078, %v2266, %v2265
        %v2268 = vrot.slane %v2235, 5
        %v2269 = vsel %vm1081, %v2268, %v2267
        %v2270 = vrot.slane %v2236, 4
        %v2271 = vsel %vm1084, %v2270, %v2269
        %v2272 = vrot.slane %v2237, 3
        %v2273 = vsel %vm1087, %v2272, %v2271
        %v2274 = vrot.slane %v2238, 2
        %v2275 = vsel %vm1090, %v2274, %v2273
        %v2276 = vrot.slane %v2239, 1
        %v2277 = vsel %vm1093, %v2276, %v2275
        %v2278 = vrot.slane %v2241, 7
        %v2279 = vsel %vm1075, %v2278, %v2240
        %v2280 = vrot.slane %v2242, 6
        %v2281 = vsel %vm1078, %v2280, %v2279
        %v2282 = vrot.slane %v2243, 5
        %v2283 = vsel %vm1081, %v2282, %v2281
        %v2284 = vrot.slane %v2244, 4
        %v2285 = vsel %vm1084, %v2284, %v2283
        %v2286 = vrot.slane %v2245, 3
        %v2287 = vsel %vm1087, %v2286, %v2285
        %v2288 = vrot.slane %v2246, 2
        %v2289 = vsel %vm1090, %v2288, %v2287
        %v2290 = vrot.slane %v2247, 1
        %v2291 = vsel %vm1093, %v2290, %v2289
        %v2292 = vrot.slane %v2249, 7
        %v2293 = vsel %vm1075, %v2292, %v2248
        %v2294 = vrot.slane %v2250, 6
        %v2295 = vsel %vm1078, %v2294, %v2293
        %v2296 = vrot.slane %v2251, 5
        %v2297 = vsel %vm1081, %v2296, %v2295
        %v2298 = vrot.slane %v2252, 4
        %v2299 = vsel %vm1084, %v2298, %v2297
        %v2300 = vrot.slane %v2253, 3
        %v2301 = vsel %vm1087, %v2300, %v2299
        %v2302 = vrot.slane %v2254, 2
        %v2303 = vsel %vm1090, %v2302, %v2301
        %v2304 = vrot.slane %v2255, 1
        %v2305 = vsel %vm1093, %v2304, %v2303
        %v2306 = vrot.slane %v2257, 7
        %v2307 = vsel %vm1075, %v2306, %v2256
        %v2308 = vrot.slane %v2258, 6
        %v2309 = vsel %vm1078, %v2308, %v2307
        %v2310 = vrot.slane %v2259, 5
        %v2311 = vsel %vm1081, %v2310, %v2309
        %v2312 = vrot.slane %v2260, 4
        %v2313 = vsel %vm1084, %v2312, %v2311
        %v2314 = vrot.slane %v2261, 3
        %v2315 = vsel %vm1087, %v2314, %v2313
        %v2316 = vrot.slane %v2262, 2
        %v2317 = vsel %vm1090, %v2316, %v2315
        %v2318 = vrot.slane %v2263, 1
        %v2319 = vsel %vm1093, %v2318, %v2317
        %v2320 = vpack.c.b16 %v2291, %v2277
        %v2321 = vpack.c.b16 %v2319, %v2305
        %2324 = vst [vmem:[#allocation1] ss:$9 sm:$0xff] %v818
        %v2325 = vld [vmem:[#allocation1] sm:$0xff]
        %2327 = vst [vmem:[#allocation1] ss:$9 sm:$0xff] %v858
        %v2328 = vld [vmem:[#allocation1] sm:$0xff]
        %2330 = vst [vmem:[#allocation1] ss:$9 sm:$0xff] %v859
        %v2331 = vld [vmem:[#allocation1] sm:$0xff]
        %2333 = vst [vmem:[#allocation1] ss:$9 sm:$0xff] %v860
        %v2334 = vld [vmem:[#allocation1] sm:$0xff]
        %2336 = vst [vmem:[#allocation1] ss:$9 sm:$0xff] %v820
        %v2337 = vld [vmem:[#allocation1] sm:$0xff]
        %2339 = vst [vmem:[#allocation1] ss:$9 sm:$0xff] %v866
        %v2340 = vld [vmem:[#allocation1] sm:$0xff]
        %2342 = vst [vmem:[#allocation1] ss:$9 sm:$0xff] %v867
        %v2343 = vld [vmem:[#allocation1] sm:$0xff]
        %2345 = vst [vmem:[#allocation1] ss:$9 sm:$0xff] %v868
        %v2346 = vld [vmem:[#allocation1] sm:$0xff]
        %2348 = vst [vmem:[#allocation1] ss:$9 sm:$0xff] %v822
        %v2349 = vld [vmem:[#allocation1] sm:$0xff]
        %2351 = vst [vmem:[#allocation1] ss:$9 sm:$0xff] %v874
        %v2352 = vld [vmem:[#allocation1] sm:$0xff]
        %2354 = vst [vmem:[#allocation1] ss:$9 sm:$0xff] %v875
        %v2355 = vld [vmem:[#allocation1] sm:$0xff]
        %2357 = vst [vmem:[#allocation1] ss:$9 sm:$0xff] %v876
        %v2358 = vld [vmem:[#allocation1] sm:$0xff]
        %2360 = vst [vmem:[#allocation1] ss:$9 sm:$0xff] %v824
        %v2361 = vld [vmem:[#allocation1] sm:$0xff]
        %2363 = vst [vmem:[#allocation1] ss:$9 sm:$0xff] %v882
        %v2364 = vld [vmem:[#allocation1] sm:$0xff]
        %2366 = vst [vmem:[#allocation1] ss:$9 sm:$0xff] %v883
        %v2367 = vld [vmem:[#allocation1] sm:$0xff]
        %2369 = vst [vmem:[#allocation1] ss:$9 sm:$0xff] %v884
        %v2370 = vld [vmem:[#allocation1] sm:$0xff]
        %2372 = vst [vmem:[#allocation1] ss:$9 sm:$0xff] %v826
        %v2373 = vld [vmem:[#allocation1] sm:$0xff]
        %2375 = vst [vmem:[#allocation1] ss:$9 sm:$0xff] %v890
        %v2376 = vld [vmem:[#allocation1] sm:$0xff]
        %2378 = vst [vmem:[#allocation1] ss:$9 sm:$0xff] %v891
        %v2379 = vld [vmem:[#allocation1] sm:$0xff]
        %2381 = vst [vmem:[#allocation1] ss:$9 sm:$0xff] %v892
        %v2382 = vld [vmem:[#allocation1] sm:$0xff]
        %2384 = vst [vmem:[#allocation1] ss:$9 sm:$0xff] %v828
        %v2385 = vld [vmem:[#allocation1] sm:$0xff]
        %2387 = vst [vmem:[#allocation1] ss:$9 sm:$0xff] %v898
        %v2388 = vld [vmem:[#allocation1] sm:$0xff]
        %2390 = vst [vmem:[#allocation1] ss:$9 sm:$0xff] %v899
        %v2391 = vld [vmem:[#allocation1] sm:$0xff]
        %2393 = vst [vmem:[#allocation1] ss:$9 sm:$0xff] %v900
        %v2394 = vld [vmem:[#allocation1] sm:$0xff]
        %2396 = vst [vmem:[#allocation1] ss:$9 sm:$0xff] %v830
        %v2397 = vld [vmem:[#allocation1] sm:$0xff]
        %2399 = vst [vmem:[#allocation1] ss:$9 sm:$0xff] %v906
        %v2400 = vld [vmem:[#allocation1] sm:$0xff]
        %2402 = vst [vmem:[#allocation1] ss:$9 sm:$0xff] %v907
        %v2403 = vld [vmem:[#allocation1] sm:$0xff]
        %2405 = vst [vmem:[#allocation1] ss:$9 sm:$0xff] %v908
        %v2406 = vld [vmem:[#allocation1] sm:$0xff]
        %2408 = vst [vmem:[#allocation1] ss:$9 sm:$0xff] %v832
        %v2409 = vld [vmem:[#allocation1] sm:$0xff]
        %2411 = vst [vmem:[#allocation1] ss:$9 sm:$0xff] %v914
        %v2412 = vld [vmem:[#allocation1] sm:$0xff]
        %2414 = vst [vmem:[#allocation1] ss:$9 sm:$0xff] %v915
        %v2415 = vld [vmem:[#allocation1] sm:$0xff]
        %2417 = vst [vmem:[#allocation1] ss:$9 sm:$0xff] %v916
        %v2418 = vld [vmem:[#allocation1] sm:$0xff]
        %v2420 = vunpack.c.l.b16 %v2325
        %v2421 = vunpack.c.l.b16 %v2328
        %v2422 = vunpack.c.l.b16 %v2331
        %v2423 = vunpack.c.l.b16 %v2334
        %v2424 = vunpack.c.l.b16 %v2337
        %v2425 = vunpack.c.l.b16 %v2340
        %v2426 = vunpack.c.l.b16 %v2343
        %v2427 = vunpack.c.l.b16 %v2346
        %v2428 = vunpack.c.l.b16 %v2349
        %v2429 = vunpack.c.l.b16 %v2352
        %v2430 = vunpack.c.l.b16 %v2355
        %v2431 = vunpack.c.l.b16 %v2358
        %v2432 = vunpack.c.l.b16 %v2361
        %v2433 = vunpack.c.l.b16 %v2364
        %v2434 = vunpack.c.l.b16 %v2367
        %v2435 = vunpack.c.l.b16 %v2370
        %v2436 = vunpack.c.l.b16 %v2373
        %v2437 = vunpack.c.l.b16 %v2376
        %v2438 = vunpack.c.l.b16 %v2379
        %v2439 = vunpack.c.l.b16 %v2382
        %v2440 = vunpack.c.l.b16 %v2385
        %v2441 = vunpack.c.l.b16 %v2388
        %v2442 = vunpack.c.l.b16 %v2391
        %v2443 = vunpack.c.l.b16 %v2394
        %v2444 = vunpack.c.l.b16 %v2397
        %v2445 = vunpack.c.l.b16 %v2400
        %v2446 = vunpack.c.l.b16 %v2403
        %v2447 = vunpack.c.l.b16 %v2406
        %v2448 = vunpack.c.l.b16 %v2409
        %v2449 = vunpack.c.l.b16 %v2412
        %v2450 = vunpack.c.l.b16 %v2415
        %v2451 = vunpack.c.l.b16 %v2418
        %v2452 = vrot.slane %v2420, 1
        %v2453 = vsel %vm1075, %v2421, %v2452
        %v2454 = vrot.slane %v2422, 7
        %v2455 = vsel %vm1078, %v2454, %v2453
        %v2456 = vrot.slane %v2423, 6
        %v2457 = vsel %vm1081, %v2456, %v2455
        %v2458 = vrot.slane %v2424, 5
        %v2459 = vsel %vm1084, %v2458, %v2457
        %v2460 = vrot.slane %v2425, 4
        %v2461 = vsel %vm1087, %v2460, %v2459
        %v2462 = vrot.slane %v2426, 3
        %v2463 = vsel %vm1090, %v2462, %v2461
        %v2464 = vrot.slane %v2427, 2
        %v2465 = vsel %vm1093, %v2464, %v2463
        %v2466 = vrot.slane %v2428, 1
        %v2467 = vsel %vm1075, %v2429, %v2466
        %v2468 = vrot.slane %v2430, 7
        %v2469 = vsel %vm1078, %v2468, %v2467
        %v2470 = vrot.slane %v2431, 6
        %v2471 = vsel %vm1081, %v2470, %v2469
        %v2472 = vrot.slane %v2432, 5
        %v2473 = vsel %vm1084, %v2472, %v2471
        %v2474 = vrot.slane %v2433, 4
        %v2475 = vsel %vm1087, %v2474, %v2473
        %v2476 = vrot.slane %v2434, 3
        %v2477 = vsel %vm1090, %v2476, %v2475
        %v2478 = vrot.slane %v2435, 2
        %v2479 = vsel %vm1093, %v2478, %v2477
        %v2480 = vrot.slane %v2436, 1
        %v2481 = vsel %vm1075, %v2437, %v2480
        %v2482 = vrot.slane %v2438, 7
        %v2483 = vsel %vm1078, %v2482, %v2481
        %v2484 = vrot.slane %v2439, 6
        %v2485 = vsel %vm1081, %v2484, %v2483
        %v2486 = vrot.slane %v2440, 5
        %v2487 = vsel %vm1084, %v2486, %v2485
        %v2488 = vrot.slane %v2441, 4
        %v2489 = vsel %vm1087, %v2488, %v2487
        %v2490 = vrot.slane %v2442, 3
        %v2491 = vsel %vm1090, %v2490, %v2489
        %v2492 = vrot.slane %v2443, 2
        %v2493 = vsel %vm1093, %v2492, %v2491
        %v2494 = vrot.slane %v2444, 1
        %v2495 = vsel %vm1075, %v2445, %v2494
        %v2496 = vrot.slane %v2446, 7
        %v2497 = vsel %vm1078, %v2496, %v2495
        %v2498 = vrot.slane %v2447, 6
        %v2499 = vsel %vm1081, %v2498, %v2497
        %v2500 = vrot.slane %v2448, 5
        %v2501 = vsel %vm1084, %v2500, %v2499
        %v2502 = vrot.slane %v2449, 4
        %v2503 = vsel %vm1087, %v2502, %v2501
        %v2504 = vrot.slane %v2450, 3
        %v2505 = vsel %vm1090, %v2504, %v2503
        %v2506 = vrot.slane %v2451, 2
        %v2507 = vsel %vm1093, %v2506, %v2505
        %v2508 = vpack.c.b16 %v2479, %v2465
        %v2509 = vpack.c.b16 %v2507, %v2493
        %2512 = vst [vmem:[#allocation1] ss:$9 sm:$0xff] %v858
        %v2513 = vld [vmem:[#allocation1] sm:$0xff]
        %2515 = vst [vmem:[#allocation1] ss:$9 sm:$0xff] %v859
        %v2516 = vld [vmem:[#allocation1] sm:$0xff]
        %2518 = vst [vmem:[#allocation1] ss:$9 sm:$0xff] %v860
        %v2519 = vld [vmem:[#allocation1] sm:$0xff]
        %2521 = vst [vmem:[#allocation1] ss:$9 sm:$0xff] %v861
        %v2522 = vld [vmem:[#allocation1] sm:$0xff]
        %2524 = vst [vmem:[#allocation1] ss:$9 sm:$0xff] %v866
        %v2525 = vld [vmem:[#allocation1] sm:$0xff]
        %2527 = vst [vmem:[#allocation1] ss:$9 sm:$0xff] %v867
        %v2528 = vld [vmem:[#allocation1] sm:$0xff]
        %2530 = vst [vmem:[#allocation1] ss:$9 sm:$0xff] %v868
        %v2531 = vld [vmem:[#allocation1] sm:$0xff]
        %2533 = vst [vmem:[#allocation1] ss:$9 sm:$0xff] %v869
        %v2534 = vld [vmem:[#allocation1] sm:$0xff]
        %2536 = vst [vmem:[#allocation1] ss:$9 sm:$0xff] %v874
        %v2537 = vld [vmem:[#allocation1] sm:$0xff]
        %2539 = vst [vmem:[#allocation1] ss:$9 sm:$0xff] %v875
        %v2540 = vld [vmem:[#allocation1] sm:$0xff]
        %2542 = vst [vmem:[#allocation1] ss:$9 sm:$0xff] %v876
        %v2543 = vld [vmem:[#allocation1] sm:$0xff]
        %2545 = vst [vmem:[#allocation1] ss:$9 sm:$0xff] %v877
        %v2546 = vld [vmem:[#allocation1] sm:$0xff]
        %2548 = vst [vmem:[#allocation1] ss:$9 sm:$0xff] %v882
        %v2549 = vld [vmem:[#allocation1] sm:$0xff]
        %2551 = vst [vmem:[#allocation1] ss:$9 sm:$0xff] %v883
        %v2552 = vld [vmem:[#allocation1] sm:$0xff]
        %2554 = vst [vmem:[#allocation1] ss:$9 sm:$0xff] %v884
        %v2555 = vld [vmem:[#allocation1] sm:$0xff]
        %2558 = vst [vmem:[#allocation1] ss:$9 sm:$0xff] %v885
        %v2559 = vld [vmem:[#allocation1] sm:$0xff]
        %2561 = vst [vmem:[#allocation1] ss:$9 sm:$0xff] %v890
        %v2562 = vld [vmem:[#allocation1] sm:$0xff]
        %2564 = vst [vmem:[#allocation1] ss:$9 sm:$0xff] %v891
        %v2565 = vld [vmem:[#allocation1] sm:$0xff]
        %2567 = vst [vmem:[#allocation1] ss:$9 sm:$0xff] %v892
        %v2568 = vld [vmem:[#allocation1] sm:$0xff]
        %2570 = vst [vmem:[#allocation1] ss:$9 sm:$0xff] %v893
        %v2571 = vld [vmem:[#allocation1] sm:$0xff]
        %2573 = vst [vmem:[#allocation1] ss:$9 sm:$0xff] %v898
        %v2574 = vld [vmem:[#allocation1] sm:$0xff]
        %2576 = vst [vmem:[#allocation1] ss:$9 sm:$0xff] %v899
        %v2577 = vld [vmem:[#allocation1] sm:$0xff]
        %2579 = vst [vmem:[#allocation1] ss:$9 sm:$0xff] %v900
        %v2580 = vld [vmem:[#allocation1] sm:$0xff]
        %2582 = vst [vmem:[#allocation1] ss:$9 sm:$0xff] %v901
        %v2583 = vld [vmem:[#allocation1] sm:$0xff]
        %2585 = vst [vmem:[#allocation1] ss:$9 sm:$0xff] %v906
        %v2586 = vld [vmem:[#allocation1] sm:$0xff]
        %2588 = vst [vmem:[#allocation1] ss:$9 sm:$0xff] %v907
        %v2589 = vld [vmem:[#allocation1] sm:$0xff]
        %2591 = vst [vmem:[#allocation1] ss:$9 sm:$0xff] %v908
        %v2592 = vld [vmem:[#allocation1] sm:$0xff]
        %2594 = vst [vmem:[#allocation1] ss:$9 sm:$0xff] %v909
        %v2595 = vld [vmem:[#allocation1] sm:$0xff]
        %2597 = vst [vmem:[#allocation1] ss:$9 sm:$0xff] %v914
        %v2598 = vld [vmem:[#allocation1] sm:$0xff]
        %2600 = vst [vmem:[#allocation1] ss:$9 sm:$0xff] %v915
        %v2601 = vld [vmem:[#allocation1] sm:$0xff]
        %2603 = vst [vmem:[#allocation1] ss:$9 sm:$0xff] %v916
        %v2604 = vld [vmem:[#allocation1] sm:$0xff]
        %2607 = vst [vmem:[#allocation1] ss:$9 sm:$0xff] %v917
        %v2608 = vld [vmem:[#allocation1] sm:$0xff]
        %v2610 = vunpack.c.l.b16 %v2513
        %v2611 = vunpack.c.l.b16 %v2516
        %v2612 = vunpack.c.l.b16 %v2519
        %v2613 = vunpack.c.l.b16 %v2522
        %v2614 = vunpack.c.l.b16 %v2525
        %v2615 = vunpack.c.l.b16 %v2528
        %v2616 = vunpack.c.l.b16 %v2531
        %v2617 = vunpack.c.l.b16 %v2534
        %v2618 = vunpack.c.l.b16 %v2537
        %v2619 = vunpack.c.l.b16 %v2540
        %v2620 = vunpack.c.l.b16 %v2543
        %v2621 = vunpack.c.l.b16 %v2546
        %v2622 = vunpack.c.l.b16 %v2549
        %v2623 = vunpack.c.l.b16 %v2552
        %v2624 = vunpack.c.l.b16 %v2555
        %v2625 = vunpack.c.l.b16 %v2559
        %v2626 = vunpack.c.l.b16 %v2562
        %v2627 = vunpack.c.l.b16 %v2565
        %v2628 = vunpack.c.l.b16 %v2568
        %v2629 = vunpack.c.l.b16 %v2571
        %v2630 = vunpack.c.l.b16 %v2574
        %v2631 = vunpack.c.l.b16 %v2577
        %v2632 = vunpack.c.l.b16 %v2580
        %v2633 = vunpack.c.l.b16 %v2583
        %v2634 = vunpack.c.l.b16 %v2586
        %v2635 = vunpack.c.l.b16 %v2589
        %v2636 = vunpack.c.l.b16 %v2592
        %v2637 = vunpack.c.l.b16 %v2595
        %v2638 = vunpack.c.l.b16 %v2598
        %v2639 = vunpack.c.l.b16 %v2601
        %v2640 = vunpack.c.l.b16 %v2604
        %v2641 = vunpack.c.l.b16 %v2608
        %v2642 = vrot.slane %v2611, 7
        %v2643 = vsel %vm1075, %v2642, %v2610
        %v2644 = vrot.slane %v2612, 6
        %v2645 = vsel %vm1078, %v2644, %v2643
        %v2646 = vrot.slane %v2613, 5
        %v2647 = vsel %vm1081, %v2646, %v2645
        %v2648 = vrot.slane %v2614, 4
        %v2649 = vsel %vm1084, %v2648, %v2647
        %v2650 = vrot.slane %v2615, 3
        %v2651 = vsel %vm1087, %v2650, %v2649
        %v2652 = vrot.slane %v2616, 2
        %v2653 = vsel %vm1090, %v2652, %v2651
        %v2654 = vrot.slane %v2617, 1
        %v2655 = vsel %vm1093, %v2654, %v2653
        %v2656 = vrot.slane %v2619, 7
        %v2657 = vsel %vm1075, %v2656, %v2618
        %v2658 = vrot.slane %v2620, 6
        %v2659 = vsel %vm1078, %v2658, %v2657
        %v2660 = vrot.slane %v2621, 5
        %v2661 = vsel %vm1081, %v2660, %v2659
        %v2662 = vrot.slane %v2622, 4
        %v2663 = vsel %vm1084, %v2662, %v2661
        %v2664 = vrot.slane %v2623, 3
        %v2665 = vsel %vm1087, %v2664, %v2663
        %v2666 = vrot.slane %v2624, 2
        %v2667 = vsel %vm1090, %v2666, %v2665
        %v2668 = vrot.slane %v2625, 1
        %v2669 = vsel %vm1093, %v2668, %v2667
        %v2670 = vrot.slane %v2627, 7
        %v2671 = vsel %vm1075, %v2670, %v2626
        %v2672 = vrot.slane %v2628, 6
        %v2673 = vsel %vm1078, %v2672, %v2671
        %v2674 = vrot.slane %v2629, 5
        %v2675 = vsel %vm1081, %v2674, %v2673
        %v2676 = vrot.slane %v2630, 4
        %v2677 = vsel %vm1084, %v2676, %v2675
        %v2678 = vrot.slane %v2631, 3
        %v2679 = vsel %vm1087, %v2678, %v2677
        %v2680 = vrot.slane %v2632, 2
        %v2681 = vsel %vm1090, %v2680, %v2679
        %v2682 = vrot.slane %v2633, 1
        %v2683 = vsel %vm1093, %v2682, %v2681
        %v2684 = vrot.slane %v2635, 7
        %v2685 = vsel %vm1075, %v2684, %v2634
        %v2686 = vrot.slane %v2636, 6
        %v2687 = vsel %vm1078, %v2686, %v2685
        %v2688 = vrot.slane %v2637, 5
        %v2689 = vsel %vm1081, %v2688, %v2687
        %v2690 = vrot.slane %v2638, 4
        %v2691 = vsel %vm1084, %v2690, %v2689
        %v2692 = vrot.slane %v2639, 3
        %v2693 = vsel %vm1087, %v2692, %v2691
        %v2694 = vrot.slane %v2640, 2
        %v2695 = vsel %vm1090, %v2694, %v2693
        %v2696 = vrot.slane %v2641, 1
        %v2697 = vsel %vm1093, %v2696, %v2695
        %v2698 = vpack.c.b16 %v2669, %v2655
        %v2699 = vpack.c.b16 %v2697, %v2683
        %v2702 = vld [vmem:[#allocation7] sm:$0xf]
        %v2703 = vld [vmem:[#allocation7 + $0x4] sm:$0xf]
        %v2704 = vld [vmem:[#allocation7 + $0x8] sm:$0xf]
        %v2705 = vld [vmem:[#allocation7 + $0xc] sm:$0xf]
        %v2706 = vld [vmem:[#allocation7 + $0x10] sm:$0xf]
        %v2707 = vld [vmem:[#allocation7 + $0x14] sm:$0xf]
        %v2708 = vld [vmem:[#allocation7 + $0x18] sm:$0xf]
        %v2709 = vld [vmem:[#allocation7 + $0x1c] sm:$0xf]
        %v2710 = vld [vmem:[#allocation7 + $0x20] sm:$0xf]
        %v2711 = vld [vmem:[#allocation7 + $0x24] sm:$0xf]
        %v2712 = vld [vmem:[#allocation7 + $0x28] sm:$0xf]
        %v2713 = vld [vmem:[#allocation7 + $0x2c] sm:$0xf]
        %v2714 = vld [vmem:[#allocation7 + $0x30] sm:$0xf]
        %v2715 = vld [vmem:[#allocation7 + $0x34] sm:$0xf]
        %v2716 = vld [vmem:[#allocation7 + $0x38] sm:$0xf]
        %v2717 = vld [vmem:[#allocation7 + $0x3c] sm:$0xf]
        %v2718 = vld [vmem:[#allocation7 + $0x40] sm:$0xf]
        %v2719 = vld [vmem:[#allocation7 + $0x44] sm:$0xf]
        %v2720 = vld [vmem:[#allocation7 + $0x48] sm:$0xf]
        %v2721 = vld [vmem:[#allocation7 + $0x4c] sm:$0xf]
        %v2722 = vld [vmem:[#allocation7 + $0x50] sm:$0xf]
        %v2723 = vld [vmem:[#allocation7 + $0x54] sm:$0xf]
        %v2724 = vld [vmem:[#allocation7 + $0x58] sm:$0xf]
        %v2725 = vld [vmem:[#allocation7 + $0x5c] sm:$0xf]
        %v2726 = vld [vmem:[#allocation7 + $0x60] sm:$0xf]
        %v2727 = vld [vmem:[#allocation7 + $0x64] sm:$0xf]
        %v2728 = vld [vmem:[#allocation7 + $0x68] sm:$0xf]
        %v2729 = vld [vmem:[#allocation7 + $0x6c] sm:$0xf]
        %v2730 = vld [vmem:[#allocation7 + $0x70] sm:$0xf]
        %v2731 = vld [vmem:[#allocation7 + $0x74] sm:$0xf]
        %v2732 = vld [vmem:[#allocation7 + $0x78] sm:$0xf]
        %v2733 = vld [vmem:[#allocation7 + $0x7c] sm:$0xf]
        %v2734 = vld [vmem:[#allocation7 + $0x80] sm:$0xf]
        %v2735 = vld [vmem:[#allocation7 + $0x84] sm:$0xf]
        %v2736 = vld [vmem:[#allocation7 + $0x88] sm:$0xf]
        %v2737 = vld [vmem:[#allocation7 + $0x8c] sm:$0xf]
        %v2738 = vld [vmem:[#allocation7 + $0x90] sm:$0xf]
        %v2739 = vld [vmem:[#allocation7 + $0x94] sm:$0xf]
        %v2740 = vld [vmem:[#allocation7 + $0x98] sm:$0xf]
        %v2741 = vld [vmem:[#allocation7 + $0x9c] sm:$0xf]
        %v2742 = vld [vmem:[#allocation7 + $0xa0] sm:$0xf]
        %v2743 = vld [vmem:[#allocation7 + $0xa4] sm:$0xf]
        %v2744 = vld [vmem:[#allocation7 + $0xa8] sm:$0xf]
        %v2745 = vld [vmem:[#allocation7 + $0xac] sm:$0xf]
        %v2746 = vld [vmem:[#allocation7 + $0xb0] sm:$0xf]
        %v2747 = vld [vmem:[#allocation7 + $0xb4] sm:$0xf]
        %v2748 = vld [vmem:[#allocation7 + $0xb8] sm:$0xf]
        %v2749 = vld [vmem:[#allocation7 + $0xbc] sm:$0xf]
        %v2750 = vld [vmem:[#allocation7 + $0xc0] sm:$0xf]
        %v2751 = vld [vmem:[#allocation7 + $0xc4] sm:$0xf]
        %v2752 = vld [vmem:[#allocation7 + $0xc8] sm:$0xf]
        %v2753 = vld [vmem:[#allocation7 + $0xcc] sm:$0xf]
        %v2754 = vld [vmem:[#allocation7 + $0xd0] sm:$0xf]
        %v2755 = vld [vmem:[#allocation7 + $0xd4] sm:$0xf]
        %v2756 = vld [vmem:[#allocation7 + $0xd8] sm:$0xf]
        %v2757 = vld [vmem:[#allocation7 + $0xdc] sm:$0xf]
        %v2758 = vld [vmem:[#allocation7 + $0xe0] sm:$0xf]
        %v2759 = vld [vmem:[#allocation7 + $0xe4] sm:$0xf]
        %v2760 = vld [vmem:[#allocation7 + $0xe8] sm:$0xf]
        %v2761 = vld [vmem:[#allocation7 + $0xec] sm:$0xf]
        %v2762 = vld [vmem:[#allocation7 + $0xf0] sm:$0xf]
        %v2763 = vld [vmem:[#allocation7 + $0xf4] sm:$0xf]
        %v2764 = vld [vmem:[#allocation7 + $0xf8] sm:$0xf]
        %v2765 = vld [vmem:[#allocation7 + $0xfc] sm:$0xf]
        %v2766 = vld [vmem:[#allocation7 + $0x100] sm:$0xf]
        %v2767 = vld [vmem:[#allocation7 + $0x104] sm:$0xf]
        %v2768 = vld [vmem:[#allocation7 + $0x108] sm:$0xf]
        %v2769 = vld [vmem:[#allocation7 + $0x10c] sm:$0xf]
        %v2770 = vld [vmem:[#allocation7 + $0x110] sm:$0xf]
        %v2771 = vld [vmem:[#allocation7 + $0x114] sm:$0xf]
        %v2772 = vld [vmem:[#allocation7 + $0x118] sm:$0xf]
        %v2773 = vld [vmem:[#allocation7 + $0x11c] sm:$0xf]
        %v2774 = vld [vmem:[#allocation7 + $0x120] sm:$0xf]
        %v2775 = vld [vmem:[#allocation7 + $0x124] sm:$0xf]
        %v2776 = vld [vmem:[#allocation7 + $0x128] sm:$0xf]
        %v2777 = vld [vmem:[#allocation7 + $0x12c] sm:$0xf]
        %v2778 = vld [vmem:[#allocation7 + $0x130] sm:$0xf]
        %v2779 = vld [vmem:[#allocation7 + $0x134] sm:$0xf]
        %v2780 = vld [vmem:[#allocation7 + $0x138] sm:$0xf]
        %v2781 = vld [vmem:[#allocation7 + $0x13c] sm:$0xf]
        %v2782 = vld [vmem:[#allocation7 + $0x140] sm:$0xf]
        %v2783 = vld [vmem:[#allocation7 + $0x144] sm:$0xf]
        %v2784 = vld [vmem:[#allocation7 + $0x148] sm:$0xf]
        %v2785 = vld [vmem:[#allocation7 + $0x14c] sm:$0xf]
        %v2786 = vld [vmem:[#allocation7 + $0x150] sm:$0xf]
        %v2787 = vld [vmem:[#allocation7 + $0x154] sm:$0xf]
        %v2788 = vld [vmem:[#allocation7 + $0x158] sm:$0xf]
        %v2789 = vld [vmem:[#allocation7 + $0x15c] sm:$0xf]
        %v2790 = vld [vmem:[#allocation7 + $0x160] sm:$0xf]
        %v2791 = vld [vmem:[#allocation7 + $0x164] sm:$0xf]
        %v2792 = vld [vmem:[#allocation7 + $0x168] sm:$0xf]
        %v2793 = vld [vmem:[#allocation7 + $0x16c] sm:$0xf]
        %v2794 = vld [vmem:[#allocation7 + $0x170] sm:$0xf]
        %v2795 = vld [vmem:[#allocation7 + $0x174] sm:$0xf]
        %v2796 = vld [vmem:[#allocation7 + $0x178] sm:$0xf]
        %v2797 = vld [vmem:[#allocation7 + $0x17c] sm:$0xf]
        %v2798 = vld [vmem:[#allocation7 + $0x180] sm:$0xf]
        %v2799 = vld [vmem:[#allocation7 + $0x184] sm:$0xf]
        %v2800 = vld [vmem:[#allocation7 + $0x188] sm:$0xf]
        %v2801 = vld [vmem:[#allocation7 + $0x18c] sm:$0xf]
        %v2802 = vld [vmem:[#allocation7 + $0x190] sm:$0xf]
        %v2803 = vld [vmem:[#allocation7 + $0x194] sm:$0xf]
        %v2804 = vld [vmem:[#allocation7 + $0x198] sm:$0xf]
        %v2805 = vld [vmem:[#allocation7 + $0x19c] sm:$0xf]
        %v2806 = vld [vmem:[#allocation7 + $0x1a0] sm:$0xf]
        %v2807 = vld [vmem:[#allocation7 + $0x1a4] sm:$0xf]
        %v2808 = vld [vmem:[#allocation7 + $0x1a8] sm:$0xf]
        %v2809 = vld [vmem:[#allocation7 + $0x1ac] sm:$0xf]
        %v2810 = vld [vmem:[#allocation7 + $0x1b0] sm:$0xf]
        %v2811 = vld [vmem:[#allocation7 + $0x1b4] sm:$0xf]
        %v2812 = vld [vmem:[#allocation7 + $0x1b8] sm:$0xf]
        %v2813 = vld [vmem:[#allocation7 + $0x1bc] sm:$0xf]
        %v2814 = vld [vmem:[#allocation7 + $0x1c0] sm:$0xf]
        %v2815 = vld [vmem:[#allocation7 + $0x1c4] sm:$0xf]
        %v2816 = vld [vmem:[#allocation7 + $0x1c8] sm:$0xf]
        %v2817 = vld [vmem:[#allocation7 + $0x1cc] sm:$0xf]
        %v2818 = vld [vmem:[#allocation7 + $0x1d0] sm:$0xf]
        %v2819 = vld [vmem:[#allocation7 + $0x1d4] sm:$0xf]
        %v2820 = vld [vmem:[#allocation7 + $0x1d8] sm:$0xf]
        %v2821 = vld [vmem:[#allocation7 + $0x1dc] sm:$0xf]
        %v2822 = vld [vmem:[#allocation7 + $0x1e0] sm:$0xf]
        %v2823 = vld [vmem:[#allocation7 + $0x1e4] sm:$0xf]
        %v2824 = vld [vmem:[#allocation7 + $0x1e8] sm:$0xf]
        %v2825 = vld [vmem:[#allocation7 + $0x1ec] sm:$0xf]
        %v2826 = vld [vmem:[#allocation7 + $0x1f0] sm:$0xf]
        %v2827 = vld [vmem:[#allocation7 + $0x1f4] sm:$0xf]
        %v2828 = vld [vmem:[#allocation7 + $0x1f8] sm:$0xf]
        %v2829 = vld [vmem:[#allocation7 + $0x1fc] sm:$0xf]
        %v2830 = vld [vmem:[#allocation7 + $0x200] sm:$0xf]
        %v2831 = vld [vmem:[#allocation7 + $0x204] sm:$0xf]
        %v2832 = vld [vmem:[#allocation7 + $0x208] sm:$0xf]
        %v2833 = vld [vmem:[#allocation7 + $0x20c] sm:$0xf]
        %v2834 = vld [vmem:[#allocation7 + $0x210] sm:$0xf]
        %v2835 = vld [vmem:[#allocation7 + $0x214] sm:$0xf]
        %v2836 = vld [vmem:[#allocation7 + $0x218] sm:$0xf]
        %v2837 = vld [vmem:[#allocation7 + $0x21c] sm:$0xf]
        %v2838 = vld [vmem:[#allocation7 + $0x220] sm:$0xf]
        %v2839 = vld [vmem:[#allocation7 + $0x224] sm:$0xf]
        %v2840 = vld [vmem:[#allocation7 + $0x228] sm:$0xf]
        %v2841 = vld [vmem:[#allocation7 + $0x22c] sm:$0xf]
        %v2842 = vld [vmem:[#allocation7 + $0x230] sm:$0xf]
        %v2843 = vld [vmem:[#allocation7 + $0x234] sm:$0xf]
        %v2844 = vld [vmem:[#allocation7 + $0x238] sm:$0xf]
        %v2845 = vld [vmem:[#allocation7 + $0x23c] sm:$0xf]
        %v2846 = vperm.slane %v313, 2
        %v2991 = vunpack.c.l.b16 %v2702
        %v2992 = vunpack.c.l.b16 %v2703
        %v2993 = vunpack.c.l.b16 %v2704
        %v2994 = vunpack.c.l.b16 %v2705
        %v2995 = vunpack.c.l.b16 %v2706
        %v2996 = vunpack.c.l.b16 %v2707
        %v2997 = vunpack.c.l.b16 %v2708
        %v2998 = vunpack.c.l.b16 %v2709
        %v2999 = vunpack.c.l.b16 %v2710
        %v3000 = vunpack.c.l.b16 %v2711
        %v3001 = vunpack.c.l.b16 %v2712
        %v3002 = vunpack.c.l.b16 %v2713
        %v3003 = vunpack.c.l.b16 %v2714
        %v3004 = vunpack.c.l.b16 %v2715
        %v3005 = vunpack.c.l.b16 %v2716
        %v3006 = vunpack.c.l.b16 %v2717
        %v3007 = vunpack.c.l.b16 %v2718
        %v3008 = vunpack.c.l.b16 %v2719
        %v3009 = vunpack.c.l.b16 %v2720
        %v3010 = vunpack.c.l.b16 %v2721
        %v3011 = vunpack.c.l.b16 %v2722
        %v3012 = vunpack.c.l.b16 %v2723
        %v3013 = vunpack.c.l.b16 %v2724
        %v3014 = vunpack.c.l.b16 %v2725
        %v3015 = vunpack.c.l.b16 %v2726
        %v3016 = vunpack.c.l.b16 %v2727
        %v3017 = vunpack.c.l.b16 %v2728
        %v3018 = vunpack.c.l.b16 %v2729
        %v3019 = vunpack.c.l.b16 %v2730
        %v3020 = vunpack.c.l.b16 %v2731
        %v3021 = vunpack.c.l.b16 %v2732
        %v3022 = vunpack.c.l.b16 %v2733
        %v3023 = vunpack.c.l.b16 %v2734
        %v3024 = vunpack.c.l.b16 %v2735
        %v3025 = vunpack.c.l.b16 %v2736
        %v3026 = vunpack.c.l.b16 %v2737
        %v3027 = vunpack.c.l.b16 %v2738
        %v3028 = vunpack.c.l.b16 %v2739
        %v3029 = vunpack.c.l.b16 %v2740
        %v3030 = vunpack.c.l.b16 %v2741
        %v3031 = vunpack.c.l.b16 %v2742
        %v3032 = vunpack.c.l.b16 %v2743
        %v3033 = vunpack.c.l.b16 %v2744
        %v3034 = vunpack.c.l.b16 %v2745
        %v3035 = vunpack.c.l.b16 %v2746
        %v3036 = vunpack.c.l.b16 %v2747
        %v3037 = vunpack.c.l.b16 %v2748
        %v3038 = vunpack.c.l.b16 %v2749
        %v3039 = vunpack.c.l.b16 %v2750
        %v3040 = vunpack.c.l.b16 %v2751
        %v3041 = vunpack.c.l.b16 %v2752
        %v3042 = vunpack.c.l.b16 %v2753
        %v3043 = vunpack.c.l.b16 %v2754
        %v3044 = vunpack.c.l.b16 %v2755
        %v3045 = vunpack.c.l.b16 %v2756
        %v3046 = vunpack.c.l.b16 %v2757
        %v3047 = vunpack.c.l.b16 %v2758
        %v3048 = vunpack.c.l.b16 %v2759
        %v3049 = vunpack.c.l.b16 %v2760
        %v3050 = vunpack.c.l.b16 %v2761
        %v3051 = vunpack.c.l.b16 %v2762
        %v3052 = vunpack.c.l.b16 %v2763
        %v3053 = vunpack.c.l.b16 %v2764
        %v3054 = vunpack.c.l.b16 %v2765
        %v3055 = vunpack.c.l.b16 %v2766
        %v3056 = vunpack.c.l.b16 %v2767
        %v3057 = vunpack.c.l.b16 %v2768
        %v3058 = vunpack.c.l.b16 %v2769
        %v3059 = vunpack.c.l.b16 %v2770
        %v3060 = vunpack.c.l.b16 %v2771
        %v3061 = vunpack.c.l.b16 %v2772
        %v3062 = vunpack.c.l.b16 %v2773
        %v3063 = vunpack.c.l.b16 %v2774
        %v3064 = vunpack.c.l.b16 %v2775
        %v3065 = vunpack.c.l.b16 %v2776
        %v3066 = vunpack.c.l.b16 %v2777
        %v3067 = vunpack.c.l.b16 %v2778
        %v3068 = vunpack.c.l.b16 %v2779
        %v3069 = vunpack.c.l.b16 %v2780
        %v3070 = vunpack.c.l.b16 %v2781
        %v3071 = vunpack.c.l.b16 %v2782
        %v3072 = vunpack.c.l.b16 %v2783
        %v3073 = vunpack.c.l.b16 %v2784
        %v3074 = vunpack.c.l.b16 %v2785
        %v3075 = vunpack.c.l.b16 %v2786
        %v3076 = vunpack.c.l.b16 %v2787
        %v3077 = vunpack.c.l.b16 %v2788
        %v3078 = vunpack.c.l.b16 %v2789
        %v3079 = vunpack.c.l.b16 %v2790
        %v3080 = vunpack.c.l.b16 %v2791
        %v3081 = vunpack.c.l.b16 %v2792
        %v3082 = vunpack.c.l.b16 %v2793
        %v3083 = vunpack.c.l.b16 %v2794
        %v3084 = vunpack.c.l.b16 %v2795
        %v3085 = vunpack.c.l.b16 %v2796
        %v3086 = vunpack.c.l.b16 %v2797
        %v3087 = vunpack.c.l.b16 %v2798
        %v3088 = vunpack.c.l.b16 %v2799
        %v3089 = vunpack.c.l.b16 %v2800
        %v3090 = vunpack.c.l.b16 %v2801
        %v3091 = vunpack.c.l.b16 %v2802
        %v3092 = vunpack.c.l.b16 %v2803
        %v3093 = vunpack.c.l.b16 %v2804
        %v3094 = vunpack.c.l.b16 %v2805
        %v3095 = vunpack.c.l.b16 %v2806
        %v3096 = vunpack.c.l.b16 %v2807
        %v3097 = vunpack.c.l.b16 %v2808
        %v3098 = vunpack.c.l.b16 %v2809
        %v3099 = vunpack.c.l.b16 %v2810
        %v3100 = vunpack.c.l.b16 %v2811
        %v3101 = vunpack.c.l.b16 %v2812
        %v3102 = vunpack.c.l.b16 %v2813
        %v3103 = vunpack.c.l.b16 %v2814
        %v3104 = vunpack.c.l.b16 %v2815
        %v3105 = vunpack.c.l.b16 %v2816
        %v3106 = vunpack.c.l.b16 %v2817
        %v3107 = vunpack.c.l.b16 %v2818
        %v3108 = vunpack.c.l.b16 %v2819
        %v3109 = vunpack.c.l.b16 %v2820
        %v3110 = vunpack.c.l.b16 %v2821
        %v3111 = vunpack.c.l.b16 %v2822
        %v3112 = vunpack.c.l.b16 %v2823
        %v3113 = vunpack.c.l.b16 %v2824
        %v3114 = vunpack.c.l.b16 %v2825
        %v3115 = vunpack.c.l.b16 %v2826
        %v3116 = vunpack.c.l.b16 %v2827
        %v3117 = vunpack.c.l.b16 %v2828
        %v3118 = vunpack.c.l.b16 %v2829
        %v3119 = vunpack.c.l.b16 %v2830
        %v3120 = vunpack.c.l.b16 %v2831
        %v3121 = vunpack.c.l.b16 %v2832
        %v3122 = vunpack.c.l.b16 %v2833
        %v3123 = vunpack.c.l.b16 %v2834
        %v3124 = vunpack.c.l.b16 %v2835
        %v3125 = vunpack.c.l.b16 %v2836
        %v3126 = vunpack.c.l.b16 %v2837
        %v3127 = vunpack.c.l.b16 %v2838
        %v3128 = vunpack.c.l.b16 %v2839
        %v3129 = vunpack.c.l.b16 %v2840
        %v3130 = vunpack.c.l.b16 %v2841
        %v3131 = vunpack.c.l.b16 %v2842
        %v3132 = vunpack.c.l.b16 %v2843
        %v3133 = vunpack.c.l.b16 %v2844
        %v3134 = vunpack.c.l.b16 %v2845
        %v3135 = vpack.c.b16 %v2992, %v2991
        %v3136 = vpack.c.b16 %v2994, %v2993
        %v3137 = vpack.c.b16 %v2996, %v2995
        %v3138 = vpack.c.b16 %v2998, %v2997
        %v3139 = vpack.c.b16 %v3000, %v2999
        %v3140 = vpack.c.b16 %v3002, %v3001
        %v3141 = vpack.c.b16 %v3004, %v3003
        %v3142 = vpack.c.b16 %v3006, %v3005
        %v3143 = vpack.c.b16 %v3008, %v3007
        %v3144 = vpack.c.b16 %v3010, %v3009
        %v3145 = vpack.c.b16 %v3012, %v3011
        %v3146 = vpack.c.b16 %v3014, %v3013
        %v3147 = vpack.c.b16 %v3016, %v3015
        %v3148 = vpack.c.b16 %v3018, %v3017
        %v3149 = vpack.c.b16 %v3020, %v3019
        %v3150 = vpack.c.b16 %v3022, %v3021
        %v3151 = vpack.c.b16 %v3024, %v3023
        %v3152 = vpack.c.b16 %v3026, %v3025
        %v3153 = vpack.c.b16 %v3028, %v3027
        %v3154 = vpack.c.b16 %v3030, %v3029
        %v3155 = vpack.c.b16 %v3032, %v3031
        %v3156 = vpack.c.b16 %v3034, %v3033
        %v3157 = vpack.c.b16 %v3036, %v3035
        %v3158 = vpack.c.b16 %v3038, %v3037
        %v3159 = vpack.c.b16 %v3040, %v3039
        %v3160 = vpack.c.b16 %v3042, %v3041
        %v3161 = vpack.c.b16 %v3044, %v3043
        %v3162 = vpack.c.b16 %v3046, %v3045
        %v3163 = vpack.c.b16 %v3048, %v3047
        %v3164 = vpack.c.b16 %v3050, %v3049
        %v3165 = vpack.c.b16 %v3052, %v3051
        %v3166 = vpack.c.b16 %v3054, %v3053
        %v3167 = vpack.c.b16 %v3056, %v3055
        %v3168 = vpack.c.b16 %v3058, %v3057
        %v3169 = vpack.c.b16 %v3060, %v3059
        %v3170 = vpack.c.b16 %v3062, %v3061
        %v3171 = vpack.c.b16 %v3064, %v3063
        %v3172 = vpack.c.b16 %v3066, %v3065
        %v3173 = vpack.c.b16 %v3068, %v3067
        %v3174 = vpack.c.b16 %v3070, %v3069
        %v3175 = vpack.c.b16 %v3072, %v3071
        %v3176 = vpack.c.b16 %v3074, %v3073
        %v3177 = vpack.c.b16 %v3076, %v3075
        %v3178 = vpack.c.b16 %v3078, %v3077
        %v3179 = vpack.c.b16 %v3080, %v3079
        %v3180 = vpack.c.b16 %v3082, %v3081
        %v3181 = vpack.c.b16 %v3084, %v3083
        %v3182 = vpack.c.b16 %v3086, %v3085
        %v3183 = vpack.c.b16 %v3088, %v3087
        %v3184 = vpack.c.b16 %v3090, %v3089
        %v3185 = vpack.c.b16 %v3092, %v3091
        %v3186 = vpack.c.b16 %v3094, %v3093
        %v3187 = vpack.c.b16 %v3096, %v3095
        %v3188 = vpack.c.b16 %v3098, %v3097
        %v3189 = vpack.c.b16 %v3100, %v3099
        %v3190 = vpack.c.b16 %v3102, %v3101
        %v3191 = vpack.c.b16 %v3104, %v3103
        %v3192 = vpack.c.b16 %v3106, %v3105
        %v3193 = vpack.c.b16 %v3108, %v3107
        %v3194 = vpack.c.b16 %v3110, %v3109
        %v3195 = vpack.c.b16 %v3112, %v3111
        %v3196 = vpack.c.b16 %v3114, %v3113
        %v3197 = vpack.c.b16 %v3116, %v3115
        %v3198 = vpack.c.b16 %v3118, %v3117
        %v3199 = vpack.c.b16 %v3120, %v3119
        %v3200 = vpack.c.b16 %v3122, %v3121
        %v3201 = vpack.c.b16 %v3124, %v3123
        %v3202 = vpack.c.b16 %v3126, %v3125
        %v3203 = vpack.c.b16 %v3128, %v3127
        %v3204 = vpack.c.b16 %v3130, %v3129
        %v3205 = vpack.c.b16 %v3132, %v3131
        %v3206 = vpack.c.b16 %v3134, %v3133
        %3279 = vmatpush.bf16.msra.mxu0 %v3142
        %3280 = vmatpush.bf16.msra.mxu0 %v3141
        %3281 = vmatpush.bf16.msra.mxu0 %v3140
        %3282 = vmatpush.bf16.msra.mxu0 %v3139
        %3283 = vmatpush.bf16.msra.mxu0 %v3138
        %3284 = vmatpush.bf16.msra.mxu0 %v3137
        %3285 = vmatpush.bf16.msra.mxu0 %v3136
        %3286 = vmatpush.bf16.msra.mxu0 %v3135
        %3287 = vmatmul.bf16.gmra.mxu0 %v1137
        %v3288 = vpop.f32.mrf.mxu0
        %v3289 = vadd.f32 %v2846, %v3288
        %v3290 = vpop.f32.mrf.mxu0
        %v3291 = vadd.f32 %v2846, %v3290
        %3292 = vmatmul.bf16.gmra.mxu0 %v1138
        %v3293 = vpop.f32.mrf.mxu0
        %v3294 = vadd.f32 %v2846, %v3293
        %v3295 = vpop.f32.mrf.mxu0
        %v3296 = vadd.f32 %v2846, %v3295
        %3297 = vdwg.mxu0
        %3298 = vmatpush.bf16.msra.mxu0 %v3150
        %3299 = vmatpush.bf16.msra.mxu0 %v3149
        %3300 = vmatpush.bf16.msra.mxu0 %v3148
        %3301 = vmatpush.bf16.msra.mxu0 %v3147
        %3302 = vmatpush.bf16.msra.mxu0 %v3146
        %3303 = vmatpush.bf16.msra.mxu0 %v3145
        %3304 = vmatpush.bf16.msra.mxu0 %v3144
        %3305 = vmatpush.bf16.msra.mxu0 %v3143
        %3306 = vmatmul.bf16.gmra.mxu0 %v1325
        %v3307 = vpop.f32.mrf.mxu0
        %v3308 = vadd.f32 %v3289, %v3307
        %v3309 = vpop.f32.mrf.mxu0
        %v3310 = vadd.f32 %v3291, %v3309
        %3311 = vmatmul.bf16.gmra.mxu0 %v1326
        %v3312 = vpop.f32.mrf.mxu0
        %v3313 = vadd.f32 %v3294, %v3312
        %v3314 = vpop.f32.mrf.mxu0
        %v3315 = vadd.f32 %v3296, %v3314
        %3316 = vdwg.mxu0
        %3317 = vmatpush.bf16.msra.mxu0 %v3158
        %3318 = vmatpush.bf16.msra.mxu0 %v3157
        %3319 = vmatpush.bf16.msra.mxu0 %v3156
        %3320 = vmatpush.bf16.msra.mxu0 %v3155
        %3321 = vmatpush.bf16.msra.mxu0 %v3154
        %3322 = vmatpush.bf16.msra.mxu0 %v3153
        %3323 = vmatpush.bf16.msra.mxu0 %v3152
        %3324 = vmatpush.bf16.msra.mxu0 %v3151
        %3325 = vmatmul.bf16.gmra.mxu0 %v1520
        %v3326 = vpop.f32.mrf.mxu0
        %v3327 = vadd.f32 %v3308, %v3326
        %v3328 = vpop.f32.mrf.mxu0
        %v3329 = vadd.f32 %v3310, %v3328
        %3330 = vmatmul.bf16.gmra.mxu0 %v1521
        %v3331 = vpop.f32.mrf.mxu0
        %v3332 = vadd.f32 %v3313, %v3331
        %v3333 = vpop.f32.mrf.mxu0
        %v3334 = vadd.f32 %v3315, %v3333
        %3335 = vdwg.mxu0
        %3336 = vmatpush.bf16.msra.mxu0 %v3166
        %3337 = vmatpush.bf16.msra.mxu0 %v3165
        %3338 = vmatpush.bf16.msra.mxu0 %v3164
        %3339 = vmatpush.bf16.msra.mxu0 %v3163
        %3340 = vmatpush.bf16.msra.mxu0 %v3162
        %3341 = vmatpush.bf16.msra.mxu0 %v3161
        %3342 = vmatpush.bf16.msra.mxu0 %v3160
        %3343 = vmatpush.bf16.msra.mxu0 %v3159
        %3344 = vmatmul.bf16.gmra.mxu0 %v1740
        %v3345 = vpop.f32.mrf.mxu0
        %v3346 = vadd.f32 %v3327, %v3345
        %v3347 = vpop.f32.mrf.mxu0
        %v3348 = vadd.f32 %v3329, %v3347
        %3349 = vmatmul.bf16.gmra.mxu0 %v1741
        %v3350 = vpop.f32.mrf.mxu0
        %v3351 = vadd.f32 %v3332, %v3350
        %v3352 = vpop.f32.mrf.mxu0
        %v3353 = vadd.f32 %v3334, %v3352
        %3354 = vdwg.mxu0
        %3355 = vmatpush.bf16.msra.mxu0 %v3174
        %3356 = vmatpush.bf16.msra.mxu0 %v3173
        %3357 = vmatpush.bf16.msra.mxu0 %v3172
        %3358 = vmatpush.bf16.msra.mxu0 %v3171
        %3359 = vmatpush.bf16.msra.mxu0 %v3170
        %3360 = vmatpush.bf16.msra.mxu0 %v3169
        %3361 = vmatpush.bf16.msra.mxu0 %v3168
        %3362 = vmatpush.bf16.msra.mxu0 %v3167
        %3363 = vmatmul.bf16.gmra.mxu0 %v1928
        %v3364 = vpop.f32.mrf.mxu0
        %v3365 = vadd.f32 %v3346, %v3364
        %v3366 = vpop.f32.mrf.mxu0
        %v3367 = vadd.f32 %v3348, %v3366
        %3368 = vmatmul.bf16.gmra.mxu0 %v1929
        %v3369 = vpop.f32.mrf.mxu0
        %v3370 = vadd.f32 %v3351, %v3369
        %v3371 = vpop.f32.mrf.mxu0
        %v3372 = vadd.f32 %v3353, %v3371
        %3373 = vdwg.mxu0
        %3374 = vmatpush.bf16.msra.mxu0 %v3182
        %3375 = vmatpush.bf16.msra.mxu0 %v3181
        %3376 = vmatpush.bf16.msra.mxu0 %v3180
        %3377 = vmatpush.bf16.msra.mxu0 %v3179
        %3378 = vmatpush.bf16.msra.mxu0 %v3178
        %3379 = vmatpush.bf16.msra.mxu0 %v3177
        %3380 = vmatpush.bf16.msra.mxu0 %v3176
        %3381 = vmatpush.bf16.msra.mxu0 %v3175
        %3382 = vmatmul.bf16.gmra.mxu0 %v2124
        %v3383 = vpop.f32.mrf.mxu0
        %v3384 = vadd.f32 %v3365, %v3383
        %v3385 = vpop.f32.mrf.mxu0
        %v3386 = vadd.f32 %v3367, %v3385
        %3387 = vmatmul.bf16.gmra.mxu0 %v2125
        %v3388 = vpop.f32.mrf.mxu0
        %v3389 = vadd.f32 %v3370, %v3388
        %v3390 = vpop.f32.mrf.mxu0
        %v3391 = vadd.f32 %v3372, %v3390
        %3392 = vdwg.mxu0
        %3393 = vmatpush.bf16.msra.mxu0 %v3190
        %3394 = vmatpush.bf16.msra.mxu0 %v3189
        %3395 = vmatpush.bf16.msra.mxu0 %v3188
        %3396 = vmatpush.bf16.msra.mxu0 %v3187
        %3397 = vmatpush.bf16.msra.mxu0 %v3186
        %3398 = vmatpush.bf16.msra.mxu0 %v3185
        %3399 = vmatpush.bf16.msra.mxu0 %v3184
        %3400 = vmatpush.bf16.msra.mxu0 %v3183
        %3401 = vmatmul.bf16.gmra.mxu0 %v2320
        %v3402 = vpop.f32.mrf.mxu0
        %v3403 = vadd.f32 %v3384, %v3402
        %v3404 = vpop.f32.mrf.mxu0
        %v3405 = vadd.f32 %v3386, %v3404
        %3406 = vmatmul.bf16.gmra.mxu0 %v2321
        %v3407 = vpop.f32.mrf.mxu0
        %v3408 = vadd.f32 %v3389, %v3407
        %v3409 = vpop.f32.mrf.mxu0
        %v3410 = vadd.f32 %v3391, %v3409
        %3411 = vdwg.mxu0
        %3412 = vmatpush.bf16.msra.mxu0 %v3198
        %3413 = vmatpush.bf16.msra.mxu0 %v3197
        %3414 = vmatpush.bf16.msra.mxu0 %v3196
        %3415 = vmatpush.bf16.msra.mxu0 %v3195
        %3416 = vmatpush.bf16.msra.mxu0 %v3194
        %3417 = vmatpush.bf16.msra.mxu0 %v3193
        %3418 = vmatpush.bf16.msra.mxu0 %v3192
        %3419 = vmatpush.bf16.msra.mxu0 %v3191
        %3420 = vmatmul.bf16.gmra.mxu0 %v2508
        %v3421 = vpop.f32.mrf.mxu0
        %v3422 = vadd.f32 %v3403, %v3421
        %v3423 = vpop.f32.mrf.mxu0
        %v3424 = vadd.f32 %v3405, %v3423
        %3425 = vmatmul.bf16.gmra.mxu0 %v2509
        %v3426 = vpop.f32.mrf.mxu0
        %v3427 = vadd.f32 %v3408, %v3426
        %v3428 = vpop.f32.mrf.mxu0
        %v3429 = vadd.f32 %v3410, %v3428
        %3430 = vdwg.mxu0
        %3431 = vmatpush.bf16.msra.mxu0 %v3206
        %3432 = vmatpush.bf16.msra.mxu0 %v3205
        %3433 = vmatpush.bf16.msra.mxu0 %v3204
        %3434 = vmatpush.bf16.msra.mxu0 %v3203
        %3435 = vmatpush.bf16.msra.mxu0 %v3202
        %3436 = vmatpush.bf16.msra.mxu0 %v3201
        %3437 = vmatpush.bf16.msra.mxu0 %v3200
        %3438 = vmatpush.bf16.msra.mxu0 %v3199
        %3439 = vmatmul.bf16.gmra.mxu0 %v2698
        %v3440 = vpop.f32.mrf.mxu0
        %v3441 = vadd.f32 %v3422, %v3440
        %v3442 = vpop.f32.mrf.mxu0
        %v3443 = vadd.f32 %v3424, %v3442
        %3444 = vmatmul.bf16.gmra.mxu0 %v2699
        %v3445 = vpop.f32.mrf.mxu0
        %v3446 = vadd.f32 %v3427, %v3445
        %v3447 = vpop.f32.mrf.mxu0
        %v3448 = vadd.f32 %v3429, %v3447
        %3449 = vdwg.mxu0
        %vm3450 = vcmp.ge.f32.partialorder %v3441, 0.0
        %vm3451 = vcmp.ge.f32.partialorder %v3443, 0.0
        %vm3452 = vcmp.ge.f32.partialorder %v3446, 0.0
        %vm3453 = vcmp.ge.f32.partialorder %v3448, 0.0
        %v3454 = vperm.slane %v313, 3
        %v3455 = vmul.f32 %v3454, %v3441
        %v3456 = vmul.f32 %v3454, %v3443
        %v3457 = vmul.f32 %v3454, %v3446
        %v3458 = vmul.f32 %v3454, %v3448
        %v3459 = vsel %vm3450, %v3441, %v3455
        %v3460 = vsel %vm3451, %v3443, %v3456
        %v3461 = vsel %vm3452, %v3446, %v3457
        %v3462 = vsel %vm3453, %v3448, %v3458
        %v3479 = vrot.slane %v318, 6
        %v3480 = vrot.slane %v322, 6
        %v3481 = vrot.slane %v326, 6
        %v3482 = vrot.slane %v330, 6
        %v3483 = vrot.slane %v334, 6
        %v3484 = vrot.slane %v338, 6
        %v3485 = vrot.slane %v342, 6
        %v3486 = vrot.slane %v346, 6
        %vm3487 = vcmask 1041408
        %v3488 = vsel %vm3487, %v317, %v3479
        %vm3489 = vcmask 1043458
        %v3490 = vsel %vm3489, %v317, %v3479
        %v3491 = vrot.slane %v3490, 2
        %vm3492 = vcmask 1045508
        %v3493 = vsel %vm3492, %v317, %v3479
        %v3494 = vrot.slane %v3493, 4
        %vm3495 = vcmask 1045504
        %v3496 = vsel %vm3495, %v3479, %v317
        %v3497 = vrot.slane %v3496, 6
        %v3498 = vsel %vm3487, %v321, %v3480
        %v3499 = vsel %vm3489, %v321, %v3480
        %v3500 = vrot.slane %v3499, 2
        %v3501 = vsel %vm3492, %v321, %v3480
        %v3502 = vrot.slane %v3501, 4
        %v3503 = vsel %vm3495, %v3480, %v321
        %v3504 = vrot.slane %v3503, 6
        %v3505 = vsel %vm3487, %v325, %v3481
        %v3506 = vsel %vm3489, %v325, %v3481
        %v3507 = vrot.slane %v3506, 2
        %v3508 = vsel %vm3492, %v325, %v3481
        %v3509 = vrot.slane %v3508, 4
        %v3510 = vsel %vm3495, %v3481, %v325
        %v3511 = vrot.slane %v3510, 6
        %v3512 = vsel %vm3487, %v329, %v3482
        %v3513 = vsel %vm3489, %v329, %v3482
        %v3514 = vrot.slane %v3513, 2
        %v3515 = vsel %vm3492, %v329, %v3482
        %v3516 = vrot.slane %v3515, 4
        %v3517 = vsel %vm3495, %v3482, %v329
        %v3518 = vrot.slane %v3517, 6
        %v3519 = vsel %vm3487, %v333, %v3483
        %v3520 = vsel %vm3489, %v333, %v3483
        %v3521 = vrot.slane %v3520, 2
        %v3522 = vsel %vm3492, %v333, %v3483
        %v3523 = vrot.slane %v3522, 4
        %v3524 = vsel %vm3495, %v3483, %v333
        %v3525 = vrot.slane %v3524, 6
        %v3526 = vsel %vm3487, %v337, %v3484
        %v3527 = vsel %vm3489, %v337, %v3484
        %v3528 = vrot.slane %v3527, 2
        %v3529 = vsel %vm3492, %v337, %v3484
        %v3530 = vrot.slane %v3529, 4
        %v3531 = vsel %vm3495, %v3484, %v337
        %v3532 = vrot.slane %v3531, 6
        %v3533 = vsel %vm3487, %v341, %v3485
        %v3534 = vsel %vm3489, %v341, %v3485
        %v3535 = vrot.slane %v3534, 2
        %v3536 = vsel %vm3492, %v341, %v3485
        %v3537 = vrot.slane %v3536, 4
        %v3538 = vsel %vm3495, %v3485, %v341
        %v3539 = vrot.slane %v3538, 6
        %v3540 = vsel %vm3487, %v345, %v3486
        %v3541 = vsel %vm3489, %v345, %v3486
        %v3542 = vrot.slane %v3541, 2
        %v3543 = vsel %vm3492, %v345, %v3486
        %v3544 = vrot.slane %v3543, 4
        %v3545 = vsel %vm3495, %v3486, %v345
        %v3546 = vrot.slane %v3545, 6
        %v3547 = vpack.c.bf16 %v3459, %v3459
        %v3548 = vpack.c.bf16 %v3460, %v3460
        %v3549 = vpack.c.bf16 %v3461, %v3461
        %v3550 = vpack.c.bf16 %v3462, %v3462
        %v3551 = vperm.slane %v3488, 0
        %v3552 = vperm.slane %v3488, 2
        %v3553 = vperm.slane %v3491, 0
        %v3554 = vperm.slane %v3491, 2
        %v3555 = vperm.slane %v3494, 0
        %v3556 = vperm.slane %v3494, 2
        %v3557 = vperm.slane %v3497, 0
        %v3558 = vperm.slane %v3497, 2
        %v3559 = vperm.slane %v3498, 0
        %v3560 = vperm.slane %v3498, 2
        %v3561 = vperm.slane %v3500, 0
        %v3562 = vperm.slane %v3500, 2
        %v3563 = vperm.slane %v3502, 0
        %v3564 = vperm.slane %v3502, 2
        %v3565 = vperm.slane %v3504, 0
        %v3566 = vperm.slane %v3504, 2
        %v3567 = vperm.slane %v3505, 0
        %v3568 = vperm.slane %v3505, 2
        %v3569 = vperm.slane %v3507, 0
        %v3570 = vperm.slane %v3507, 2
        %v3571 = vperm.slane %v3509, 0
        %v3572 = vperm.slane %v3509, 2
        %v3573 = vperm.slane %v3511, 0
        %v3574 = vperm.slane %v3511, 2
        %v3575 = vperm.slane %v3512, 0
        %v3576 = vperm.slane %v3512, 2
        %v3577 = vperm.slane %v3514, 0
        %v3578 = vperm.slane %v3514, 2
        %v3579 = vperm.slane %v3516, 0
        %v3580 = vperm.slane %v3516, 2
        %v3581 = vperm.slane %v3518, 0
        %v3582 = vperm.slane %v3518, 2
        %v3583 = vperm.slane %v3519, 0
        %v3584 = vperm.slane %v3519, 2
        %v3585 = vperm.slane %v3521, 0
        %v3586 = vperm.slane %v3521, 2
        %v3587 = vperm.slane %v3523, 0
        %v3588 = vperm.slane %v3523, 2
        %v3589 = vperm.slane %v3525, 0
        %v3590 = vperm.slane %v3525, 2
        %v3591 = vperm.slane %v3526, 0
        %v3592 = vperm.slane %v3526, 2
        %v3593 = vperm.slane %v3528, 0
        %v3594 = vperm.slane %v3528, 2
        %v3595 = vperm.slane %v3530, 0
        %v3596 = vperm.slane %v3530, 2
        %v3597 = vperm.slane %v3532, 0
        %v3598 = vperm.slane %v3532, 2
        %v3599 = vperm.slane %v3533, 0
        %v3600 = vperm.slane %v3533, 2
        %v3601 = vperm.slane %v3535, 0
        %v3602 = vperm.slane %v3535, 2
        %v3603 = vperm.slane %v3537, 0
        %v3604 = vperm.slane %v3537, 2
        %v3605 = vperm.slane %v3539, 0
        %v3606 = vperm.slane %v3539, 2
        %v3607 = vperm.slane %v3540, 0
        %v3608 = vperm.slane %v3540, 2
        %v3609 = vperm.slane %v3542, 0
        %v3610 = vperm.slane %v3542, 2
        %v3611 = vperm.slane %v3544, 0
        %v3612 = vperm.slane %v3544, 2
        %v3613 = vperm.slane %v3546, 0
        %v3614 = vperm.slane %v3546, 2
        %v3679 = vpack.c.bf16 %v3552, %v3551
        %v3680 = vpack.c.bf16 %v3554, %v3553
        %v3681 = vpack.c.bf16 %v3556, %v3555
        %v3682 = vpack.c.bf16 %v3558, %v3557
        %v3683 = vpack.c.bf16 %v3560, %v3559
        %v3684 = vpack.c.bf16 %v3562, %v3561
        %v3685 = vpack.c.bf16 %v3564, %v3563
        %v3686 = vpack.c.bf16 %v3566, %v3565
        %v3687 = vpack.c.bf16 %v3568, %v3567
        %v3688 = vpack.c.bf16 %v3570, %v3569
        %v3689 = vpack.c.bf16 %v3572, %v3571
        %v3690 = vpack.c.bf16 %v3574, %v3573
        %v3691 = vpack.c.bf16 %v3576, %v3575
        %v3692 = vpack.c.bf16 %v3578, %v3577
        %v3693 = vpack.c.bf16 %v3580, %v3579
        %v3694 = vpack.c.bf16 %v3582, %v3581
        %v3695 = vpack.c.bf16 %v3584, %v3583
        %v3696 = vpack.c.bf16 %v3586, %v3585
        %v3697 = vpack.c.bf16 %v3588, %v3587
        %v3698 = vpack.c.bf16 %v3590, %v3589
        %v3699 = vpack.c.bf16 %v3592, %v3591
        %v3700 = vpack.c.bf16 %v3594, %v3593
        %v3701 = vpack.c.bf16 %v3596, %v3595
        %v3702 = vpack.c.bf16 %v3598, %v3597
        %v3703 = vpack.c.bf16 %v3600, %v3599
        %v3704 = vpack.c.bf16 %v3602, %v3601
        %v3705 = vpack.c.bf16 %v3604, %v3603
        %v3706 = vpack.c.bf16 %v3606, %v3605
        %v3707 = vpack.c.bf16 %v3608, %v3607
        %v3708 = vpack.c.bf16 %v3610, %v3609
        %v3709 = vpack.c.bf16 %v3612, %v3611
        %v3710 = vpack.c.bf16 %v3614, %v3613
        %v3715 = vunpack.c.l.b16 %v3547
        %v3716 = vunpack.c.l.b16 %v3548
        %v3717 = vunpack.c.l.b16 %v3549
        %v3718 = vunpack.c.l.b16 %v3550
        %v3719 = vpack.c.b16 %v3716, %v3715
        %v3720 = vpack.c.b16 %v3718, %v3717
        %v3755 = vunpack.c.l.b16 %v3679
        %v3756 = vunpack.c.h.b16 %v3679
        %v3757 = vunpack.c.l.b16 %v3680
        %v3758 = vunpack.c.h.b16 %v3680
        %v3759 = vunpack.c.l.b16 %v3681
        %v3760 = vunpack.c.h.b16 %v3681
        %v3761 = vunpack.c.l.b16 %v3682
        %v3762 = vunpack.c.h.b16 %v3682
        %v3763 = vunpack.c.l.b16 %v3683
        %v3764 = vunpack.c.h.b16 %v3683
        %v3765 = vunpack.c.l.b16 %v3684
        %v3766 = vunpack.c.h.b16 %v3684
        %v3767 = vunpack.c.l.b16 %v3685
        %v3768 = vunpack.c.h.b16 %v3685
        %v3769 = vunpack.c.l.b16 %v3686
        %v3770 = vunpack.c.h.b16 %v3686
        %v3771 = vunpack.c.l.b16 %v3687
        %v3772 = vunpack.c.h.b16 %v3687
        %v3773 = vunpack.c.l.b16 %v3688
        %v3774 = vunpack.c.h.b16 %v3688
        %v3775 = vunpack.c.l.b16 %v3689
        %v3776 = vunpack.c.h.b16 %v3689
        %v3777 = vunpack.c.l.b16 %v3690
        %v3778 = vunpack.c.h.b16 %v3690
        %v3779 = vunpack.c.l.b16 %v3691
        %v3780 = vunpack.c.h.b16 %v3691
        %v3781 = vunpack.c.l.b16 %v3692
        %v3782 = vunpack.c.h.b16 %v3692
        %v3783 = vunpack.c.l.b16 %v3693
        %v3784 = vunpack.c.h.b16 %v3693
        %v3785 = vunpack.c.l.b16 %v3694
        %v3786 = vunpack.c.h.b16 %v3694
        %v3787 = vunpack.c.l.b16 %v3695
        %v3788 = vunpack.c.h.b16 %v3695
        %v3789 = vunpack.c.l.b16 %v3696
        %v3790 = vunpack.c.h.b16 %v3696
        %v3791 = vunpack.c.l.b16 %v3697
        %v3792 = vunpack.c.h.b16 %v3697
        %v3793 = vunpack.c.l.b16 %v3698
        %v3794 = vunpack.c.h.b16 %v3698
        %v3795 = vunpack.c.l.b16 %v3699
        %v3796 = vunpack.c.h.b16 %v3699
        %v3797 = vunpack.c.l.b16 %v3700
        %v3798 = vunpack.c.h.b16 %v3700
        %v3799 = vunpack.c.l.b16 %v3701
        %v3800 = vunpack.c.h.b16 %v3701
        %v3801 = vunpack.c.l.b16 %v3702
        %v3802 = vunpack.c.h.b16 %v3702
        %v3803 = vunpack.c.l.b16 %v3703
        %v3804 = vunpack.c.h.b16 %v3703
        %v3805 = vunpack.c.l.b16 %v3704
        %v3806 = vunpack.c.h.b16 %v3704
        %v3807 = vunpack.c.l.b16 %v3705
        %v3808 = vunpack.c.h.b16 %v3705
        %v3809 = vunpack.c.l.b16 %v3706
        %v3810 = vunpack.c.h.b16 %v3706
        %v3811 = vunpack.c.l.b16 %v3707
        %v3812 = vunpack.c.h.b16 %v3707
        %v3813 = vunpack.c.l.b16 %v3708
        %v3814 = vunpack.c.h.b16 %v3708
        %v3815 = vunpack.c.l.b16 %v3709
        %v3816 = vunpack.c.h.b16 %v3709
        %v3817 = vunpack.c.l.b16 %v3710
        %v3818 = vunpack.c.h.b16 %v3710
        %v3819 = vpack.c.b16 %v3755, %v3755
        %v3820 = vpack.c.b16 %v3756, %v3756
        %v3821 = vpack.c.b16 %v3757, %v3757
        %v3822 = vpack.c.b16 %v3758, %v3758
        %v3823 = vpack.c.b16 %v3759, %v3759
        %v3824 = vpack.c.b16 %v3760, %v3760
        %v3825 = vpack.c.b16 %v3761, %v3761
        %v3826 = vpack.c.b16 %v3762, %v3762
        %v3827 = vpack.c.b16 %v3763, %v3763
        %v3828 = vpack.c.b16 %v3764, %v3764
        %v3829 = vpack.c.b16 %v3765, %v3765
        %v3830 = vpack.c.b16 %v3766, %v3766
        %v3831 = vpack.c.b16 %v3767, %v3767
        %v3832 = vpack.c.b16 %v3768, %v3768
        %v3833 = vpack.c.b16 %v3769, %v3769
        %v3834 = vpack.c.b16 %v3770, %v3770
        %v3835 = vpack.c.b16 %v3771, %v3771
        %v3836 = vpack.c.b16 %v3772, %v3772
        %v3837 = vpack.c.b16 %v3773, %v3773
        %v3838 = vpack.c.b16 %v3774, %v3774
        %v3839 = vpack.c.b16 %v3775, %v3775
        %v3840 = vpack.c.b16 %v3776, %v3776
        %v3841 = vpack.c.b16 %v3777, %v3777
        %v3842 = vpack.c.b16 %v3778, %v3778
        %v3843 = vpack.c.b16 %v3779, %v3779
        %v3844 = vpack.c.b16 %v3780, %v3780
        %v3845 = vpack.c.b16 %v3781, %v3781
        %v3846 = vpack.c.b16 %v3782, %v3782
        %v3847 = vpack.c.b16 %v3783, %v3783
        %v3848 = vpack.c.b16 %v3784, %v3784
        %v3849 = vpack.c.b16 %v3785, %v3785
        %v3850 = vpack.c.b16 %v3786, %v3786
        %v3851 = vpack.c.b16 %v3787, %v3787
        %v3852 = vpack.c.b16 %v3788, %v3788
        %v3853 = vpack.c.b16 %v3789, %v3789
        %v3854 = vpack.c.b16 %v3790, %v3790
        %v3855 = vpack.c.b16 %v3791, %v3791
        %v3856 = vpack.c.b16 %v3792, %v3792
        %v3857 = vpack.c.b16 %v3793, %v3793
        %v3858 = vpack.c.b16 %v3794, %v3794
        %v3859 = vpack.c.b16 %v3795, %v3795
        %v3860 = vpack.c.b16 %v3796, %v3796
        %v3861 = vpack.c.b16 %v3797, %v3797
        %v3862 = vpack.c.b16 %v3798, %v3798
        %v3863 = vpack.c.b16 %v3799, %v3799
        %v3864 = vpack.c.b16 %v3800, %v3800
        %v3865 = vpack.c.b16 %v3801, %v3801
        %v3866 = vpack.c.b16 %v3802, %v3802
        %v3867 = vpack.c.b16 %v3803, %v3803
        %v3868 = vpack.c.b16 %v3804, %v3804
        %v3869 = vpack.c.b16 %v3805, %v3805
        %v3870 = vpack.c.b16 %v3806, %v3806
        %v3871 = vpack.c.b16 %v3807, %v3807
        %v3872 = vpack.c.b16 %v3808, %v3808
        %v3873 = vpack.c.b16 %v3809, %v3809
        %v3874 = vpack.c.b16 %v3810, %v3810
        %v3875 = vpack.c.b16 %v3811, %v3811
        %v3876 = vpack.c.b16 %v3812, %v3812
        %v3877 = vpack.c.b16 %v3813, %v3813
        %v3878 = vpack.c.b16 %v3814, %v3814
        %v3879 = vpack.c.b16 %v3815, %v3815
        %v3880 = vpack.c.b16 %v3816, %v3816
        %v3881 = vpack.c.b16 %v3817, %v3817
        %v3882 = vpack.c.b16 %v3818, %v3818
        %v3883 = vunpack.c.l.b16 %v3819
        %v3884 = vunpack.c.l.b16 %v3820
        %v3885 = vunpack.c.l.b16 %v3821
        %v3886 = vunpack.c.l.b16 %v3822
        %v3887 = vunpack.c.l.b16 %v3823
        %v3888 = vunpack.c.l.b16 %v3824
        %v3889 = vunpack.c.l.b16 %v3825
        %v3890 = vunpack.c.l.b16 %v3826
        %v3891 = vunpack.c.l.b16 %v3827
        %v3892 = vunpack.c.l.b16 %v3828
        %v3893 = vunpack.c.l.b16 %v3829
        %v3894 = vunpack.c.l.b16 %v3830
        %v3895 = vunpack.c.l.b16 %v3831
        %v3896 = vunpack.c.l.b16 %v3832
        %v3897 = vunpack.c.l.b16 %v3833
        %v3898 = vunpack.c.l.b16 %v3834
        %v3899 = vunpack.c.l.b16 %v3835
        %v3900 = vunpack.c.l.b16 %v3836
        %v3901 = vunpack.c.l.b16 %v3837
        %v3902 = vunpack.c.l.b16 %v3838
        %v3903 = vunpack.c.l.b16 %v3839
        %v3904 = vunpack.c.l.b16 %v3840
        %v3905 = vunpack.c.l.b16 %v3841
        %v3906 = vunpack.c.l.b16 %v3842
        %v3907 = vunpack.c.l.b16 %v3843
        %v3908 = vunpack.c.l.b16 %v3844
        %v3909 = vunpack.c.l.b16 %v3845
        %v3910 = vunpack.c.l.b16 %v3846
        %v3911 = vunpack.c.l.b16 %v3847
        %v3912 = vunpack.c.l.b16 %v3848
        %v3913 = vunpack.c.l.b16 %v3849
        %v3914 = vunpack.c.l.b16 %v3850
        %v3915 = vunpack.c.l.b16 %v3851
        %v3916 = vunpack.c.l.b16 %v3852
        %v3917 = vunpack.c.l.b16 %v3853
        %v3918 = vunpack.c.l.b16 %v3854
        %v3919 = vunpack.c.l.b16 %v3855
        %v3920 = vunpack.c.l.b16 %v3856
        %v3921 = vunpack.c.l.b16 %v3857
        %v3922 = vunpack.c.l.b16 %v3858
        %v3923 = vunpack.c.l.b16 %v3859
        %v3924 = vunpack.c.l.b16 %v3860
        %v3925 = vunpack.c.l.b16 %v3861
        %v3926 = vunpack.c.l.b16 %v3862
        %v3927 = vunpack.c.l.b16 %v3863
        %v3928 = vunpack.c.l.b16 %v3864
        %v3929 = vunpack.c.l.b16 %v3865
        %v3930 = vunpack.c.l.b16 %v3866
        %v3931 = vunpack.c.l.b16 %v3867
        %v3932 = vunpack.c.l.b16 %v3868
        %v3933 = vunpack.c.l.b16 %v3869
        %v3934 = vunpack.c.l.b16 %v3870
        %v3935 = vunpack.c.l.b16 %v3871
        %v3936 = vunpack.c.l.b16 %v3872
        %v3937 = vunpack.c.l.b16 %v3873
        %v3938 = vunpack.c.l.b16 %v3874
        %v3939 = vunpack.c.l.b16 %v3875
        %v3940 = vunpack.c.l.b16 %v3876
        %v3941 = vunpack.c.l.b16 %v3877
        %v3942 = vunpack.c.l.b16 %v3878
        %v3943 = vunpack.c.l.b16 %v3879
        %v3944 = vunpack.c.l.b16 %v3880
        %v3945 = vunpack.c.l.b16 %v3881
        %v3946 = vunpack.c.l.b16 %v3882
        %v3947 = vrot.slane %v3885, 7
        %v3948 = vsel %vm1075, %v3947, %v3883
        %v3949 = vrot.slane %v3887, 6
        %v3950 = vsel %vm1078, %v3949, %v3948
        %v3951 = vrot.slane %v3889, 5
        %v3952 = vsel %vm1081, %v3951, %v3950
        %v3953 = vrot.slane %v3891, 4
        %v3954 = vsel %vm1084, %v3953, %v3952
        %v3955 = vrot.slane %v3893, 3
        %v3956 = vsel %vm1087, %v3955, %v3954
        %v3957 = vrot.slane %v3895, 2
        %v3958 = vsel %vm1090, %v3957, %v3956
        %v3959 = vrot.slane %v3897, 1
        %v3960 = vsel %vm1093, %v3959, %v3958
        %v3961 = vrot.slane %v3886, 7
        %v3962 = vsel %vm1075, %v3961, %v3884
        %v3963 = vrot.slane %v3888, 6
        %v3964 = vsel %vm1078, %v3963, %v3962
        %v3965 = vrot.slane %v3890, 5
        %v3966 = vsel %vm1081, %v3965, %v3964
        %v3967 = vrot.slane %v3892, 4
        %v3968 = vsel %vm1084, %v3967, %v3966
        %v3969 = vrot.slane %v3894, 3
        %v3970 = vsel %vm1087, %v3969, %v3968
        %v3971 = vrot.slane %v3896, 2
        %v3972 = vsel %vm1090, %v3971, %v3970
        %v3973 = vrot.slane %v3898, 1
        %v3974 = vsel %vm1093, %v3973, %v3972
        %v3975 = vrot.slane %v3901, 7
        %v3976 = vsel %vm1075, %v3975, %v3899
        %v3977 = vrot.slane %v3903, 6
        %v3978 = vsel %vm1078, %v3977, %v3976
        %v3979 = vrot.slane %v3905, 5
        %v3980 = vsel %vm1081, %v3979, %v3978
        %v3981 = vrot.slane %v3907, 4
        %v3982 = vsel %vm1084, %v3981, %v3980
        %v3983 = vrot.slane %v3909, 3
        %v3984 = vsel %vm1087, %v3983, %v3982
        %v3985 = vrot.slane %v3911, 2
        %v3986 = vsel %vm1090, %v3985, %v3984
        %v3987 = vrot.slane %v3913, 1
        %v3988 = vsel %vm1093, %v3987, %v3986
        %v3989 = vrot.slane %v3902, 7
        %v3990 = vsel %vm1075, %v3989, %v3900
        %v3991 = vrot.slane %v3904, 6
        %v3992 = vsel %vm1078, %v3991, %v3990
        %v3993 = vrot.slane %v3906, 5
        %v3994 = vsel %vm1081, %v3993, %v3992
        %v3995 = vrot.slane %v3908, 4
        %v3996 = vsel %vm1084, %v3995, %v3994
        %v3997 = vrot.slane %v3910, 3
        %v3998 = vsel %vm1087, %v3997, %v3996
        %v3999 = vrot.slane %v3912, 2
        %v4000 = vsel %vm1090, %v3999, %v3998
        %v4001 = vrot.slane %v3914, 1
        %v4002 = vsel %vm1093, %v4001, %v4000
        %v4003 = vrot.slane %v3917, 7
        %v4004 = vsel %vm1075, %v4003, %v3915
        %v4005 = vrot.slane %v3919, 6
        %v4006 = vsel %vm1078, %v4005, %v4004
        %v4007 = vrot.slane %v3921, 5
        %v4008 = vsel %vm1081, %v4007, %v4006
        %v4009 = vrot.slane %v3923, 4
        %v4010 = vsel %vm1084, %v4009, %v4008
        %v4011 = vrot.slane %v3925, 3
        %v4012 = vsel %vm1087, %v4011, %v4010
        %v4013 = vrot.slane %v3927, 2
        %v4014 = vsel %vm1090, %v4013, %v4012
        %v4015 = vrot.slane %v3929, 1
        %v4016 = vsel %vm1093, %v4015, %v4014
        %v4017 = vrot.slane %v3918, 7
        %v4018 = vsel %vm1075, %v4017, %v3916
        %v4019 = vrot.slane %v3920, 6
        %v4020 = vsel %vm1078, %v4019, %v4018
        %v4021 = vrot.slane %v3922, 5
        %v4022 = vsel %vm1081, %v4021, %v4020
        %v4023 = vrot.slane %v3924, 4
        %v4024 = vsel %vm1084, %v4023, %v4022
        %v4025 = vrot.slane %v3926, 3
        %v4026 = vsel %vm1087, %v4025, %v4024
        %v4027 = vrot.slane %v3928, 2
        %v4028 = vsel %vm1090, %v4027, %v4026
        %v4029 = vrot.slane %v3930, 1
        %v4030 = vsel %vm1093, %v4029, %v4028
        %v4031 = vrot.slane %v3933, 7
        %v4032 = vsel %vm1075, %v4031, %v3931
        %v4033 = vrot.slane %v3935, 6
        %v4034 = vsel %vm1078, %v4033, %v4032
        %v4035 = vrot.slane %v3937, 5
        %v4036 = vsel %vm1081, %v4035, %v4034
        %v4037 = vrot.slane %v3939, 4
        %v4038 = vsel %vm1084, %v4037, %v4036
        %v4039 = vrot.slane %v3941, 3
        %v4040 = vsel %vm1087, %v4039, %v4038
        %v4041 = vrot.slane %v3943, 2
        %v4042 = vsel %vm1090, %v4041, %v4040
        %v4043 = vrot.slane %v3945, 1
        %v4044 = vsel %vm1093, %v4043, %v4042
        %v4045 = vrot.slane %v3934, 7
        %v4046 = vsel %vm1075, %v4045, %v3932
        %v4047 = vrot.slane %v3936, 6
        %v4048 = vsel %vm1078, %v4047, %v4046
        %v4049 = vrot.slane %v3938, 5
        %v4050 = vsel %vm1081, %v4049, %v4048
        %v4051 = vrot.slane %v3940, 4
        %v4052 = vsel %vm1084, %v4051, %v4050
        %v4053 = vrot.slane %v3942, 3
        %v4054 = vsel %vm1087, %v4053, %v4052
        %v4055 = vrot.slane %v3944, 2
        %v4056 = vsel %vm1090, %v4055, %v4054
        %v4057 = vrot.slane %v3946, 1
        %v4058 = vsel %vm1093, %v4057, %v4056
        %v4059 = vpack.c.b16 %v3988, %v3960
        %v4060 = vpack.c.b16 %v4002, %v3974
        %v4061 = vpack.c.b16 %v4044, %v4016
        %v4062 = vpack.c.b16 %v4058, %v4030
        %v4067 = vld [vmem:[#allocation8] sm:$0xff]
        %v4068 = vld [vmem:[#allocation8 + $0x8] sm:$0xff]
        %v4069 = vld [vmem:[#allocation8 + $0x10] sm:$0xff]
        %v4070 = vld [vmem:[#allocation8 + $0x18] sm:$0xff]
        %v4071 = vld [vmem:[#allocation8 + $0x20] sm:$0xff]
        %v4072 = vld [vmem:[#allocation8 + $0x28] sm:$0xff]
        %v4073 = vld [vmem:[#allocation8 + $0x30] sm:$0xff]
        %v4074 = vld [vmem:[#allocation8 + $0x38] sm:$0xff]
        %v4075 = vld [vmem:[#allocation8 + $0x40] sm:$0xff]
        %v4076 = vld [vmem:[#allocation8 + $0x48] sm:$0xff]
        %v4077 = vld [vmem:[#allocation8 + $0x50] sm:$0xff]
        %v4078 = vld [vmem:[#allocation8 + $0x58] sm:$0xff]
        %v4079 = vld [vmem:[#allocation8 + $0x60] sm:$0xff]
        %v4080 = vld [vmem:[#allocation8 + $0x68] sm:$0xff]
        %v4081 = vld [vmem:[#allocation8 + $0x70] sm:$0xff]
        %v4082 = vld [vmem:[#allocation8 + $0x78] sm:$0xff]
        %v4083 = vld [vmem:[#allocation8 + $0x80] sm:$0xff]
        %v4084 = vld [vmem:[#allocation8 + $0x88] sm:$0xff]
        %v4085 = vld [vmem:[#allocation8 + $0x90] sm:$0xff]
        %v4086 = vld [vmem:[#allocation8 + $0x98] sm:$0xff]
        %v4087 = vld [vmem:[#allocation8 + $0xa0] sm:$0xff]
        %v4088 = vld [vmem:[#allocation8 + $0xa8] sm:$0xff]
        %v4089 = vld [vmem:[#allocation8 + $0xb0] sm:$0xff]
        %v4090 = vld [vmem:[#allocation8 + $0xb8] sm:$0xff]
        %v4091 = vld [vmem:[#allocation8 + $0xc0] sm:$0xff]
        %v4092 = vld [vmem:[#allocation8 + $0xc8] sm:$0xff]
        %v4093 = vld [vmem:[#allocation8 + $0xd0] sm:$0xff]
        %v4094 = vld [vmem:[#allocation8 + $0xd8] sm:$0xff]
        %v4095 = vld [vmem:[#allocation8 + $0xe0] sm:$0xff]
        %v4096 = vld [vmem:[#allocation8 + $0xe8] sm:$0xff]
        %v4097 = vld [vmem:[#allocation8 + $0xf0] sm:$0xff]
        %v4098 = vld [vmem:[#allocation8 + $0xf8] sm:$0xff]
        %v4099 = vld [vmem:[#allocation8 + $0x100] sm:$0xff]
        %v4100 = vld [vmem:[#allocation8 + $0x108] sm:$0xff]
        %v4101 = vld [vmem:[#allocation8 + $0x110] sm:$0xff]
        %v4102 = vld [vmem:[#allocation8 + $0x118] sm:$0xff]
        %v4103 = vld [vmem:[#allocation8 + $0x120] sm:$0xff]
        %v4104 = vld [vmem:[#allocation8 + $0x128] sm:$0xff]
        %v4105 = vld [vmem:[#allocation8 + $0x130] sm:$0xff]
        %v4106 = vld [vmem:[#allocation8 + $0x138] sm:$0xff]
        %v4107 = vld [vmem:[#allocation8 + $0x140] sm:$0xff]
        %v4108 = vld [vmem:[#allocation8 + $0x148] sm:$0xff]
        %v4109 = vld [vmem:[#allocation8 + $0x150] sm:$0xff]
        %v4110 = vld [vmem:[#allocation8 + $0x158] sm:$0xff]
        %v4111 = vld [vmem:[#allocation8 + $0x160] sm:$0xff]
        %v4112 = vld [vmem:[#allocation8 + $0x168] sm:$0xff]
        %v4113 = vld [vmem:[#allocation8 + $0x170] sm:$0xff]
        %v4114 = vld [vmem:[#allocation8 + $0x178] sm:$0xff]
        %v4115 = vld [vmem:[#allocation8 + $0x180] sm:$0xff]
        %v4116 = vld [vmem:[#allocation8 + $0x188] sm:$0xff]
        %v4117 = vld [vmem:[#allocation8 + $0x190] sm:$0xff]
        %v4118 = vld [vmem:[#allocation8 + $0x198] sm:$0xff]
        %v4119 = vld [vmem:[#allocation8 + $0x1a0] sm:$0xff]
        %v4120 = vld [vmem:[#allocation8 + $0x1a8] sm:$0xff]
        %v4121 = vld [vmem:[#allocation8 + $0x1b0] sm:$0xff]
        %v4122 = vld [vmem:[#allocation8 + $0x1b8] sm:$0xff]
        %v4123 = vld [vmem:[#allocation8 + $0x1c0] sm:$0xff]
        %v4124 = vld [vmem:[#allocation8 + $0x1c8] sm:$0xff]
        %v4125 = vld [vmem:[#allocation8 + $0x1d0] sm:$0xff]
        %v4126 = vld [vmem:[#allocation8 + $0x1d8] sm:$0xff]
        %v4127 = vld [vmem:[#allocation8 + $0x1e0] sm:$0xff]
        %v4128 = vld [vmem:[#allocation8 + $0x1e8] sm:$0xff]
        %v4129 = vld [vmem:[#allocation8 + $0x1f0] sm:$0xff]
        %v4130 = vld [vmem:[#allocation8 + $0x1f8] sm:$0xff]
        %v4131 = vld [vmem:[#allocation8 + $0x200] sm:$0xff]
        %v4132 = vld [vmem:[#allocation8 + $0x208] sm:$0xff]
        %v4133 = vld [vmem:[#allocation8 + $0x210] sm:$0xff]
        %v4134 = vld [vmem:[#allocation8 + $0x218] sm:$0xff]
        %v4135 = vld [vmem:[#allocation8 + $0x220] sm:$0xff]
        %v4136 = vld [vmem:[#allocation8 + $0x228] sm:$0xff]
        %v4137 = vld [vmem:[#allocation8 + $0x230] sm:$0xff]
        %v4138 = vld [vmem:[#allocation8 + $0x238] sm:$0xff]
        %v4139 = vld [vmem:[#allocation8 + $0x240] sm:$0xff]
        %v4140 = vld [vmem:[#allocation8 + $0x248] sm:$0xff]
        %v4141 = vld [vmem:[#allocation8 + $0x250] sm:$0xff]
        %v4142 = vld [vmem:[#allocation8 + $0x258] sm:$0xff]
        %v4143 = vld [vmem:[#allocation8 + $0x260] sm:$0xff]
        %v4144 = vld [vmem:[#allocation8 + $0x268] sm:$0xff]
        %v4145 = vld [vmem:[#allocation8 + $0x270] sm:$0xff]
        %v4146 = vld [vmem:[#allocation8 + $0x278] sm:$0xff]
        %v4147 = vld [vmem:[#allocation8 + $0x280] sm:$0xff]
        %v4148 = vld [vmem:[#allocation8 + $0x288] sm:$0xff]
        %v4149 = vld [vmem:[#allocation8 + $0x290] sm:$0xff]
        %v4150 = vld [vmem:[#allocation8 + $0x298] sm:$0xff]
        %v4151 = vld [vmem:[#allocation8 + $0x2a0] sm:$0xff]
        %v4152 = vld [vmem:[#allocation8 + $0x2a8] sm:$0xff]
        %v4153 = vld [vmem:[#allocation8 + $0x2b0] sm:$0xff]
        %v4154 = vld [vmem:[#allocation8 + $0x2b8] sm:$0xff]
        %v4155 = vld [vmem:[#allocation8 + $0x2c0] sm:$0xff]
        %v4156 = vld [vmem:[#allocation8 + $0x2c8] sm:$0xff]
        %v4157 = vld [vmem:[#allocation8 + $0x2d0] sm:$0xff]
        %v4158 = vld [vmem:[#allocation8 + $0x2d8] sm:$0xff]
        %v4159 = vld [vmem:[#allocation8 + $0x2e0] sm:$0xff]
        %v4160 = vld [vmem:[#allocation8 + $0x2e8] sm:$0xff]
        %v4161 = vld [vmem:[#allocation8 + $0x2f0] sm:$0xff]
        %v4162 = vld [vmem:[#allocation8 + $0x2f8] sm:$0xff]
        %v4163 = vperm.slane %v313, 4
        %v4164 = vperm.slane %v314, 4
        %v4165 = vperm.slane %v315, 4
        %v4166 = vperm.slane %v316, 4
        %v4263 = vunpack.c.l.b16 %v4067
        %v4264 = vunpack.c.h.b16 %v4067
        %v4265 = vunpack.c.l.b16 %v4068
        %v4266 = vunpack.c.h.b16 %v4068
        %v4267 = vunpack.c.l.b16 %v4069
        %v4268 = vunpack.c.h.b16 %v4069
        %v4269 = vunpack.c.l.b16 %v4070
        %v4270 = vunpack.c.h.b16 %v4070
        %v4271 = vunpack.c.l.b16 %v4071
        %v4272 = vunpack.c.h.b16 %v4071
        %v4273 = vunpack.c.l.b16 %v4072
        %v4274 = vunpack.c.h.b16 %v4072
        %v4275 = vunpack.c.l.b16 %v4073
        %v4276 = vunpack.c.h.b16 %v4073
        %v4277 = vunpack.c.l.b16 %v4074
        %v4278 = vunpack.c.h.b16 %v4074
        %v4279 = vunpack.c.l.b16 %v4075
        %v4280 = vunpack.c.h.b16 %v4075
        %v4281 = vunpack.c.l.b16 %v4076
        %v4282 = vunpack.c.h.b16 %v4076
        %v4283 = vunpack.c.l.b16 %v4077
        %v4284 = vunpack.c.h.b16 %v4077
        %v4285 = vunpack.c.l.b16 %v4078
        %v4286 = vunpack.c.h.b16 %v4078
        %v4287 = vunpack.c.l.b16 %v4079
        %v4288 = vunpack.c.h.b16 %v4079
        %v4289 = vunpack.c.l.b16 %v4080
        %v4290 = vunpack.c.h.b16 %v4080
        %v4291 = vunpack.c.l.b16 %v4081
        %v4292 = vunpack.c.h.b16 %v4081
        %v4293 = vunpack.c.l.b16 %v4082
        %v4294 = vunpack.c.h.b16 %v4082
        %v4295 = vunpack.c.l.b16 %v4083
        %v4296 = vunpack.c.h.b16 %v4083
        %v4297 = vunpack.c.l.b16 %v4084
        %v4298 = vunpack.c.h.b16 %v4084
        %v4299 = vunpack.c.l.b16 %v4085
        %v4300 = vunpack.c.h.b16 %v4085
        %v4301 = vunpack.c.l.b16 %v4086
        %v4302 = vunpack.c.h.b16 %v4086
        %v4303 = vunpack.c.l.b16 %v4087
        %v4304 = vunpack.c.h.b16 %v4087
        %v4305 = vunpack.c.l.b16 %v4088
        %v4306 = vunpack.c.h.b16 %v4088
        %v4307 = vunpack.c.l.b16 %v4089
        %v4308 = vunpack.c.h.b16 %v4089
        %v4309 = vunpack.c.l.b16 %v4090
        %v4310 = vunpack.c.h.b16 %v4090
        %v4311 = vunpack.c.l.b16 %v4091
        %v4312 = vunpack.c.h.b16 %v4091
        %v4313 = vunpack.c.l.b16 %v4092
        %v4314 = vunpack.c.h.b16 %v4092
        %v4315 = vunpack.c.l.b16 %v4093
        %v4316 = vunpack.c.h.b16 %v4093
        %v4317 = vunpack.c.l.b16 %v4094
        %v4318 = vunpack.c.h.b16 %v4094
        %v4319 = vunpack.c.l.b16 %v4095
        %v4320 = vunpack.c.h.b16 %v4095
        %v4321 = vunpack.c.l.b16 %v4096
        %v4322 = vunpack.c.h.b16 %v4096
        %v4323 = vunpack.c.l.b16 %v4097
        %v4324 = vunpack.c.h.b16 %v4097
        %v4325 = vunpack.c.l.b16 %v4098
        %v4326 = vunpack.c.h.b16 %v4098
        %v4327 = vunpack.c.l.b16 %v4099
        %v4328 = vunpack.c.h.b16 %v4099
        %v4329 = vunpack.c.l.b16 %v4100
        %v4330 = vunpack.c.h.b16 %v4100
        %v4331 = vunpack.c.l.b16 %v4101
        %v4332 = vunpack.c.h.b16 %v4101
        %v4333 = vunpack.c.l.b16 %v4102
        %v4334 = vunpack.c.h.b16 %v4102
        %v4335 = vunpack.c.l.b16 %v4103
        %v4336 = vunpack.c.h.b16 %v4103
        %v4337 = vunpack.c.l.b16 %v4104
        %v4338 = vunpack.c.h.b16 %v4104
        %v4339 = vunpack.c.l.b16 %v4105
        %v4340 = vunpack.c.h.b16 %v4105
        %v4341 = vunpack.c.l.b16 %v4106
        %v4342 = vunpack.c.h.b16 %v4106
        %v4343 = vunpack.c.l.b16 %v4107
        %v4344 = vunpack.c.h.b16 %v4107
        %v4345 = vunpack.c.l.b16 %v4108
        %v4346 = vunpack.c.h.b16 %v4108
        %v4347 = vunpack.c.l.b16 %v4109
        %v4348 = vunpack.c.h.b16 %v4109
        %v4349 = vunpack.c.l.b16 %v4110
        %v4350 = vunpack.c.h.b16 %v4110
        %v4351 = vunpack.c.l.b16 %v4111
        %v4352 = vunpack.c.h.b16 %v4111
        %v4353 = vunpack.c.l.b16 %v4112
        %v4354 = vunpack.c.h.b16 %v4112
        %v4355 = vunpack.c.l.b16 %v4113
        %v4356 = vunpack.c.h.b16 %v4113
        %v4357 = vunpack.c.l.b16 %v4114
        %v4358 = vunpack.c.h.b16 %v4114
        %v4359 = vunpack.c.l.b16 %v4115
        %v4360 = vunpack.c.h.b16 %v4115
        %v4361 = vunpack.c.l.b16 %v4116
        %v4362 = vunpack.c.h.b16 %v4116
        %v4363 = vunpack.c.l.b16 %v4117
        %v4364 = vunpack.c.h.b16 %v4117
        %v4365 = vunpack.c.l.b16 %v4118
        %v4366 = vunpack.c.h.b16 %v4118
        %v4367 = vunpack.c.l.b16 %v4119
        %v4368 = vunpack.c.h.b16 %v4119
        %v4369 = vunpack.c.l.b16 %v4120
        %v4370 = vunpack.c.h.b16 %v4120
        %v4371 = vunpack.c.l.b16 %v4121
        %v4372 = vunpack.c.h.b16 %v4121
        %v4373 = vunpack.c.l.b16 %v4122
        %v4374 = vunpack.c.h.b16 %v4122
        %v4375 = vunpack.c.l.b16 %v4123
        %v4376 = vunpack.c.h.b16 %v4123
        %v4377 = vunpack.c.l.b16 %v4124
        %v4378 = vunpack.c.h.b16 %v4124
        %v4379 = vunpack.c.l.b16 %v4125
        %v4380 = vunpack.c.h.b16 %v4125
        %v4381 = vunpack.c.l.b16 %v4126
        %v4382 = vunpack.c.h.b16 %v4126
        %v4383 = vunpack.c.l.b16 %v4127
        %v4384 = vunpack.c.h.b16 %v4127
        %v4385 = vunpack.c.l.b16 %v4128
        %v4386 = vunpack.c.h.b16 %v4128
        %v4387 = vunpack.c.l.b16 %v4129
        %v4388 = vunpack.c.h.b16 %v4129
        %v4389 = vunpack.c.l.b16 %v4130
        %v4390 = vunpack.c.h.b16 %v4130
        %v4391 = vunpack.c.l.b16 %v4131
        %v4392 = vunpack.c.h.b16 %v4131
        %v4393 = vunpack.c.l.b16 %v4132
        %v4394 = vunpack.c.h.b16 %v4132
        %v4395 = vunpack.c.l.b16 %v4133
        %v4396 = vunpack.c.h.b16 %v4133
        %v4397 = vunpack.c.l.b16 %v4134
        %v4398 = vunpack.c.h.b16 %v4134
        %v4399 = vunpack.c.l.b16 %v4135
        %v4400 = vunpack.c.h.b16 %v4135
        %v4401 = vunpack.c.l.b16 %v4136
        %v4402 = vunpack.c.h.b16 %v4136
        %v4403 = vunpack.c.l.b16 %v4137
        %v4404 = vunpack.c.h.b16 %v4137
        %v4405 = vunpack.c.l.b16 %v4138
        %v4406 = vunpack.c.h.b16 %v4138
        %v4407 = vunpack.c.l.b16 %v4139
        %v4408 = vunpack.c.h.b16 %v4139
        %v4409 = vunpack.c.l.b16 %v4140
        %v4410 = vunpack.c.h.b16 %v4140
        %v4411 = vunpack.c.l.b16 %v4141
        %v4412 = vunpack.c.h.b16 %v4141
        %v4413 = vunpack.c.l.b16 %v4142
        %v4414 = vunpack.c.h.b16 %v4142
        %v4415 = vunpack.c.l.b16 %v4143
        %v4416 = vunpack.c.h.b16 %v4143
        %v4417 = vunpack.c.l.b16 %v4144
        %v4418 = vunpack.c.h.b16 %v4144
        %v4419 = vunpack.c.l.b16 %v4145
        %v4420 = vunpack.c.h.b16 %v4145
        %v4421 = vunpack.c.l.b16 %v4146
        %v4422 = vunpack.c.h.b16 %v4146
        %v4423 = vunpack.c.l.b16 %v4147
        %v4424 = vunpack.c.h.b16 %v4147
        %v4425 = vunpack.c.l.b16 %v4148
        %v4426 = vunpack.c.h.b16 %v4148
        %v4427 = vunpack.c.l.b16 %v4149
        %v4428 = vunpack.c.h.b16 %v4149
        %v4429 = vunpack.c.l.b16 %v4150
        %v4430 = vunpack.c.h.b16 %v4150
        %v4431 = vunpack.c.l.b16 %v4151
        %v4432 = vunpack.c.h.b16 %v4151
        %v4433 = vunpack.c.l.b16 %v4152
        %v4434 = vunpack.c.h.b16 %v4152
        %v4435 = vunpack.c.l.b16 %v4153
        %v4436 = vunpack.c.h.b16 %v4153
        %v4437 = vunpack.c.l.b16 %v4154
        %v4438 = vunpack.c.h.b16 %v4154
        %v4439 = vunpack.c.l.b16 %v4155
        %v4440 = vunpack.c.h.b16 %v4155
        %v4441 = vunpack.c.l.b16 %v4156
        %v4442 = vunpack.c.h.b16 %v4156
        %v4443 = vunpack.c.l.b16 %v4157
        %v4444 = vunpack.c.h.b16 %v4157
        %v4445 = vunpack.c.l.b16 %v4158
        %v4446 = vunpack.c.h.b16 %v4158
        %v4447 = vunpack.c.l.b16 %v4159
        %v4448 = vunpack.c.h.b16 %v4159
        %v4449 = vunpack.c.l.b16 %v4160
        %v4450 = vunpack.c.h.b16 %v4160
        %v4451 = vunpack.c.l.b16 %v4161
        %v4452 = vunpack.c.h.b16 %v4161
        %v4453 = vunpack.c.l.b16 %v4162
        %v4454 = vunpack.c.h.b16 %v4162
        %v4455 = vpack.c.b16 %v4267, %v4263
        %v4456 = vpack.c.b16 %v4268, %v4264
        %v4457 = vpack.c.b16 %v4269, %v4265
        %v4458 = vpack.c.b16 %v4270, %v4266
        %v4459 = vpack.c.b16 %v4275, %v4271
        %v4460 = vpack.c.b16 %v4276, %v4272
        %v4461 = vpack.c.b16 %v4277, %v4273
        %v4462 = vpack.c.b16 %v4278, %v4274
        %v4463 = vpack.c.b16 %v4283, %v4279
        %v4464 = vpack.c.b16 %v4284, %v4280
        %v4465 = vpack.c.b16 %v4285, %v4281
        %v4466 = vpack.c.b16 %v4286, %v4282
        %v4467 = vpack.c.b16 %v4291, %v4287
        %v4468 = vpack.c.b16 %v4292, %v4288
        %v4469 = vpack.c.b16 %v4293, %v4289
        %v4470 = vpack.c.b16 %v4294, %v4290
        %v4471 = vpack.c.b16 %v4299, %v4295
        %v4472 = vpack.c.b16 %v4300, %v4296
        %v4473 = vpack.c.b16 %v4301, %v4297
        %v4474 = vpack.c.b16 %v4302, %v4298
        %v4475 = vpack.c.b16 %v4307, %v4303
        %v4476 = vpack.c.b16 %v4308, %v4304
        %v4477 = vpack.c.b16 %v4309, %v4305
        %v4478 = vpack.c.b16 %v4310, %v4306
        %v4479 = vpack.c.b16 %v4315, %v4311
        %v4480 = vpack.c.b16 %v4316, %v4312
        %v4481 = vpack.c.b16 %v4317, %v4313
        %v4482 = vpack.c.b16 %v4318, %v4314
        %v4483 = vpack.c.b16 %v4323, %v4319
        %v4484 = vpack.c.b16 %v4324, %v4320
        %v4485 = vpack.c.b16 %v4325, %v4321
        %v4486 = vpack.c.b16 %v4326, %v4322
        %v4487 = vpack.c.b16 %v4331, %v4327
        %v4488 = vpack.c.b16 %v4332, %v4328
        %v4489 = vpack.c.b16 %v4333, %v4329
        %v4490 = vpack.c.b16 %v4334, %v4330
        %v4491 = vpack.c.b16 %v4339, %v4335
        %v4492 = vpack.c.b16 %v4340, %v4336
        %v4493 = vpack.c.b16 %v4341, %v4337
        %v4494 = vpack.c.b16 %v4342, %v4338
        %v4495 = vpack.c.b16 %v4347, %v4343
        %v4496 = vpack.c.b16 %v4348, %v4344
        %v4497 = vpack.c.b16 %v4349, %v4345
        %v4498 = vpack.c.b16 %v4350, %v4346
        %v4499 = vpack.c.b16 %v4355, %v4351
        %v4500 = vpack.c.b16 %v4356, %v4352
        %v4501 = vpack.c.b16 %v4357, %v4353
        %v4502 = vpack.c.b16 %v4358, %v4354
        %v4503 = vpack.c.b16 %v4363, %v4359
        %v4504 = vpack.c.b16 %v4364, %v4360
        %v4505 = vpack.c.b16 %v4365, %v4361
        %v4506 = vpack.c.b16 %v4366, %v4362
        %v4507 = vpack.c.b16 %v4371, %v4367
        %v4508 = vpack.c.b16 %v4372, %v4368
        %v4509 = vpack.c.b16 %v4373, %v4369
        %v4510 = vpack.c.b16 %v4374, %v4370
        %v4511 = vpack.c.b16 %v4379, %v4375
        %v4512 = vpack.c.b16 %v4380, %v4376
        %v4513 = vpack.c.b16 %v4381, %v4377
        %v4514 = vpack.c.b16 %v4382, %v4378
        %v4515 = vpack.c.b16 %v4387, %v4383
        %v4516 = vpack.c.b16 %v4388, %v4384
        %v4517 = vpack.c.b16 %v4389, %v4385
        %v4518 = vpack.c.b16 %v4390, %v4386
        %v4519 = vpack.c.b16 %v4395, %v4391
        %v4520 = vpack.c.b16 %v4396, %v4392
        %v4521 = vpack.c.b16 %v4397, %v4393
        %v4522 = vpack.c.b16 %v4398, %v4394
        %v4523 = vpack.c.b16 %v4403, %v4399
        %v4524 = vpack.c.b16 %v4404, %v4400
        %v4525 = vpack.c.b16 %v4405, %v4401
        %v4526 = vpack.c.b16 %v4406, %v4402
        %v4527 = vpack.c.b16 %v4411, %v4407
        %v4528 = vpack.c.b16 %v4412, %v4408
        %v4529 = vpack.c.b16 %v4413, %v4409
        %v4530 = vpack.c.b16 %v4414, %v4410
        %v4531 = vpack.c.b16 %v4419, %v4415
        %v4532 = vpack.c.b16 %v4420, %v4416
        %v4533 = vpack.c.b16 %v4421, %v4417
        %v4534 = vpack.c.b16 %v4422, %v4418
        %v4535 = vpack.c.b16 %v4427, %v4423
        %v4536 = vpack.c.b16 %v4428, %v4424
        %v4537 = vpack.c.b16 %v4429, %v4425
        %v4538 = vpack.c.b16 %v4430, %v4426
        %v4539 = vpack.c.b16 %v4435, %v4431
        %v4540 = vpack.c.b16 %v4436, %v4432
        %v4541 = vpack.c.b16 %v4437, %v4433
        %v4542 = vpack.c.b16 %v4438, %v4434
        %v4543 = vpack.c.b16 %v4443, %v4439
        %v4544 = vpack.c.b16 %v4444, %v4440
        %v4545 = vpack.c.b16 %v4445, %v4441
        %v4546 = vpack.c.b16 %v4446, %v4442
        %v4547 = vpack.c.b16 %v4451, %v4447
        %v4548 = vpack.c.b16 %v4452, %v4448
        %v4549 = vpack.c.b16 %v4453, %v4449
        %v4550 = vpack.c.b16 %v4454, %v4450
        %4647 = vmatpush.bf16.msra.mxu0 %v4483
        %4648 = vmatpush.bf16.msra.mxu0 %v4479
        %4649 = vmatpush.bf16.msra.mxu0 %v4475
        %4650 = vmatpush.bf16.msra.mxu0 %v4471
        %4651 = vmatpush.bf16.msra.mxu0 %v4467
        %4652 = vmatpush.bf16.msra.mxu0 %v4463
        %4653 = vmatpush.bf16.msra.mxu0 %v4459
        %4654 = vmatpush.bf16.msra.mxu0 %v4455
        %4655 = vmatmul.bf16.gmra.mxu0 %v3719
        %v4656 = vpop.f32.mrf.mxu0
        %v4657 = vadd.f32 %v4163, %v4656
        %v4658 = vpop.f32.mrf.mxu0
        %v4659 = vadd.f32 %v4163, %v4658
        %4660 = vmatmul.bf16.gmra.mxu0 %v3720
        %v4661 = vpop.f32.mrf.mxu0
        %v4662 = vadd.f32 %v4163, %v4661
        %v4663 = vpop.f32.mrf.mxu0
        %v4664 = vadd.f32 %v4163, %v4663
        %4665 = vdwg.mxu0
        %4666 = vmatpush.bf16.msra.mxu0 %v4515
        %4667 = vmatpush.bf16.msra.mxu0 %v4511
        %4668 = vmatpush.bf16.msra.mxu0 %v4507
        %4669 = vmatpush.bf16.msra.mxu0 %v4503
        %4670 = vmatpush.bf16.msra.mxu0 %v4499
        %4671 = vmatpush.bf16.msra.mxu0 %v4495
        %4672 = vmatpush.bf16.msra.mxu0 %v4491
        %4673 = vmatpush.bf16.msra.mxu0 %v4487
        %4674 = vmatmul.bf16.gmra.mxu0 %v4059
        %v4675 = vpop.f32.mrf.mxu0
        %v4676 = vadd.f32 %v4657, %v4675
        %v4677 = vpop.f32.mrf.mxu0
        %v4678 = vadd.f32 %v4659, %v4677
        %4679 = vmatmul.bf16.gmra.mxu0 %v4061
        %v4680 = vpop.f32.mrf.mxu0
        %v4681 = vadd.f32 %v4662, %v4680
        %v4682 = vpop.f32.mrf.mxu0
        %v4683 = vadd.f32 %v4664, %v4682
        %4684 = vdwg.mxu0
        %4685 = vmatpush.bf16.msra.mxu0 %v4547
        %4686 = vmatpush.bf16.msra.mxu0 %v4543
        %4687 = vmatpush.bf16.msra.mxu0 %v4539
        %4688 = vmatpush.bf16.msra.mxu0 %v4535
        %4689 = vmatpush.bf16.msra.mxu0 %v4531
        %4690 = vmatpush.bf16.msra.mxu0 %v4527
        %4691 = vmatpush.bf16.msra.mxu0 %v4523
        %4692 = vmatpush.bf16.msra.mxu0 %v4519
        %4693 = vmatmul.bf16.gmra.mxu0 %v4060
        %v4694 = vpop.f32.mrf.mxu0
        %v4695 = vadd.f32 %v4676, %v4694
        %v4696 = vpop.f32.mrf.mxu0
        %v4697 = vadd.f32 %v4678, %v4696
        %4698 = vmatmul.bf16.gmra.mxu0 %v4062
        %v4699 = vpop.f32.mrf.mxu0
        %v4700 = vadd.f32 %v4681, %v4699
        %v4701 = vpop.f32.mrf.mxu0
        %v4702 = vadd.f32 %v4683, %v4701
        %4703 = vdwg.mxu0
        %4704 = vmatpush.bf16.msra.mxu0 %v4484
        %4705 = vmatpush.bf16.msra.mxu0 %v4480
        %4706 = vmatpush.bf16.msra.mxu0 %v4476
        %4707 = vmatpush.bf16.msra.mxu0 %v4472
        %4708 = vmatpush.bf16.msra.mxu0 %v4468
        %4709 = vmatpush.bf16.msra.mxu0 %v4464
        %4710 = vmatpush.bf16.msra.mxu0 %v4460
        %4711 = vmatpush.bf16.msra.mxu0 %v4456
        %4712 = vmatmul.bf16.gmra.mxu0 %v3719
        %v4713 = vpop.f32.mrf.mxu0
        %v4714 = vadd.f32 %v4164, %v4713
        %v4715 = vpop.f32.mrf.mxu0
        %v4716 = vadd.f32 %v4164, %v4715
        %4717 = vmatmul.bf16.gmra.mxu0 %v3720
        %v4718 = vpop.f32.mrf.mxu0
        %v4719 = vadd.f32 %v4164, %v4718
        %v4720 = vpop.f32.mrf.mxu0
        %v4721 = vadd.f32 %v4164, %v4720
        %4722 = vdwg.mxu0
        %4723 = vmatpush.bf16.msra.mxu0 %v4516
        %4724 = vmatpush.bf16.msra.mxu0 %v4512
        %4725 = vmatpush.bf16.msra.mxu0 %v4508
        %4726 = vmatpush.bf16.msra.mxu0 %v4504
        %4727 = vmatpush.bf16.msra.mxu0 %v4500
        %4728 = vmatpush.bf16.msra.mxu0 %v4496
        %4729 = vmatpush.bf16.msra.mxu0 %v4492
        %4730 = vmatpush.bf16.msra.mxu0 %v4488
        %4731 = vmatmul.bf16.gmra.mxu0 %v4059
        %v4732 = vpop.f32.mrf.mxu0
        %v4733 = vadd.f32 %v4714, %v4732
        %v4734 = vpop.f32.mrf.mxu0
        %v4735 = vadd.f32 %v4716, %v4734
        %4736 = vmatmul.bf16.gmra.mxu0 %v4061
        %v4737 = vpop.f32.mrf.mxu0
        %v4738 = vadd.f32 %v4719, %v4737
        %v4739 = vpop.f32.mrf.mxu0
        %v4740 = vadd.f32 %v4721, %v4739
        %4741 = vdwg.mxu0
        %4742 = vmatpush.bf16.msra.mxu0 %v4548
        %4743 = vmatpush.bf16.msra.mxu0 %v4544
        %4744 = vmatpush.bf16.msra.mxu0 %v4540
        %4745 = vmatpush.bf16.msra.mxu0 %v4536
        %4746 = vmatpush.bf16.msra.mxu0 %v4532
        %4747 = vmatpush.bf16.msra.mxu0 %v4528
        %4748 = vmatpush.bf16.msra.mxu0 %v4524
        %4749 = vmatpush.bf16.msra.mxu0 %v4520
        %4750 = vmatmul.bf16.gmra.mxu0 %v4060
        %v4751 = vpop.f32.mrf.mxu0
        %v4752 = vadd.f32 %v4733, %v4751
        %v4753 = vpop.f32.mrf.mxu0
        %v4754 = vadd.f32 %v4735, %v4753
        %4755 = vmatmul.bf16.gmra.mxu0 %v4062
        %v4756 = vpop.f32.mrf.mxu0
        %v4757 = vadd.f32 %v4738, %v4756
        %v4758 = vpop.f32.mrf.mxu0
        %v4759 = vadd.f32 %v4740, %v4758
        %4760 = vdwg.mxu0
        %4761 = vmatpush.bf16.msra.mxu0 %v4485
        %4762 = vmatpush.bf16.msra.mxu0 %v4481
        %4763 = vmatpush.bf16.msra.mxu0 %v4477
        %4764 = vmatpush.bf16.msra.mxu0 %v4473
        %4765 = vmatpush.bf16.msra.mxu0 %v4469
        %4766 = vmatpush.bf16.msra.mxu0 %v4465
        %4767 = vmatpush.bf16.msra.mxu0 %v4461
        %4768 = vmatpush.bf16.msra.mxu0 %v4457
        %4769 = vmatmul.bf16.gmra.mxu0 %v3719
        %v4770 = vpop.f32.mrf.mxu0
        %v4771 = vadd.f32 %v4165, %v4770
        %v4772 = vpop.f32.mrf.mxu0
        %v4773 = vadd.f32 %v4165, %v4772
        %4774 = vmatmul.bf16.gmra.mxu0 %v3720
        %v4775 = vpop.f32.mrf.mxu0
        %v4776 = vadd.f32 %v4165, %v4775
        %v4777 = vpop.f32.mrf.mxu0
        %v4778 = vadd.f32 %v4165, %v4777
        %4779 = vdwg.mxu0
        %4780 = vmatpush.bf16.msra.mxu0 %v4517
        %4781 = vmatpush.bf16.msra.mxu0 %v4513
        %4782 = vmatpush.bf16.msra.mxu0 %v4509
        %4783 = vmatpush.bf16.msra.mxu0 %v4505
        %4784 = vmatpush.bf16.msra.mxu0 %v4501
        %4785 = vmatpush.bf16.msra.mxu0 %v4497
        %4786 = vmatpush.bf16.msra.mxu0 %v4493
        %4787 = vmatpush.bf16.msra.mxu0 %v4489
        %4788 = vmatmul.bf16.gmra.mxu0 %v4059
        %v4789 = vpop.f32.mrf.mxu0
        %v4790 = vadd.f32 %v4771, %v4789
        %v4791 = vpop.f32.mrf.mxu0
        %v4792 = vadd.f32 %v4773, %v4791
        %4793 = vmatmul.bf16.gmra.mxu0 %v4061
        %v4794 = vpop.f32.mrf.mxu0
        %v4795 = vadd.f32 %v4776, %v4794
        %v4796 = vpop.f32.mrf.mxu0
        %v4797 = vadd.f32 %v4778, %v4796
        %4798 = vdwg.mxu0
        %4799 = vmatpush.bf16.msra.mxu0 %v4549
        %4800 = vmatpush.bf16.msra.mxu0 %v4545
        %4801 = vmatpush.bf16.msra.mxu0 %v4541
        %4802 = vmatpush.bf16.msra.mxu0 %v4537
        %4803 = vmatpush.bf16.msra.mxu0 %v4533
        %4804 = vmatpush.bf16.msra.mxu0 %v4529
        %4805 = vmatpush.bf16.msra.mxu0 %v4525
        %4806 = vmatpush.bf16.msra.mxu0 %v4521
        %4807 = vmatmul.bf16.gmra.mxu0 %v4060
        %v4808 = vpop.f32.mrf.mxu0
        %v4809 = vadd.f32 %v4790, %v4808
        %v4810 = vpop.f32.mrf.mxu0
        %v4811 = vadd.f32 %v4792, %v4810
        %4812 = vmatmul.bf16.gmra.mxu0 %v4062
        %v4813 = vpop.f32.mrf.mxu0
        %v4814 = vadd.f32 %v4795, %v4813
        %v4815 = vpop.f32.mrf.mxu0
        %v4816 = vadd.f32 %v4797, %v4815
        %4817 = vdwg.mxu0
        %4818 = vmatpush.bf16.msra.mxu0 %v4486
        %4819 = vmatpush.bf16.msra.mxu0 %v4482
        %4820 = vmatpush.bf16.msra.mxu0 %v4478
        %4821 = vmatpush.bf16.msra.mxu0 %v4474
        %4822 = vmatpush.bf16.msra.mxu0 %v4470
        %4823 = vmatpush.bf16.msra.mxu0 %v4466
        %4824 = vmatpush.bf16.msra.mxu0 %v4462
        %4825 = vmatpush.bf16.msra.mxu0 %v4458
        %4826 = vmatmul.bf16.gmra.mxu0 %v3719
        %v4827 = vpop.f32.mrf.mxu0
        %v4828 = vadd.f32 %v4166, %v4827
        %v4829 = vpop.f32.mrf.mxu0
        %v4830 = vadd.f32 %v4166, %v4829
        %4831 = vmatmul.bf16.gmra.mxu0 %v3720
        %v4832 = vpop.f32.mrf.mxu0
        %v4833 = vadd.f32 %v4166, %v4832
        %v4834 = vpop.f32.mrf.mxu0
        %v4835 = vadd.f32 %v4166, %v4834
        %4836 = vdwg.mxu0
        %4837 = vmatpush.bf16.msra.mxu0 %v4518
        %4838 = vmatpush.bf16.msra.mxu0 %v4514
        %4839 = vmatpush.bf16.msra.mxu0 %v4510
        %4840 = vmatpush.bf16.msra.mxu0 %v4506
        %4841 = vmatpush.bf16.msra.mxu0 %v4502
        %4842 = vmatpush.bf16.msra.mxu0 %v4498
        %4843 = vmatpush.bf16.msra.mxu0 %v4494
        %4844 = vmatpush.bf16.msra.mxu0 %v4490
        %4845 = vmatmul.bf16.gmra.mxu0 %v4059
        %v4846 = vpop.f32.mrf.mxu0
        %v4847 = vadd.f32 %v4828, %v4846
        %v4848 = vpop.f32.mrf.mxu0
        %v4849 = vadd.f32 %v4830, %v4848
        %4850 = vmatmul.bf16.gmra.mxu0 %v4061
        %v4851 = vpop.f32.mrf.mxu0
        %v4852 = vadd.f32 %v4833, %v4851
        %v4853 = vpop.f32.mrf.mxu0
        %v4854 = vadd.f32 %v4835, %v4853
        %4855 = vdwg.mxu0
        %4856 = vmatpush.bf16.msra.mxu0 %v4550
        %4857 = vmatpush.bf16.msra.mxu0 %v4546
        %4858 = vmatpush.bf16.msra.mxu0 %v4542
        %4859 = vmatpush.bf16.msra.mxu0 %v4538
        %4860 = vmatpush.bf16.msra.mxu0 %v4534
        %4861 = vmatpush.bf16.msra.mxu0 %v4530
        %4862 = vmatpush.bf16.msra.mxu0 %v4526
        %4863 = vmatpush.bf16.msra.mxu0 %v4522
        %4864 = vmatmul.bf16.gmra.mxu0 %v4060
        %v4865 = vpop.f32.mrf.mxu0
        %v4866 = vadd.f32 %v4847, %v4865
        %v4867 = vpop.f32.mrf.mxu0
        %v4868 = vadd.f32 %v4849, %v4867
        %4869 = vmatmul.bf16.gmra.mxu0 %v4062
        %v4870 = vpop.f32.mrf.mxu0
        %v4871 = vadd.f32 %v4852, %v4870
        %v4872 = vpop.f32.mrf.mxu0
        %v4873 = vadd.f32 %v4854, %v4872
        %4874 = vdwg.mxu0
        %4875 = vst [vmem:[%s309] sm:$0xff] %v4695
        %4876 = vst [vmem:[%s309 + $0x8] sm:$0xff] %v4752
        %4877 = vst [vmem:[%s309 + $0x10] sm:$0xff] %v4809
        %4878 = vst [vmem:[%s309 + $0x18] sm:$0xff] %v4866
        %4879 = vst [vmem:[%s309 + $0x20] sm:$0xff] %v4697
        %4880 = vst [vmem:[%s309 + $0x28] sm:$0xff] %v4754
        %4881 = vst [vmem:[%s309 + $0x30] sm:$0xff] %v4811
        %4882 = vst [vmem:[%s309 + $0x38] sm:$0xff] %v4868
        %4883 = vst [vmem:[%s309 + $0x40] sm:$0xff] %v4700
        %4884 = vst [vmem:[%s309 + $0x48] sm:$0xff] %v4757
        %4885 = vst [vmem:[%s309 + $0x50] sm:$0xff] %v4814
        %4886 = vst [vmem:[%s309 + $0x58] sm:$0xff] %v4871
        %4887 = vst [vmem:[%s309 + $0x60] sm:$0xff] %v4702
        %4888 = vst [vmem:[%s309 + $0x68] sm:$0xff] %v4759
        %4889 = vst [vmem:[%s309 + $0x70] sm:$0xff] %v4816
        %4890 = vst [vmem:[%s309 + $0x78] sm:$0xff] %v4873
        %s4891 = sand.u32 %s142, 1
        %s4892 = scalar_lea.sflag [#allocation4], %s4891
        %s4893 = sand.u32 %s142, 1
        %s4894 = smul.addr %s4893, 128
        %s4895 = scalar_lea.vmem [#allocation11], %s4894
        // Predicated region
        $region61: #{tpu_custom_call.1} parent=39 // pred_check
          %p4896 = pneg %p152
        $region62: #{tpu_custom_call.1} parent=39 // pred_check_branch
          %4898 = sbr.rel (%p4896) target = $region64
        $region63: #{tpu_custom_call.1} parent=39 // pred_region
          %s4899 = smul.u32 2, %s24
          %4901 = vsyncadd %s4892, 0
          %s4902 = smul.addr %s4899, 8
          %s4903 = smul.addr %s4902, 8
          %s4904 = scalar_lea.hbm %s5, %s4903
          %s4905 = sshll.u32 %s4895, 4
          %s4906 = int_to_ptr.vmem [resolvable:$true] %s4905
          %s4907 = sshll.u32 %s4904, 4
          %s4908 = int_to_ptr.hbm [resolvable:$true] %s4907
          %4913 = dma.vmem_to_hbm [thread:$0]  %s4906, 2048, %s4908, %s4892, 512, 512, 32
        $region64: #{tpu_custom_call.1} parent=39 // pred_fallthru
          _
      $region40: #{tpu_custom_call.1} parent=5 // pred_fallthru
        _
      %p4914 = scmp.le.s32.totalorder 2, %s19
      // Predicated region
      $region65: #{tpu_custom_call.1} parent=5 // pred_check
        %p4915 = pneg %p4914
      $region66: #{tpu_custom_call.1} parent=5 // pred_check_branch
        %4917 = sbr.rel (%p4915) target = $region68
      $region67: #{tpu_custom_call.1} parent=5 // pred_region
        %s4918 = ssub.s32 %s19, 2
        // Predicated region
        $region69: #{tpu_custom_call.1} parent=67 // pred_check
          %p4919 = pneg %p158
        $region70: #{tpu_custom_call.1} parent=67 // pred_check_branch
          %4921 = sbr.rel (%p4919) target = $region72
        $region71: #{tpu_custom_call.1} parent=67 // pred_region
          %s4922 = sand.u32 %s143, 1
          %s4923 = scalar_lea.sflag [#allocation4], %s4922
          %s4924 = sand.u32 %s143, 1
          %s4925 = smul.addr %s4924, 128
          %s4926 = scalar_lea.vmem [#allocation11], %s4925
          %4928 = dma.done %s4923, 2048
        $region72: #{tpu_custom_call.1} parent=67 // pred_fallthru
          _
      $region68: #{tpu_custom_call.1} parent=5 // pred_fallthru
        _
    $region6: #{tpu_custom_call.1} parent=1 // loop_footer
      %s23 = sadd.s32 1, %s19
    $region7: #{tpu_custom_call.1} parent=1 // loop_footer_branch
      %18 = sbr.rel target = $region3
    $region8: #{tpu_custom_call.1} parent=1 // loop_exit
      _
    %4929 = vsyncpa [#allocation3], 1
    %s4930 = scalar_lea.sflag [#allocation3], 1
    %4931 = vsyncpa %s4930, 1
    %4932 = vsyncpa [#allocation6], 1
    %4933 = vsyncpa [#allocation9], 1
    %4934 = vsyncpa [#allocation4], 1
    %s4935 = scalar_lea.sflag [#allocation4], 1
    %4936 = vsyncpa %s4935, 1

</llo_original>
